<compile_context>
chip_gen: v7x
topology: tpu7x:2x2x1
jax: 0.10.0
libtpu: 0.0.40
codegen_flags: <defaults>
</compile_context>

<pallas_src>
import jax
import jax.numpy as jnp
from jax.experimental import pallas as pl
from jax.experimental.pallas import tpu as pltpu

INPUT_SIZE = 14            # "INTPUT_SIZE" in the PyTorch code
CONV_OUT = 8
HIDDEN = 16
NUM_GATES = 4
GATES = NUM_GATES * HIDDEN  # 64
DENSE_MID = 6


def lstm_forward_kernel(xp_ref, wconv_ref, bconv_ref,
                        wih0_ref, whh0_ref, bg0_ref,
                        wc_ref, bg1_ref,
                        hc0_ref,
                        wd1_ref, bd1_ref, wd2_ref, bd2_ref,
                        out_ref,
                        z0_buf):
    H = HIDDEN
    Tm1, _, TB = xp_ref.shape

    # ---- load every weight/bias once (hoisted out of the recurrence) ----
    wconv = wconv_ref[...]     # (8, 28)   [W_tap0 | W_tap1]
    bconv = bconv_ref[...]     # (8, 1)
    wih0 = wih0_ref[...]       # (64, 8)   gate order (i, f, o, g); i/f/o pre-scaled 0.5
    whh0 = whh0_ref[...]       # (64, 16)
    bg0 = bg0_ref[...]         # (64, 1)   b_ih + b_hh (pre-scaled)
    wc = wc_ref[...]           # (128, 32) [[W_ih1 W_hh1]; [W_hh0 0]]
    bg1 = bg1_ref[...]         # (64, 1)
    wd1 = wd1_ref[...]         # (6, 16)
    bd1 = bd1_ref[...]         # (6, 1)
    wd2 = wd2_ref[...]         # (1, 6)
    bd2 = bd2_ref[...]         # (1, 1)

    # sigmoid(z) = 0.5*tanh(0.5 z) + 0.5.  The 0.5 PRE-scale is folded into the
    # packed weights/biases; only the (64,1) post scale/shift remain and they
    # sublane-broadcast in the VPU (never materialized at (TB,64)).
    row = jax.lax.broadcasted_iota(jnp.int32, (GATES, 1), 0)
    is_sig = row < 3 * H
    post = jnp.where(is_sig, 0.5, 1.0).astype(jnp.float32)
    shift = jnp.where(is_sig, 0.5, 0.0).astype(jnp.float32)

    def gate_split(z):                            # z: (64, TB) f32
        act = jnp.tanh(z) * post + shift          # one EUP pass: sigmoid + tanh lanes
        return (act[0:H], act[H:2 * H],           # i, f
                act[2 * H:3 * H], act[3 * H:4 * H])  # o, g

    # ---- off-serial-path precompute: conv(14->8, k=2)+ReLU and the layer-0 input
    #      projection per timestep, written straight into VMEM scratch ----
    for t in range(Tm1):
        xt = xp_ref[t]                                                   # (28, TB)
        feats = jnp.maximum(
            jnp.dot(wconv, xt, preferred_element_type=jnp.float32) + bconv, 0.0)
        z0_buf[t] = (jnp.dot(wih0, feats.astype(wih0.dtype),
                             preferred_element_type=jnp.float32) + bg0)  # (64, TB)

    # ---- 2-layer LSTM recurrence (h0 == c0 per layer, matching the torch code) ----
    h0 = hc0_ref[0]
    c0 = h0
    h1 = hc0_ref[1]
    c1 = h1
    # Seed the hidden->hidden term for step 0; later steps get it from rows
    # [64,128) of the fused matmul.
    hh0 = jnp.dot(whh0, h0.astype(whh0.dtype), preferred_element_type=jnp.float32)

    def step(t, carry):
        h0, c0, h1, c1, hh0 = carry
        # layer 0: input projection precomputed, hh term carried -> no matmul here.
        i0, f0, o0, g0 = gate_split(z0_buf[t] + hh0)
        c0 = f0 * c0 + i0 * g0
        h0 = o0 * jnp.tanh(c0)
        # one fused 128-wide matmul: rows [0,64) = z1_t, rows [64,128) = W_hh0 @ h0_t
        hcat = jnp.concatenate([h0, h1], axis=0)                         # (32, TB)
        zc = jnp.dot(wc, hcat.astype(wc.dtype),
                     preferred_element_type=jnp.float32)                 # (128, TB)
        i1, f1, o1, g1 = gate_split(zc[0:GATES] + bg1)
        c1 = f1 * c1 + i1 * g1
        h1 = o1 * jnp.tanh(c1)
        return h0, c0, h1, c1, zc[GATES:2 * GATES]

    carry = (h0, c0, h1, c1, hh0)
    if TB <= 128:
        # tiny tiles: static unroll keeps the schedule flat, live ranges are small
        for t in range(Tm1):
            carry = step(t, carry)
    else:
        # large tiles: fori_loop bounds live ranges (no 7x unrolled (·,TB) vregs)
        carry = jax.lax.fori_loop(0, Tm1, step, carry)
    h1 = carry[2]

    # ---- dense head on the last timestep of the top layer (lane-dense store) ----
    d1 = jnp.maximum(
        jnp.dot(wd1, h1.astype(wd1.dtype), preferred_element_type=jnp.float32) + bd1,
        0.0)                                                             # (6, TB)
    out_ref[...] = (jnp.dot(wd2, d1.astype(wd2.dtype),
                            preferred_element_type=jnp.float32) + bd2
                    ).astype(out_ref.dtype)                              # (1, TB)


def lstm_forward(x, packed, hc0, *, batch_tile=None, compute_dtype=jnp.float32):
    """x: (B, T, 14) batch-first; hc0: (2, B, 16) shared h0 == c0 init.

    batch_tile: lane tile over the batch (must divide B and be B or a multiple of
    128).  Pick the largest tile that fits VMEM (~3.5 KiB/example in f32, half in
    bf16); on v7x also make the grid >= 2 so both TensorCores are used.
    compute_dtype=jnp.bfloat16 is recommended for matmul operands on v6e/v7x
    (cell-state / gate math stays f32 either way); keep f32 on v5e.
    """
    B, T, C = x.shape
    Tm1 = T - 1
    TB = B if batch_tile is None else batch_tile
    assert B % TB == 0, "batch_tile must divide the batch size"
    assert TB == B or TB % 128 == 0, \
        "batch_tile must be the full batch or a multiple of 128 (batch is the lane dim)"

    # Layout plumbing only (outside the kernel): pair the two conv taps along
    # channels, put time first and batch last (lane dim).
    xpair = jnp.concatenate([x[:, :-1, :], x[:, 1:, :]], axis=-1)    # (B, Tm1, 2C)
    xpair = jnp.transpose(xpair, (1, 2, 0)).astype(compute_dtype)    # (Tm1, 2C, B)
    hc0_t = jnp.transpose(hc0, (0, 2, 1))                            # (2, 16, B)

    def wcast(a):
        return a.astype(compute_dtype)

    weights = (wcast(packed["wconv"]), packed["bconv"],
               wcast(packed["wih0"]), wcast(packed["whh0"]), packed["bg0"],
               wcast(packed["wc"]), packed["bg1"])
    dense = (wcast(packed["wd1"]), packed["bd1"],
             wcast(packed["wd2"]), packed["bd2"])

    def resident(a):   # whole 2-D array, same block every grid step -> stays in VMEM
        return pl.BlockSpec(a.shape, lambda i: (0, 0))

    in_specs = ([pl.BlockSpec((Tm1, 2 * C, TB), lambda i: (0, 0, i))]
                + [resident(w) for w in weights]
                + [pl.BlockSpec((2, HIDDEN, TB), lambda i: (0, 0, i))]
                + [resident(w) for w in dense])

    out = pl.pallas_call(
        lstm_forward_kernel,
        out_shape=jax.ShapeDtypeStruct((1, B), jnp.float32),
        grid=(B // TB,),
        in_specs=in_specs,
        out_specs=pl.BlockSpec((1, TB), lambda i: (0, i)),
        scratch_shapes=[pltpu.VMEM((Tm1, GATES, TB), jnp.float32)],
        compiler_params=pltpu.CompilerParams(
            dimension_semantics=("parallel",)),
    )(xpair, *weights, hc0_t, *dense)
    return out.T                                                     # (B, 1)


def init_raw_params(key):
    """PyTorch-layout parameters (gate order i, f, g, o), uniform init."""
    ks = jax.random.split(key, 14)

    def u(k, shape, fan_in):
        bound = float(fan_in) ** -0.5
        return jax.random.uniform(k, shape, jnp.float32, minval=-bound, maxval=bound)

    return {
        # Conv1d(14 -> 8, kernel_size=2): weight (8, 14, 2), bias (8,)
        "w_conv": u(ks[0], (CONV_OUT, INPUT_SIZE, 2), INPUT_SIZE * 2),
        "b_conv": u(ks[1], (CONV_OUT,), INPUT_SIZE * 2),
        # LSTM layer 0
        "w_ih0": u(ks[2], (GATES, CONV_OUT), HIDDEN),
        "w_hh0": u(ks[3], (GATES, HIDDEN), HIDDEN),
        "b_ih0": u(ks[4], (GATES,), HIDDEN),
        "b_hh0": u(ks[5], (GATES,), HIDDEN),
        # LSTM layer 1
        "w_ih1": u(ks[6], (GATES, HIDDEN), HIDDEN),
        "w_hh1": u(ks[7], (GATES, HIDDEN), HIDDEN),
        "b_ih1": u(ks[8], (GATES,), HIDDEN),
        "b_hh1": u(ks[9], (GATES,), HIDDEN),
        # Dense head: Linear(16, 6), Linear(6, 1)
        "w_d1": u(ks[10], (DENSE_MID, HIDDEN), HIDDEN),
        "b_d1": u(ks[11], (DENSE_MID,), HIDDEN),
        "w_d2": u(ks[12], (1, DENSE_MID), DENSE_MID),
        "b_d2": u(ks[13], (1,), DENSE_MID),
    }


def pack_params(raw):
    """Pack PyTorch-layout params into the fused, batch-in-lanes kernel layout.

    * gate order permuted (i, f, g, o) -> (i, f, o, g) so one tanh pass per cell
    * sigmoid 0.5 pre-scale folded into the i/f/o rows of every gate weight/bias
    * layer-1 ih/hh and the layer-0 hh matmul fused into one (128, 32) matrix W_c
    """
    H = HIDDEN
    perm = jnp.concatenate([jnp.arange(0, 2 * H),
                            jnp.arange(3 * H, 4 * H),
                            jnp.arange(2 * H, 3 * H)])
    sig_scale = jnp.where(jnp.arange(GATES) < 3 * H, 0.5, 1.0)[:, None]  # (64, 1)

    def pack_w(w):                   # (64, in) torch layout -> permuted + pre-scaled
        return w[perm, :] * sig_scale

    def pack_b(b_ih, b_hh):          # fold the two biases, permute, pre-scale
        return ((b_ih + b_hh)[perm])[:, None] * sig_scale               # (64, 1)

    wih1 = pack_w(raw["w_ih1"])                                          # (64, 16)
    whh1 = pack_w(raw["w_hh1"])                                          # (64, 16)
    whh0 = pack_w(raw["w_hh0"])                                          # (64, 16)
    wc = jnp.concatenate(
        [jnp.concatenate([wih1, whh1], axis=1),
         jnp.concatenate([whh0, jnp.zeros((GATES, H), jnp.float32)], axis=1)],
        axis=0)                                                          # (128, 32)

    return {
        "wconv": jnp.concatenate([raw["w_conv"][:, :, 0],
                                  raw["w_conv"][:, :, 1]], axis=1),      # (8, 28)
        "bconv": raw["b_conv"][:, None],                                 # (8, 1)
        "wih0": pack_w(raw["w_ih0"]),                                    # (64, 8)
        "whh0": whh0,                                                    # (64, 16)
        "bg0": pack_b(raw["b_ih0"], raw["b_hh0"]),                       # (64, 1)
        "wc": wc,                                                        # (128, 32)
        "bg1": pack_b(raw["b_ih1"], raw["b_hh1"]),                       # (64, 1)
        "wd1": raw["w_d1"],                                              # (6, 16)
        "bd1": raw["b_d1"][:, None],                                     # (6, 1)
        "wd2": raw["w_d2"],                                              # (1, 6)
        "bd2": raw["b_d2"][:, None],                                     # (1, 1)
    }


def reference_forward(x, raw, hc0):
    """Pure-JAX mirror of the PyTorch forward (eval mode, PyTorch gate order)."""
    B, T, _ = x.shape
    H = HIDDEN
    w0 = raw["w_conv"][:, :, 0].T
    w1 = raw["w_conv"][:, :, 1].T
    feats = [jnp.maximum(x[:, t, :] @ w0 + x[:, t + 1, :] @ w1 + raw["b_conv"], 0.0)
             for t in range(T - 1)]

    def cell(xt, h, c, w_ih, w_hh, b_ih, b_hh):
        z = xt @ w_ih.T + h @ w_hh.T + b_ih + b_hh        # gate order i, f, g, o
        i = jax.nn.sigmoid(z[:, 0:H])
        f = jax.nn.sigmoid(z[:, H:2 * H])
        g = jnp.tanh(z[:, 2 * H:3 * H])
        o = jax.nn.sigmoid(z[:, 3 * H:4 * H])
        c = f * c + i * g
        h = o * jnp.tanh(c)
        return h, c

    h0 = c0 = hc0[0]
    h1 = c1 = hc0[1]
    for t in range(T - 1):
        h0, c0 = cell(feats[t], h0, c0,
                      raw["w_ih0"], raw["w_hh0"], raw["b_ih0"], raw["b_hh0"])
        h1, c1 = cell(h0, h1, c1,
                      raw["w_ih1"], raw["w_hh1"], raw["b_ih1"], raw["b_hh1"])

    d1 = jnp.maximum(h1 @ raw["w_d1"].T + raw["b_d1"], 0.0)
    return d1 @ raw["w_d2"].T + raw["b_d2"]


if __name__ == "__main__":
    key = jax.random.PRNGKey(0)
    k_x, k_hc, k_p = jax.random.split(key, 3)

    B, T = 2, 8
    x = jax.random.normal(k_x, (B, T, INPUT_SIZE), jnp.float32)   # (batch, seq, 14)
    # TODO(synk): torch.randn(2, B, 16) inside forward() is replaced by this
    # deterministic, wrapper-generated initial state (h0 == c0, as in the module).
    hc0 = jax.random.normal(k_hc, (2, B, HIDDEN), jnp.float32)

    raw = init_raw_params(k_p)
    packed = pack_params(raw)

    out = lstm_forward(x, packed, hc0)
    out = jax.block_until_ready(out)

    ref = reference_forward(x, raw, hc0)
    assert out.shape == (B, 1), out.shape
    assert jnp.allclose(out, ref, atol=1e-3, rtol=1e-3), (out, ref)

    print("KERNEL_OK")
</pallas_src>

<mosaic_0001>
module attributes {stable_mosaic.version = 11 : i64} {
  func.func @lstm_forward_kernel(%arg0: i32, %arg1: memref<7x28x2xf32, #tpu.memory_space<vmem>>, %arg2: memref<8x28xf32, #tpu.memory_space<vmem>>, %arg3: memref<8x1xf32, #tpu.memory_space<vmem>>, %arg4: memref<64x8xf32, #tpu.memory_space<vmem>>, %arg5: memref<64x16xf32, #tpu.memory_space<vmem>>, %arg6: memref<64x1xf32, #tpu.memory_space<vmem>>, %arg7: memref<128x32xf32, #tpu.memory_space<vmem>>, %arg8: memref<64x1xf32, #tpu.memory_space<vmem>>, %arg9: memref<2x16x2xf32, #tpu.memory_space<vmem>>, %arg10: memref<6x16xf32, #tpu.memory_space<vmem>>, %arg11: memref<6x1xf32, #tpu.memory_space<vmem>>, %arg12: memref<1x6xf32, #tpu.memory_space<vmem>>, %arg13: memref<1x1xf32, #tpu.memory_space<vmem>>, %arg14: memref<1x2xf32, #tpu.memory_space<vmem>>, %arg15: memref<7x64x2xf32, #tpu.memory_space<vmem>>) attributes {dimension_semantics = [#tpu.dimension_semantics<parallel>], iteration_bounds = array<i64: 1>, scalar_prefetch = 0 : i64, scratch_operands = 1 : i64, tpu.core_type = #tpu.core_type<tc>, window_params = [{transform_indices = @transform_0, window_bounds = array<i64: 7, 28, 2>}, {pipeline_mode = #tpu.pipeline_mode<synchronous>, transform_indices = @transform_1, window_bounds = array<i64: 8, 28>}, {pipeline_mode = #tpu.pipeline_mode<synchronous>, transform_indices = @transform_2, window_bounds = array<i64: 8, 1>}, {pipeline_mode = #tpu.pipeline_mode<synchronous>, transform_indices = @transform_3, window_bounds = array<i64: 64, 8>}, {pipeline_mode = #tpu.pipeline_mode<synchronous>, transform_indices = @transform_4, window_bounds = array<i64: 64, 16>}, {pipeline_mode = #tpu.pipeline_mode<synchronous>, transform_indices = @transform_5, window_bounds = array<i64: 64, 1>}, {pipeline_mode = #tpu.pipeline_mode<synchronous>, transform_indices = @transform_6, window_bounds = array<i64: 128, 32>}, {pipeline_mode = #tpu.pipeline_mode<synchronous>, transform_indices = @transform_7, window_bounds = array<i64: 64, 1>}, {transform_indices = @transform_8, window_bounds = array<i64: 2, 16, 2>}, {pipeline_mode = #tpu.pipeline_mode<synchronous>, transform_indices = @transform_9, window_bounds = array<i64: 6, 16>}, {pipeline_mode = #tpu.pipeline_mode<synchronous>, transform_indices = @transform_10, window_bounds = array<i64: 6, 1>}, {pipeline_mode = #tpu.pipeline_mode<synchronous>, transform_indices = @transform_11, window_bounds = array<i64: 1, 6>}, {pipeline_mode = #tpu.pipeline_mode<synchronous>, transform_indices = @transform_12, window_bounds = array<i64: 1, 1>}, {transform_indices = @transform_13, window_bounds = array<i64: 1, 2>}]} {
    %c0 = arith.constant 0 : index
    %c0_0 = arith.constant 0 : index
    %0 = vector.load %arg2[%c0, %c0_0] : memref<8x28xf32, #tpu.memory_space<vmem>>, vector<8x28xf32>
    %c0_1 = arith.constant 0 : index
    %c0_2 = arith.constant 0 : index
    %1 = vector.load %arg3[%c0_1, %c0_2] : memref<8x1xf32, #tpu.memory_space<vmem>>, vector<8x1xf32>
    %c0_3 = arith.constant 0 : index
    %c0_4 = arith.constant 0 : index
    %2 = vector.load %arg4[%c0_3, %c0_4] : memref<64x8xf32, #tpu.memory_space<vmem>>, vector<64x8xf32>
    %c0_5 = arith.constant 0 : index
    %c0_6 = arith.constant 0 : index
    %3 = vector.load %arg5[%c0_5, %c0_6] : memref<64x16xf32, #tpu.memory_space<vmem>>, vector<64x16xf32>
    %c0_7 = arith.constant 0 : index
    %c0_8 = arith.constant 0 : index
    %4 = vector.load %arg6[%c0_7, %c0_8] : memref<64x1xf32, #tpu.memory_space<vmem>>, vector<64x1xf32>
    %c0_9 = arith.constant 0 : index
    %c0_10 = arith.constant 0 : index
    %5 = vector.load %arg7[%c0_9, %c0_10] : memref<128x32xf32, #tpu.memory_space<vmem>>, vector<128x32xf32>
    %c0_11 = arith.constant 0 : index
    %c0_12 = arith.constant 0 : index
    %6 = vector.load %arg8[%c0_11, %c0_12] : memref<64x1xf32, #tpu.memory_space<vmem>>, vector<64x1xf32>
    %c0_13 = arith.constant 0 : index
    %c0_14 = arith.constant 0 : index
    %7 = vector.load %arg10[%c0_13, %c0_14] : memref<6x16xf32, #tpu.memory_space<vmem>>, vector<6x16xf32>
    %c0_15 = arith.constant 0 : index
    %c0_16 = arith.constant 0 : index
    %8 = vector.load %arg11[%c0_15, %c0_16] : memref<6x1xf32, #tpu.memory_space<vmem>>, vector<6x1xf32>
    %c0_17 = arith.constant 0 : index
    %c0_18 = arith.constant 0 : index
    %9 = vector.load %arg12[%c0_17, %c0_18] : memref<1x6xf32, #tpu.memory_space<vmem>>, vector<1x6xf32>
    %c0_19 = arith.constant 0 : index
    %c0_20 = arith.constant 0 : index
    %10 = vector.load %arg13[%c0_19, %c0_20] : memref<1x1xf32, #tpu.memory_space<vmem>>, vector<1x1xf32>
    %11 = tpu.iota {dimensions = array<i32: 0>} : vector<64x1xi32>
    %c48_i32 = arith.constant 48 : i32
    %12 = vector.broadcast %c48_i32 : i32 to vector<64x1xi32>
    %13 = arith.cmpi slt, %11, %12 : vector<64x1xi32>
    %cst = arith.constant 5.000000e-01 : f32
    %cst_21 = arith.constant 1.000000e+00 : f32
    %14 = vector.broadcast %cst : f32 to vector<64x1xf32>
    %15 = vector.broadcast %cst_21 : f32 to vector<64x1xf32>
    %16 = arith.select %13, %14, %15 : vector<64x1xi1>, vector<64x1xf32>
    %cst_22 = arith.constant 5.000000e-01 : f32
    %cst_23 = arith.constant 0.000000e+00 : f32
    %17 = vector.broadcast %cst_22 : f32 to vector<64x1xf32>
    %18 = vector.broadcast %cst_23 : f32 to vector<64x1xf32>
    %19 = arith.select %13, %17, %18 : vector<64x1xi1>, vector<64x1xf32>
    %c0_24 = arith.constant 0 : index
    %c0_25 = arith.constant 0 : index
    %c0_26 = arith.constant 0 : index
    %20 = vector.load %arg1[%c0_24, %c0_25, %c0_26] : memref<7x28x2xf32, #tpu.memory_space<vmem>>, vector<1x28x2xf32>
    %21 = vector.shape_cast %20 : vector<1x28x2xf32> to vector<28x2xf32>
    %cst_27 = arith.constant dense<0.000000e+00> : vector<8x2xf32>
    %22 = tpu.matmul %0, %21, %cst_27 {dimension_numbers = #tpu.dot_dimension_numbers<[1], [0], [0], [1], [0, 0, 1, 1], [], []>} : vector<8x28xf32>, vector<28x2xf32>, vector<8x2xf32> -> vector<8x2xf32>
    %23 = vector.broadcast %1 : vector<8x1xf32> to vector<8x2xf32>
    %24 = arith.addf %22, %23 : vector<8x2xf32>
    %cst_28 = arith.constant 0.000000e+00 : f32
    %25 = vector.broadcast %cst_28 : f32 to vector<8x2xf32>
    %26 = arith.maximumf %24, %25 : vector<8x2xf32>
    %cst_29 = arith.constant dense<0.000000e+00> : vector<64x2xf32>
    %27 = tpu.matmul %2, %26, %cst_29 {dimension_numbers = #tpu.dot_dimension_numbers<[1], [0], [0], [1], [0, 0, 1, 1], [], []>} : vector<64x8xf32>, vector<8x2xf32>, vector<64x2xf32> -> vector<64x2xf32>
    %28 = vector.broadcast %4 : vector<64x1xf32> to vector<64x2xf32>
    %29 = arith.addf %27, %28 : vector<64x2xf32>
    %c0_30 = arith.constant 0 : index
    %c0_31 = arith.constant 0 : index
    %c0_32 = arith.constant 0 : index
    %30 = vector.load %arg15[%c0_30, %c0_31, %c0_32] : memref<7x64x2xf32, #tpu.memory_space<vmem>>, vector<1x64x2xf32>
    %31 = vector.shape_cast %30 : vector<1x64x2xf32> to vector<64x2xf32>
    %32 = vector.shape_cast %29 : vector<64x2xf32> to vector<1x64x2xf32>
    tpu.vector_store %arg15[%c0_30, %c0_31, %c0_32], %32 {strides = array<i32>} : memref<7x64x2xf32, #tpu.memory_space<vmem>>, vector<1x64x2xf32>,
    %c1 = arith.constant 1 : index
    %c0_33 = arith.constant 0 : index
    %c0_34 = arith.constant 0 : index
    %33 = vector.load %arg1[%c1, %c0_33, %c0_34] : memref<7x28x2xf32, #tpu.memory_space<vmem>>, vector<1x28x2xf32>
    %34 = vector.shape_cast %33 : vector<1x28x2xf32> to vector<28x2xf32>
    %cst_35 = arith.constant dense<0.000000e+00> : vector<8x2xf32>
    %35 = tpu.matmul %0, %34, %cst_35 {dimension_numbers = #tpu.dot_dimension_numbers<[1], [0], [0], [1], [0, 0, 1, 1], [], []>} : vector<8x28xf32>, vector<28x2xf32>, vector<8x2xf32> -> vector<8x2xf32>
    %36 = vector.broadcast %1 : vector<8x1xf32> to vector<8x2xf32>
    %37 = arith.addf %35, %36 : vector<8x2xf32>
    %cst_36 = arith.constant 0.000000e+00 : f32
    %38 = vector.broadcast %cst_36 : f32 to vector<8x2xf32>
    %39 = arith.maximumf %37, %38 : vector<8x2xf32>
    %cst_37 = arith.constant dense<0.000000e+00> : vector<64x2xf32>
    %40 = tpu.matmul %2, %39, %cst_37 {dimension_numbers = #tpu.dot_dimension_numbers<[1], [0], [0], [1], [0, 0, 1, 1], [], []>} : vector<64x8xf32>, vector<8x2xf32>, vector<64x2xf32> -> vector<64x2xf32>
    %41 = vector.broadcast %4 : vector<64x1xf32> to vector<64x2xf32>
    %42 = arith.addf %40, %41 : vector<64x2xf32>
    %c1_38 = arith.constant 1 : index
    %c0_39 = arith.constant 0 : index
    %c0_40 = arith.constant 0 : index
    %43 = vector.load %arg15[%c1_38, %c0_39, %c0_40] : memref<7x64x2xf32, #tpu.memory_space<vmem>>, vector<1x64x2xf32>
    %44 = vector.shape_cast %43 : vector<1x64x2xf32> to vector<64x2xf32>
    %45 = vector.shape_cast %42 : vector<64x2xf32> to vector<1x64x2xf32>
    tpu.vector_store %arg15[%c1_38, %c0_39, %c0_40], %45 {strides = array<i32>} : memref<7x64x2xf32, #tpu.memory_space<vmem>>, vector<1x64x2xf32>,
    %c2 = arith.constant 2 : index
    %c0_41 = arith.constant 0 : index
    %c0_42 = arith.constant 0 : index
    %46 = vector.load %arg1[%c2, %c0_41, %c0_42] : memref<7x28x2xf32, #tpu.memory_space<vmem>>, vector<1x28x2xf32>
    %47 = vector.shape_cast %46 : vector<1x28x2xf32> to vector<28x2xf32>
    %cst_43 = arith.constant dense<0.000000e+00> : vector<8x2xf32>
    %48 = tpu.matmul %0, %47, %cst_43 {dimension_numbers = #tpu.dot_dimension_numbers<[1], [0], [0], [1], [0, 0, 1, 1], [], []>} : vector<8x28xf32>, vector<28x2xf32>, vector<8x2xf32> -> vector<8x2xf32>
    %49 = vector.broadcast %1 : vector<8x1xf32> to vector<8x2xf32>
    %50 = arith.addf %48, %49 : vector<8x2xf32>
    %cst_44 = arith.constant 0.000000e+00 : f32
    %51 = vector.broadcast %cst_44 : f32 to vector<8x2xf32>
    %52 = arith.maximumf %50, %51 : vector<8x2xf32>
    %cst_45 = arith.constant dense<0.000000e+00> : vector<64x2xf32>
    %53 = tpu.matmul %2, %52, %cst_45 {dimension_numbers = #tpu.dot_dimension_numbers<[1], [0], [0], [1], [0, 0, 1, 1], [], []>} : vector<64x8xf32>, vector<8x2xf32>, vector<64x2xf32> -> vector<64x2xf32>
    %54 = vector.broadcast %4 : vector<64x1xf32> to vector<64x2xf32>
    %55 = arith.addf %53, %54 : vector<64x2xf32>
    %c2_46 = arith.constant 2 : index
    %c0_47 = arith.constant 0 : index
    %c0_48 = arith.constant 0 : index
    %56 = vector.load %arg15[%c2_46, %c0_47, %c0_48] : memref<7x64x2xf32, #tpu.memory_space<vmem>>, vector<1x64x2xf32>
    %57 = vector.shape_cast %56 : vector<1x64x2xf32> to vector<64x2xf32>
    %58 = vector.shape_cast %55 : vector<64x2xf32> to vector<1x64x2xf32>
    tpu.vector_store %arg15[%c2_46, %c0_47, %c0_48], %58 {strides = array<i32>} : memref<7x64x2xf32, #tpu.memory_space<vmem>>, vector<1x64x2xf32>,
    %c3 = arith.constant 3 : index
    %c0_49 = arith.constant 0 : index
    %c0_50 = arith.constant 0 : index
    %59 = vector.load %arg1[%c3, %c0_49, %c0_50] : memref<7x28x2xf32, #tpu.memory_space<vmem>>, vector<1x28x2xf32>
    %60 = vector.shape_cast %59 : vector<1x28x2xf32> to vector<28x2xf32>
    %cst_51 = arith.constant dense<0.000000e+00> : vector<8x2xf32>
    %61 = tpu.matmul %0, %60, %cst_51 {dimension_numbers = #tpu.dot_dimension_numbers<[1], [0], [0], [1], [0, 0, 1, 1], [], []>} : vector<8x28xf32>, vector<28x2xf32>, vector<8x2xf32> -> vector<8x2xf32>
    %62 = vector.broadcast %1 : vector<8x1xf32> to vector<8x2xf32>
    %63 = arith.addf %61, %62 : vector<8x2xf32>
    %cst_52 = arith.constant 0.000000e+00 : f32
    %64 = vector.broadcast %cst_52 : f32 to vector<8x2xf32>
    %65 = arith.maximumf %63, %64 : vector<8x2xf32>
    %cst_53 = arith.constant dense<0.000000e+00> : vector<64x2xf32>
    %66 = tpu.matmul %2, %65, %cst_53 {dimension_numbers = #tpu.dot_dimension_numbers<[1], [0], [0], [1], [0, 0, 1, 1], [], []>} : vector<64x8xf32>, vector<8x2xf32>, vector<64x2xf32> -> vector<64x2xf32>
    %67 = vector.broadcast %4 : vector<64x1xf32> to vector<64x2xf32>
    %68 = arith.addf %66, %67 : vector<64x2xf32>
    %c3_54 = arith.constant 3 : index
    %c0_55 = arith.constant 0 : index
    %c0_56 = arith.constant 0 : index
    %69 = vector.load %arg15[%c3_54, %c0_55, %c0_56] : memref<7x64x2xf32, #tpu.memory_space<vmem>>, vector<1x64x2xf32>
    %70 = vector.shape_cast %69 : vector<1x64x2xf32> to vector<64x2xf32>
    %71 = vector.shape_cast %68 : vector<64x2xf32> to vector<1x64x2xf32>
    tpu.vector_store %arg15[%c3_54, %c0_55, %c0_56], %71 {strides = array<i32>} : memref<7x64x2xf32, #tpu.memory_space<vmem>>, vector<1x64x2xf32>,
    %c4 = arith.constant 4 : index
    %c0_57 = arith.constant 0 : index
    %c0_58 = arith.constant 0 : index
    %72 = vector.load %arg1[%c4, %c0_57, %c0_58] : memref<7x28x2xf32, #tpu.memory_space<vmem>>, vector<1x28x2xf32>
    %73 = vector.shape_cast %72 : vector<1x28x2xf32> to vector<28x2xf32>
    %cst_59 = arith.constant dense<0.000000e+00> : vector<8x2xf32>
    %74 = tpu.matmul %0, %73, %cst_59 {dimension_numbers = #tpu.dot_dimension_numbers<[1], [0], [0], [1], [0, 0, 1, 1], [], []>} : vector<8x28xf32>, vector<28x2xf32>, vector<8x2xf32> -> vector<8x2xf32>
    %75 = vector.broadcast %1 : vector<8x1xf32> to vector<8x2xf32>
    %76 = arith.addf %74, %75 : vector<8x2xf32>
    %cst_60 = arith.constant 0.000000e+00 : f32
    %77 = vector.broadcast %cst_60 : f32 to vector<8x2xf32>
    %78 = arith.maximumf %76, %77 : vector<8x2xf32>
    %cst_61 = arith.constant dense<0.000000e+00> : vector<64x2xf32>
    %79 = tpu.matmul %2, %78, %cst_61 {dimension_numbers = #tpu.dot_dimension_numbers<[1], [0], [0], [1], [0, 0, 1, 1], [], []>} : vector<64x8xf32>, vector<8x2xf32>, vector<64x2xf32> -> vector<64x2xf32>
    %80 = vector.broadcast %4 : vector<64x1xf32> to vector<64x2xf32>
    %81 = arith.addf %79, %80 : vector<64x2xf32>
    %c4_62 = arith.constant 4 : index
    %c0_63 = arith.constant 0 : index
    %c0_64 = arith.constant 0 : index
    %82 = vector.load %arg15[%c4_62, %c0_63, %c0_64] : memref<7x64x2xf32, #tpu.memory_space<vmem>>, vector<1x64x2xf32>
    %83 = vector.shape_cast %82 : vector<1x64x2xf32> to vector<64x2xf32>
    %84 = vector.shape_cast %81 : vector<64x2xf32> to vector<1x64x2xf32>
    tpu.vector_store %arg15[%c4_62, %c0_63, %c0_64], %84 {strides = array<i32>} : memref<7x64x2xf32, #tpu.memory_space<vmem>>, vector<1x64x2xf32>,
    %c5 = arith.constant 5 : index
    %c0_65 = arith.constant 0 : index
    %c0_66 = arith.constant 0 : index
    %85 = vector.load %arg1[%c5, %c0_65, %c0_66] : memref<7x28x2xf32, #tpu.memory_space<vmem>>, vector<1x28x2xf32>
    %86 = vector.shape_cast %85 : vector<1x28x2xf32> to vector<28x2xf32>
    %cst_67 = arith.constant dense<0.000000e+00> : vector<8x2xf32>
    %87 = tpu.matmul %0, %86, %cst_67 {dimension_numbers = #tpu.dot_dimension_numbers<[1], [0], [0], [1], [0, 0, 1, 1], [], []>} : vector<8x28xf32>, vector<28x2xf32>, vector<8x2xf32> -> vector<8x2xf32>
    %88 = vector.broadcast %1 : vector<8x1xf32> to vector<8x2xf32>
    %89 = arith.addf %87, %88 : vector<8x2xf32>
    %cst_68 = arith.constant 0.000000e+00 : f32
    %90 = vector.broadcast %cst_68 : f32 to vector<8x2xf32>
    %91 = arith.maximumf %89, %90 : vector<8x2xf32>
    %cst_69 = arith.constant dense<0.000000e+00> : vector<64x2xf32>
    %92 = tpu.matmul %2, %91, %cst_69 {dimension_numbers = #tpu.dot_dimension_numbers<[1], [0], [0], [1], [0, 0, 1, 1], [], []>} : vector<64x8xf32>, vector<8x2xf32>, vector<64x2xf32> -> vector<64x2xf32>
    %93 = vector.broadcast %4 : vector<64x1xf32> to vector<64x2xf32>
    %94 = arith.addf %92, %93 : vector<64x2xf32>
    %c5_70 = arith.constant 5 : index
    %c0_71 = arith.constant 0 : index
    %c0_72 = arith.constant 0 : index
    %95 = vector.load %arg15[%c5_70, %c0_71, %c0_72] : memref<7x64x2xf32, #tpu.memory_space<vmem>>, vector<1x64x2xf32>
    %96 = vector.shape_cast %95 : vector<1x64x2xf32> to vector<64x2xf32>
    %97 = vector.shape_cast %94 : vector<64x2xf32> to vector<1x64x2xf32>
    tpu.vector_store %arg15[%c5_70, %c0_71, %c0_72], %97 {strides = array<i32>} : memref<7x64x2xf32, #tpu.memory_space<vmem>>, vector<1x64x2xf32>,
    %c6 = arith.constant 6 : index
    %c0_73 = arith.constant 0 : index
    %c0_74 = arith.constant 0 : index
    %98 = vector.load %arg1[%c6, %c0_73, %c0_74] : memref<7x28x2xf32, #tpu.memory_space<vmem>>, vector<1x28x2xf32>
    %99 = vector.shape_cast %98 : vector<1x28x2xf32> to vector<28x2xf32>
    %cst_75 = arith.constant dense<0.000000e+00> : vector<8x2xf32>
    %100 = tpu.matmul %0, %99, %cst_75 {dimension_numbers = #tpu.dot_dimension_numbers<[1], [0], [0], [1], [0, 0, 1, 1], [], []>} : vector<8x28xf32>, vector<28x2xf32>, vector<8x2xf32> -> vector<8x2xf32>
    %101 = vector.broadcast %1 : vector<8x1xf32> to vector<8x2xf32>
    %102 = arith.addf %100, %101 : vector<8x2xf32>
    %cst_76 = arith.constant 0.000000e+00 : f32
    %103 = vector.broadcast %cst_76 : f32 to vector<8x2xf32>
    %104 = arith.maximumf %102, %103 : vector<8x2xf32>
    %cst_77 = arith.constant dense<0.000000e+00> : vector<64x2xf32>
    %105 = tpu.matmul %2, %104, %cst_77 {dimension_numbers = #tpu.dot_dimension_numbers<[1], [0], [0], [1], [0, 0, 1, 1], [], []>} : vector<64x8xf32>, vector<8x2xf32>, vector<64x2xf32> -> vector<64x2xf32>
    %106 = vector.broadcast %4 : vector<64x1xf32> to vector<64x2xf32>
    %107 = arith.addf %105, %106 : vector<64x2xf32>
    %c6_78 = arith.constant 6 : index
    %c0_79 = arith.constant 0 : index
    %c0_80 = arith.constant 0 : index
    %108 = vector.load %arg15[%c6_78, %c0_79, %c0_80] : memref<7x64x2xf32, #tpu.memory_space<vmem>>, vector<1x64x2xf32>
    %109 = vector.shape_cast %108 : vector<1x64x2xf32> to vector<64x2xf32>
    %110 = vector.shape_cast %107 : vector<64x2xf32> to vector<1x64x2xf32>
    tpu.vector_store %arg15[%c6_78, %c0_79, %c0_80], %110 {strides = array<i32>} : memref<7x64x2xf32, #tpu.memory_space<vmem>>, vector<1x64x2xf32>,
    %c0_81 = arith.constant 0 : index
    %c0_82 = arith.constant 0 : index
    %c0_83 = arith.constant 0 : index
    %111 = vector.load %arg9[%c0_81, %c0_82, %c0_83] : memref<2x16x2xf32, #tpu.memory_space<vmem>>, vector<1x16x2xf32>
    %112 = vector.shape_cast %111 : vector<1x16x2xf32> to vector<16x2xf32>
    %c1_84 = arith.constant 1 : index
    %c0_85 = arith.constant 0 : index
    %c0_86 = arith.constant 0 : index
    %113 = vector.load %arg9[%c1_84, %c0_85, %c0_86] : memref<2x16x2xf32, #tpu.memory_space<vmem>>, vector<1x16x2xf32>
    %114 = vector.shape_cast %113 : vector<1x16x2xf32> to vector<16x2xf32>
    %cst_87 = arith.constant dense<0.000000e+00> : vector<64x2xf32>
    %115 = tpu.matmul %3, %112, %cst_87 {dimension_numbers = #tpu.dot_dimension_numbers<[1], [0], [0], [1], [0, 0, 1, 1], [], []>} : vector<64x16xf32>, vector<16x2xf32>, vector<64x2xf32> -> vector<64x2xf32>
    %c0_88 = arith.constant 0 : index
    %c0_89 = arith.constant 0 : index
    %c0_90 = arith.constant 0 : index
    %116 = vector.load %arg15[%c0_88, %c0_89, %c0_90] : memref<7x64x2xf32, #tpu.memory_space<vmem>>, vector<1x64x2xf32>
    %117 = vector.shape_cast %116 : vector<1x64x2xf32> to vector<64x2xf32>
    %118 = arith.addf %117, %115 : vector<64x2xf32>
    %119 = math.tanh %118 : vector<64x2xf32>
    %120 = vector.broadcast %16 : vector<64x1xf32> to vector<64x2xf32>
    %121 = arith.mulf %119, %120 : vector<64x2xf32>
    %122 = vector.broadcast %19 : vector<64x1xf32> to vector<64x2xf32>
    %123 = arith.addf %121, %122 : vector<64x2xf32>
    %124 = vector.extract_strided_slice %123 {offsets = [0, 0], sizes = [16, 2], strides = [1, 1]} : vector<64x2xf32> to vector<16x2xf32>
    %125 = vector.extract_strided_slice %123 {offsets = [16, 0], sizes = [16, 2], strides = [1, 1]} : vector<64x2xf32> to vector<16x2xf32>
    %126 = vector.extract_strided_slice %123 {offsets = [32, 0], sizes = [16, 2], strides = [1, 1]} : vector<64x2xf32> to vector<16x2xf32>
    %127 = vector.extract_strided_slice %123 {offsets = [48, 0], sizes = [16, 2], strides = [1, 1]} : vector<64x2xf32> to vector<16x2xf32>
    %128 = arith.mulf %125, %112 : vector<16x2xf32>
    %129 = arith.mulf %124, %127 : vector<16x2xf32>
    %130 = arith.addf %128, %129 : vector<16x2xf32>
    %131 = math.tanh %130 : vector<16x2xf32>
    %132 = arith.mulf %126, %131 : vector<16x2xf32>
    %133 = tpu.concatenate %132, %114 in 0 : vector<16x2xf32>, vector<16x2xf32> -> vector<32x2xf32>
    %cst_91 = arith.constant dense<0.000000e+00> : vector<128x2xf32>
    %134 = tpu.matmul %5, %133, %cst_91 {dimension_numbers = #tpu.dot_dimension_numbers<[1], [0], [0], [1], [0, 0, 1, 1], [], []>} : vector<128x32xf32>, vector<32x2xf32>, vector<128x2xf32> -> vector<128x2xf32>
    %135 = vector.extract_strided_slice %134 {offsets = [0, 0], sizes = [64, 2], strides = [1, 1]} : vector<128x2xf32> to vector<64x2xf32>
    %136 = vector.broadcast %6 : vector<64x1xf32> to vector<64x2xf32>
    %137 = arith.addf %135, %136 : vector<64x2xf32>
    %138 = math.tanh %137 : vector<64x2xf32>
    %139 = vector.broadcast %16 : vector<64x1xf32> to vector<64x2xf32>
    %140 = arith.mulf %138, %139 : vector<64x2xf32>
    %141 = vector.broadcast %19 : vector<64x1xf32> to vector<64x2xf32>
    %142 = arith.addf %140, %141 : vector<64x2xf32>
    %143 = vector.extract_strided_slice %142 {offsets = [0, 0], sizes = [16, 2], strides = [1, 1]} : vector<64x2xf32> to vector<16x2xf32>
    %144 = vector.extract_strided_slice %142 {offsets = [16, 0], sizes = [16, 2], strides = [1, 1]} : vector<64x2xf32> to vector<16x2xf32>
    %145 = vector.extract_strided_slice %142 {offsets = [32, 0], sizes = [16, 2], strides = [1, 1]} : vector<64x2xf32> to vector<16x2xf32>
    %146 = vector.extract_strided_slice %142 {offsets = [48, 0], sizes = [16, 2], strides = [1, 1]} : vector<64x2xf32> to vector<16x2xf32>
    %147 = arith.mulf %144, %114 : vector<16x2xf32>
    %148 = arith.mulf %143, %146 : vector<16x2xf32>
    %149 = arith.addf %147, %148 : vector<16x2xf32>
    %150 = math.tanh %149 : vector<16x2xf32>
    %151 = arith.mulf %145, %150 : vector<16x2xf32>
    %152 = vector.extract_strided_slice %134 {offsets = [64, 0], sizes = [64, 2], strides = [1, 1]} : vector<128x2xf32> to vector<64x2xf32>
    %c1_92 = arith.constant 1 : index
    %c0_93 = arith.constant 0 : index
    %c0_94 = arith.constant 0 : index
    %153 = vector.load %arg15[%c1_92, %c0_93, %c0_94] : memref<7x64x2xf32, #tpu.memory_space<vmem>>, vector<1x64x2xf32>
    %154 = vector.shape_cast %153 : vector<1x64x2xf32> to vector<64x2xf32>
    %155 = arith.addf %154, %152 : vector<64x2xf32>
    %156 = math.tanh %155 : vector<64x2xf32>
    %157 = vector.broadcast %16 : vector<64x1xf32> to vector<64x2xf32>
    %158 = arith.mulf %156, %157 : vector<64x2xf32>
    %159 = vector.broadcast %19 : vector<64x1xf32> to vector<64x2xf32>
    %160 = arith.addf %158, %159 : vector<64x2xf32>
    %161 = vector.extract_strided_slice %160 {offsets = [0, 0], sizes = [16, 2], strides = [1, 1]} : vector<64x2xf32> to vector<16x2xf32>
    %162 = vector.extract_strided_slice %160 {offsets = [16, 0], sizes = [16, 2], strides = [1, 1]} : vector<64x2xf32> to vector<16x2xf32>
    %163 = vector.extract_strided_slice %160 {offsets = [32, 0], sizes = [16, 2], strides = [1, 1]} : vector<64x2xf32> to vector<16x2xf32>
    %164 = vector.extract_strided_slice %160 {offsets = [48, 0], sizes = [16, 2], strides = [1, 1]} : vector<64x2xf32> to vector<16x2xf32>
    %165 = arith.mulf %162, %130 : vector<16x2xf32>
    %166 = arith.mulf %161, %164 : vector<16x2xf32>
    %167 = arith.addf %165, %166 : vector<16x2xf32>
    %168 = math.tanh %167 : vector<16x2xf32>
    %169 = arith.mulf %163, %168 : vector<16x2xf32>
    %170 = tpu.concatenate %169, %151 in 0 : vector<16x2xf32>, vector<16x2xf32> -> vector<32x2xf32>
    %cst_95 = arith.constant dense<0.000000e+00> : vector<128x2xf32>
    %171 = tpu.matmul %5, %170, %cst_95 {dimension_numbers = #tpu.dot_dimension_numbers<[1], [0], [0], [1], [0, 0, 1, 1], [], []>} : vector<128x32xf32>, vector<32x2xf32>, vector<128x2xf32> -> vector<128x2xf32>
    %172 = vector.extract_strided_slice %171 {offsets = [0, 0], sizes = [64, 2], strides = [1, 1]} : vector<128x2xf32> to vector<64x2xf32>
    %173 = vector.broadcast %6 : vector<64x1xf32> to vector<64x2xf32>
    %174 = arith.addf %172, %173 : vector<64x2xf32>
    %175 = math.tanh %174 : vector<64x2xf32>
    %176 = vector.broadcast %16 : vector<64x1xf32> to vector<64x2xf32>
    %177 = arith.mulf %175, %176 : vector<64x2xf32>
    %178 = vector.broadcast %19 : vector<64x1xf32> to vector<64x2xf32>
    %179 = arith.addf %177, %178 : vector<64x2xf32>
    %180 = vector.extract_strided_slice %179 {offsets = [0, 0], sizes = [16, 2], strides = [1, 1]} : vector<64x2xf32> to vector<16x2xf32>
    %181 = vector.extract_strided_slice %179 {offsets = [16, 0], sizes = [16, 2], strides = [1, 1]} : vector<64x2xf32> to vector<16x2xf32>
    %182 = vector.extract_strided_slice %179 {offsets = [32, 0], sizes = [16, 2], strides = [1, 1]} : vector<64x2xf32> to vector<16x2xf32>
    %183 = vector.extract_strided_slice %179 {offsets = [48, 0], sizes = [16, 2], strides = [1, 1]} : vector<64x2xf32> to vector<16x2xf32>
    %184 = arith.mulf %181, %149 : vector<16x2xf32>
    %185 = arith.mulf %180, %183 : vector<16x2xf32>
    %186 = arith.addf %184, %185 : vector<16x2xf32>
    %187 = math.tanh %186 : vector<16x2xf32>
    %188 = arith.mulf %182, %187 : vector<16x2xf32>
    %189 = vector.extract_strided_slice %171 {offsets = [64, 0], sizes = [64, 2], strides = [1, 1]} : vector<128x2xf32> to vector<64x2xf32>
    %c2_96 = arith.constant 2 : index
    %c0_97 = arith.constant 0 : index
    %c0_98 = arith.constant 0 : index
    %190 = vector.load %arg15[%c2_96, %c0_97, %c0_98] : memref<7x64x2xf32, #tpu.memory_space<vmem>>, vector<1x64x2xf32>
    %191 = vector.shape_cast %190 : vector<1x64x2xf32> to vector<64x2xf32>
    %192 = arith.addf %191, %189 : vector<64x2xf32>
    %193 = math.tanh %192 : vector<64x2xf32>
    %194 = vector.broadcast %16 : vector<64x1xf32> to vector<64x2xf32>
    %195 = arith.mulf %193, %194 : vector<64x2xf32>
    %196 = vector.broadcast %19 : vector<64x1xf32> to vector<64x2xf32>
    %197 = arith.addf %195, %196 : vector<64x2xf32>
    %198 = vector.extract_strided_slice %197 {offsets = [0, 0], sizes = [16, 2], strides = [1, 1]} : vector<64x2xf32> to vector<16x2xf32>
    %199 = vector.extract_strided_slice %197 {offsets = [16, 0], sizes = [16, 2], strides = [1, 1]} : vector<64x2xf32> to vector<16x2xf32>
    %200 = vector.extract_strided_slice %197 {offsets = [32, 0], sizes = [16, 2], strides = [1, 1]} : vector<64x2xf32> to vector<16x2xf32>
    %201 = vector.extract_strided_slice %197 {offsets = [48, 0], sizes = [16, 2], strides = [1, 1]} : vector<64x2xf32> to vector<16x2xf32>
    %202 = arith.mulf %199, %167 : vector<16x2xf32>
    %203 = arith.mulf %198, %201 : vector<16x2xf32>
    %204 = arith.addf %202, %203 : vector<16x2xf32>
    %205 = math.tanh %204 : vector<16x2xf32>
    %206 = arith.mulf %200, %205 : vector<16x2xf32>
    %207 = tpu.concatenate %206, %188 in 0 : vector<16x2xf32>, vector<16x2xf32> -> vector<32x2xf32>
    %cst_99 = arith.constant dense<0.000000e+00> : vector<128x2xf32>
    %208 = tpu.matmul %5, %207, %cst_99 {dimension_numbers = #tpu.dot_dimension_numbers<[1], [0], [0], [1], [0, 0, 1, 1], [], []>} : vector<128x32xf32>, vector<32x2xf32>, vector<128x2xf32> -> vector<128x2xf32>
    %209 = vector.extract_strided_slice %208 {offsets = [0, 0], sizes = [64, 2], strides = [1, 1]} : vector<128x2xf32> to vector<64x2xf32>
    %210 = vector.broadcast %6 : vector<64x1xf32> to vector<64x2xf32>
    %211 = arith.addf %209, %210 : vector<64x2xf32>
    %212 = math.tanh %211 : vector<64x2xf32>
    %213 = vector.broadcast %16 : vector<64x1xf32> to vector<64x2xf32>
    %214 = arith.mulf %212, %213 : vector<64x2xf32>
    %215 = vector.broadcast %19 : vector<64x1xf32> to vector<64x2xf32>
    %216 = arith.addf %214, %215 : vector<64x2xf32>
    %217 = vector.extract_strided_slice %216 {offsets = [0, 0], sizes = [16, 2], strides = [1, 1]} : vector<64x2xf32> to vector<16x2xf32>
    %218 = vector.extract_strided_slice %216 {offsets = [16, 0], sizes = [16, 2], strides = [1, 1]} : vector<64x2xf32> to vector<16x2xf32>
    %219 = vector.extract_strided_slice %216 {offsets = [32, 0], sizes = [16, 2], strides = [1, 1]} : vector<64x2xf32> to vector<16x2xf32>
    %220 = vector.extract_strided_slice %216 {offsets = [48, 0], sizes = [16, 2], strides = [1, 1]} : vector<64x2xf32> to vector<16x2xf32>
    %221 = arith.mulf %218, %186 : vector<16x2xf32>
    %222 = arith.mulf %217, %220 : vector<16x2xf32>
    %223 = arith.addf %221, %222 : vector<16x2xf32>
    %224 = math.tanh %223 : vector<16x2xf32>
    %225 = arith.mulf %219, %224 : vector<16x2xf32>
    %226 = vector.extract_strided_slice %208 {offsets = [64, 0], sizes = [64, 2], strides = [1, 1]} : vector<128x2xf32> to vector<64x2xf32>
    %c3_100 = arith.constant 3 : index
    %c0_101 = arith.constant 0 : index
    %c0_102 = arith.constant 0 : index
    %227 = vector.load %arg15[%c3_100, %c0_101, %c0_102] : memref<7x64x2xf32, #tpu.memory_space<vmem>>, vector<1x64x2xf32>
    %228 = vector.shape_cast %227 : vector<1x64x2xf32> to vector<64x2xf32>
    %229 = arith.addf %228, %226 : vector<64x2xf32>
    %230 = math.tanh %229 : vector<64x2xf32>
    %231 = vector.broadcast %16 : vector<64x1xf32> to vector<64x2xf32>
    %232 = arith.mulf %230, %231 : vector<64x2xf32>
    %233 = vector.broadcast %19 : vector<64x1xf32> to vector<64x2xf32>
    %234 = arith.addf %232, %233 : vector<64x2xf32>
    %235 = vector.extract_strided_slice %234 {offsets = [0, 0], sizes = [16, 2], strides = [1, 1]} : vector<64x2xf32> to vector<16x2xf32>
    %236 = vector.extract_strided_slice %234 {offsets = [16, 0], sizes = [16, 2], strides = [1, 1]} : vector<64x2xf32> to vector<16x2xf32>
    %237 = vector.extract_strided_slice %234 {offsets = [32, 0], sizes = [16, 2], strides = [1, 1]} : vector<64x2xf32> to vector<16x2xf32>
    %238 = vector.extract_strided_slice %234 {offsets = [48, 0], sizes = [16, 2], strides = [1, 1]} : vector<64x2xf32> to vector<16x2xf32>
    %239 = arith.mulf %236, %204 : vector<16x2xf32>
    %240 = arith.mulf %235, %238 : vector<16x2xf32>
    %241 = arith.addf %239, %240 : vector<16x2xf32>
    %242 = math.tanh %241 : vector<16x2xf32>
    %243 = arith.mulf %237, %242 : vector<16x2xf32>
    %244 = tpu.concatenate %243, %225 in 0 : vector<16x2xf32>, vector<16x2xf32> -> vector<32x2xf32>
    %cst_103 = arith.constant dense<0.000000e+00> : vector<128x2xf32>
    %245 = tpu.matmul %5, %244, %cst_103 {dimension_numbers = #tpu.dot_dimension_numbers<[1], [0], [0], [1], [0, 0, 1, 1], [], []>} : vector<128x32xf32>, vector<32x2xf32>, vector<128x2xf32> -> vector<128x2xf32>
    %246 = vector.extract_strided_slice %245 {offsets = [0, 0], sizes = [64, 2], strides = [1, 1]} : vector<128x2xf32> to vector<64x2xf32>
    %247 = vector.broadcast %6 : vector<64x1xf32> to vector<64x2xf32>
    %248 = arith.addf %246, %247 : vector<64x2xf32>
    %249 = math.tanh %248 : vector<64x2xf32>
    %250 = vector.broadcast %16 : vector<64x1xf32> to vector<64x2xf32>
    %251 = arith.mulf %249, %250 : vector<64x2xf32>
    %252 = vector.broadcast %19 : vector<64x1xf32> to vector<64x2xf32>
    %253 = arith.addf %251, %252 : vector<64x2xf32>
    %254 = vector.extract_strided_slice %253 {offsets = [0, 0], sizes = [16, 2], strides = [1, 1]} : vector<64x2xf32> to vector<16x2xf32>
    %255 = vector.extract_strided_slice %253 {offsets = [16, 0], sizes = [16, 2], strides = [1, 1]} : vector<64x2xf32> to vector<16x2xf32>
    %256 = vector.extract_strided_slice %253 {offsets = [32, 0], sizes = [16, 2], strides = [1, 1]} : vector<64x2xf32> to vector<16x2xf32>
    %257 = vector.extract_strided_slice %253 {offsets = [48, 0], sizes = [16, 2], strides = [1, 1]} : vector<64x2xf32> to vector<16x2xf32>
    %258 = arith.mulf %255, %223 : vector<16x2xf32>
    %259 = arith.mulf %254, %257 : vector<16x2xf32>
    %260 = arith.addf %258, %259 : vector<16x2xf32>
    %261 = math.tanh %260 : vector<16x2xf32>
    %262 = arith.mulf %256, %261 : vector<16x2xf32>
    %263 = vector.extract_strided_slice %245 {offsets = [64, 0], sizes = [64, 2], strides = [1, 1]} : vector<128x2xf32> to vector<64x2xf32>
    %c4_104 = arith.constant 4 : index
    %c0_105 = arith.constant 0 : index
    %c0_106 = arith.constant 0 : index
    %264 = vector.load %arg15[%c4_104, %c0_105, %c0_106] : memref<7x64x2xf32, #tpu.memory_space<vmem>>, vector<1x64x2xf32>
    %265 = vector.shape_cast %264 : vector<1x64x2xf32> to vector<64x2xf32>
    %266 = arith.addf %265, %263 : vector<64x2xf32>
    %267 = math.tanh %266 : vector<64x2xf32>
    %268 = vector.broadcast %16 : vector<64x1xf32> to vector<64x2xf32>
    %269 = arith.mulf %267, %268 : vector<64x2xf32>
    %270 = vector.broadcast %19 : vector<64x1xf32> to vector<64x2xf32>
    %271 = arith.addf %269, %270 : vector<64x2xf32>
    %272 = vector.extract_strided_slice %271 {offsets = [0, 0], sizes = [16, 2], strides = [1, 1]} : vector<64x2xf32> to vector<16x2xf32>
    %273 = vector.extract_strided_slice %271 {offsets = [16, 0], sizes = [16, 2], strides = [1, 1]} : vector<64x2xf32> to vector<16x2xf32>
    %274 = vector.extract_strided_slice %271 {offsets = [32, 0], sizes = [16, 2], strides = [1, 1]} : vector<64x2xf32> to vector<16x2xf32>
    %275 = vector.extract_strided_slice %271 {offsets = [48, 0], sizes = [16, 2], strides = [1, 1]} : vector<64x2xf32> to vector<16x2xf32>
    %276 = arith.mulf %273, %241 : vector<16x2xf32>
    %277 = arith.mulf %272, %275 : vector<16x2xf32>
    %278 = arith.addf %276, %277 : vector<16x2xf32>
    %279 = math.tanh %278 : vector<16x2xf32>
    %280 = arith.mulf %274, %279 : vector<16x2xf32>
    %281 = tpu.concatenate %280, %262 in 0 : vector<16x2xf32>, vector<16x2xf32> -> vector<32x2xf32>
    %cst_107 = arith.constant dense<0.000000e+00> : vector<128x2xf32>
    %282 = tpu.matmul %5, %281, %cst_107 {dimension_numbers = #tpu.dot_dimension_numbers<[1], [0], [0], [1], [0, 0, 1, 1], [], []>} : vector<128x32xf32>, vector<32x2xf32>, vector<128x2xf32> -> vector<128x2xf32>
    %283 = vector.extract_strided_slice %282 {offsets = [0, 0], sizes = [64, 2], strides = [1, 1]} : vector<128x2xf32> to vector<64x2xf32>
    %284 = vector.broadcast %6 : vector<64x1xf32> to vector<64x2xf32>
    %285 = arith.addf %283, %284 : vector<64x2xf32>
    %286 = math.tanh %285 : vector<64x2xf32>
    %287 = vector.broadcast %16 : vector<64x1xf32> to vector<64x2xf32>
    %288 = arith.mulf %286, %287 : vector<64x2xf32>
    %289 = vector.broadcast %19 : vector<64x1xf32> to vector<64x2xf32>
    %290 = arith.addf %288, %289 : vector<64x2xf32>
    %291 = vector.extract_strided_slice %290 {offsets = [0, 0], sizes = [16, 2], strides = [1, 1]} : vector<64x2xf32> to vector<16x2xf32>
    %292 = vector.extract_strided_slice %290 {offsets = [16, 0], sizes = [16, 2], strides = [1, 1]} : vector<64x2xf32> to vector<16x2xf32>
    %293 = vector.extract_strided_slice %290 {offsets = [32, 0], sizes = [16, 2], strides = [1, 1]} : vector<64x2xf32> to vector<16x2xf32>
    %294 = vector.extract_strided_slice %290 {offsets = [48, 0], sizes = [16, 2], strides = [1, 1]} : vector<64x2xf32> to vector<16x2xf32>
    %295 = arith.mulf %292, %260 : vector<16x2xf32>
    %296 = arith.mulf %291, %294 : vector<16x2xf32>
    %297 = arith.addf %295, %296 : vector<16x2xf32>
    %298 = math.tanh %297 : vector<16x2xf32>
    %299 = arith.mulf %293, %298 : vector<16x2xf32>
    %300 = vector.extract_strided_slice %282 {offsets = [64, 0], sizes = [64, 2], strides = [1, 1]} : vector<128x2xf32> to vector<64x2xf32>
    %c5_108 = arith.constant 5 : index
    %c0_109 = arith.constant 0 : index
    %c0_110 = arith.constant 0 : index
    %301 = vector.load %arg15[%c5_108, %c0_109, %c0_110] : memref<7x64x2xf32, #tpu.memory_space<vmem>>, vector<1x64x2xf32>
    %302 = vector.shape_cast %301 : vector<1x64x2xf32> to vector<64x2xf32>
    %303 = arith.addf %302, %300 : vector<64x2xf32>
    %304 = math.tanh %303 : vector<64x2xf32>
    %305 = vector.broadcast %16 : vector<64x1xf32> to vector<64x2xf32>
    %306 = arith.mulf %304, %305 : vector<64x2xf32>
    %307 = vector.broadcast %19 : vector<64x1xf32> to vector<64x2xf32>
    %308 = arith.addf %306, %307 : vector<64x2xf32>
    %309 = vector.extract_strided_slice %308 {offsets = [0, 0], sizes = [16, 2], strides = [1, 1]} : vector<64x2xf32> to vector<16x2xf32>
    %310 = vector.extract_strided_slice %308 {offsets = [16, 0], sizes = [16, 2], strides = [1, 1]} : vector<64x2xf32> to vector<16x2xf32>
    %311 = vector.extract_strided_slice %308 {offsets = [32, 0], sizes = [16, 2], strides = [1, 1]} : vector<64x2xf32> to vector<16x2xf32>
    %312 = vector.extract_strided_slice %308 {offsets = [48, 0], sizes = [16, 2], strides = [1, 1]} : vector<64x2xf32> to vector<16x2xf32>
    %313 = arith.mulf %310, %278 : vector<16x2xf32>
    %314 = arith.mulf %309, %312 : vector<16x2xf32>
    %315 = arith.addf %313, %314 : vector<16x2xf32>
    %316 = math.tanh %315 : vector<16x2xf32>
    %317 = arith.mulf %311, %316 : vector<16x2xf32>
    %318 = tpu.concatenate %317, %299 in 0 : vector<16x2xf32>, vector<16x2xf32> -> vector<32x2xf32>
    %cst_111 = arith.constant dense<0.000000e+00> : vector<128x2xf32>
    %319 = tpu.matmul %5, %318, %cst_111 {dimension_numbers = #tpu.dot_dimension_numbers<[1], [0], [0], [1], [0, 0, 1, 1], [], []>} : vector<128x32xf32>, vector<32x2xf32>, vector<128x2xf32> -> vector<128x2xf32>
    %320 = vector.extract_strided_slice %319 {offsets = [0, 0], sizes = [64, 2], strides = [1, 1]} : vector<128x2xf32> to vector<64x2xf32>
    %321 = vector.broadcast %6 : vector<64x1xf32> to vector<64x2xf32>
    %322 = arith.addf %320, %321 : vector<64x2xf32>
    %323 = math.tanh %322 : vector<64x2xf32>
    %324 = vector.broadcast %16 : vector<64x1xf32> to vector<64x2xf32>
    %325 = arith.mulf %323, %324 : vector<64x2xf32>
    %326 = vector.broadcast %19 : vector<64x1xf32> to vector<64x2xf32>
    %327 = arith.addf %325, %326 : vector<64x2xf32>
    %328 = vector.extract_strided_slice %327 {offsets = [0, 0], sizes = [16, 2], strides = [1, 1]} : vector<64x2xf32> to vector<16x2xf32>
    %329 = vector.extract_strided_slice %327 {offsets = [16, 0], sizes = [16, 2], strides = [1, 1]} : vector<64x2xf32> to vector<16x2xf32>
    %330 = vector.extract_strided_slice %327 {offsets = [32, 0], sizes = [16, 2], strides = [1, 1]} : vector<64x2xf32> to vector<16x2xf32>
    %331 = vector.extract_strided_slice %327 {offsets = [48, 0], sizes = [16, 2], strides = [1, 1]} : vector<64x2xf32> to vector<16x2xf32>
    %332 = arith.mulf %329, %297 : vector<16x2xf32>
    %333 = arith.mulf %328, %331 : vector<16x2xf32>
    %334 = arith.addf %332, %333 : vector<16x2xf32>
    %335 = math.tanh %334 : vector<16x2xf32>
    %336 = arith.mulf %330, %335 : vector<16x2xf32>
    %337 = vector.extract_strided_slice %319 {offsets = [64, 0], sizes = [64, 2], strides = [1, 1]} : vector<128x2xf32> to vector<64x2xf32>
    %c6_112 = arith.constant 6 : index
    %c0_113 = arith.constant 0 : index
    %c0_114 = arith.constant 0 : index
    %338 = vector.load %arg15[%c6_112, %c0_113, %c0_114] : memref<7x64x2xf32, #tpu.memory_space<vmem>>, vector<1x64x2xf32>
    %339 = vector.shape_cast %338 : vector<1x64x2xf32> to vector<64x2xf32>
    %340 = arith.addf %339, %337 : vector<64x2xf32>
    %341 = math.tanh %340 : vector<64x2xf32>
    %342 = vector.broadcast %16 : vector<64x1xf32> to vector<64x2xf32>
    %343 = arith.mulf %341, %342 : vector<64x2xf32>
    %344 = vector.broadcast %19 : vector<64x1xf32> to vector<64x2xf32>
    %345 = arith.addf %343, %344 : vector<64x2xf32>
    %346 = vector.extract_strided_slice %345 {offsets = [0, 0], sizes = [16, 2], strides = [1, 1]} : vector<64x2xf32> to vector<16x2xf32>
    %347 = vector.extract_strided_slice %345 {offsets = [16, 0], sizes = [16, 2], strides = [1, 1]} : vector<64x2xf32> to vector<16x2xf32>
    %348 = vector.extract_strided_slice %345 {offsets = [32, 0], sizes = [16, 2], strides = [1, 1]} : vector<64x2xf32> to vector<16x2xf32>
    %349 = vector.extract_strided_slice %345 {offsets = [48, 0], sizes = [16, 2], strides = [1, 1]} : vector<64x2xf32> to vector<16x2xf32>
    %350 = arith.mulf %347, %315 : vector<16x2xf32>
    %351 = arith.mulf %346, %349 : vector<16x2xf32>
    %352 = arith.addf %350, %351 : vector<16x2xf32>
    %353 = math.tanh %352 : vector<16x2xf32>
    %354 = arith.mulf %348, %353 : vector<16x2xf32>
    %355 = tpu.concatenate %354, %336 in 0 : vector<16x2xf32>, vector<16x2xf32> -> vector<32x2xf32>
    %cst_115 = arith.constant dense<0.000000e+00> : vector<128x2xf32>
    %356 = tpu.matmul %5, %355, %cst_115 {dimension_numbers = #tpu.dot_dimension_numbers<[1], [0], [0], [1], [0, 0, 1, 1], [], []>} : vector<128x32xf32>, vector<32x2xf32>, vector<128x2xf32> -> vector<128x2xf32>
    %357 = vector.extract_strided_slice %356 {offsets = [0, 0], sizes = [64, 2], strides = [1, 1]} : vector<128x2xf32> to vector<64x2xf32>
    %358 = vector.broadcast %6 : vector<64x1xf32> to vector<64x2xf32>
    %359 = arith.addf %357, %358 : vector<64x2xf32>
    %360 = math.tanh %359 : vector<64x2xf32>
    %361 = vector.broadcast %16 : vector<64x1xf32> to vector<64x2xf32>
    %362 = arith.mulf %360, %361 : vector<64x2xf32>
    %363 = vector.broadcast %19 : vector<64x1xf32> to vector<64x2xf32>
    %364 = arith.addf %362, %363 : vector<64x2xf32>
    %365 = vector.extract_strided_slice %364 {offsets = [0, 0], sizes = [16, 2], strides = [1, 1]} : vector<64x2xf32> to vector<16x2xf32>
    %366 = vector.extract_strided_slice %364 {offsets = [16, 0], sizes = [16, 2], strides = [1, 1]} : vector<64x2xf32> to vector<16x2xf32>
    %367 = vector.extract_strided_slice %364 {offsets = [32, 0], sizes = [16, 2], strides = [1, 1]} : vector<64x2xf32> to vector<16x2xf32>
    %368 = vector.extract_strided_slice %364 {offsets = [48, 0], sizes = [16, 2], strides = [1, 1]} : vector<64x2xf32> to vector<16x2xf32>
    %369 = arith.mulf %366, %334 : vector<16x2xf32>
    %370 = arith.mulf %365, %368 : vector<16x2xf32>
    %371 = arith.addf %369, %370 : vector<16x2xf32>
    %372 = math.tanh %371 : vector<16x2xf32>
    %373 = arith.mulf %367, %372 : vector<16x2xf32>
    %cst_116 = arith.constant dense<0.000000e+00> : vector<6x2xf32>
    %374 = tpu.matmul %7, %373, %cst_116 {dimension_numbers = #tpu.dot_dimension_numbers<[1], [0], [0], [1], [0, 0, 1, 1], [], []>} : vector<6x16xf32>, vector<16x2xf32>, vector<6x2xf32> -> vector<6x2xf32>
    %375 = vector.broadcast %8 : vector<6x1xf32> to vector<6x2xf32>
    %376 = arith.addf %374, %375 : vector<6x2xf32>
    %cst_117 = arith.constant 0.000000e+00 : f32
    %377 = vector.broadcast %cst_117 : f32 to vector<6x2xf32>
    %378 = arith.maximumf %376, %377 : vector<6x2xf32>
    %cst_118 = arith.constant dense<0.000000e+00> : vector<1x2xf32>
    %379 = tpu.matmul %9, %378, %cst_118 {dimension_numbers = #tpu.dot_dimension_numbers<[1], [0], [0], [1], [0, 0, 1, 1], [], []>} : vector<1x6xf32>, vector<6x2xf32>, vector<1x2xf32> -> vector<1x2xf32>
    %380 = vector.broadcast %10 : vector<1x1xf32> to vector<1x2xf32>
    %381 = arith.addf %379, %380 : vector<1x2xf32>
    %c0_119 = arith.constant 0 : index
    %c0_120 = arith.constant 0 : index
    %382 = vector.load %arg14[%c0_119, %c0_120] : memref<1x2xf32, #tpu.memory_space<vmem>>, vector<1x2xf32>
    tpu.vector_store %arg14[%c0_119, %c0_120], %381 {strides = array<i32>} : memref<1x2xf32, #tpu.memory_space<vmem>>, vector<1x2xf32>,
    return
  }
  func.func @transform_0(%arg0: i32) -> (i32, i32, i32) {
    %c0_i32 = arith.constant 0 : i32
    %c0_i32_0 = arith.constant 0 : i32
    %c0_i32_1 = arith.constant 0 : i32
    return %c0_i32, %c0_i32_0, %arg0 : i32, i32, i32
  }
  func.func @transform_1(%arg0: i32) -> (i32, i32) {
    %c0_i32 = arith.constant 0 : i32
    %c0_i32_0 = arith.constant 0 : i32
    %c0_i32_1 = arith.constant 0 : i32
    return %c0_i32, %c0_i32_0 : i32, i32
  }
  func.func @transform_2(%arg0: i32) -> (i32, i32) {
    %c0_i32 = arith.constant 0 : i32
    %c0_i32_0 = arith.constant 0 : i32
    %c0_i32_1 = arith.constant 0 : i32
    return %c0_i32, %c0_i32_0 : i32, i32
  }
  func.func @transform_3(%arg0: i32) -> (i32, i32) {
    %c0_i32 = arith.constant 0 : i32
    %c0_i32_0 = arith.constant 0 : i32
    %c0_i32_1 = arith.constant 0 : i32
    return %c0_i32, %c0_i32_0 : i32, i32
  }
  func.func @transform_4(%arg0: i32) -> (i32, i32) {
    %c0_i32 = arith.constant 0 : i32
    %c0_i32_0 = arith.constant 0 : i32
    %c0_i32_1 = arith.constant 0 : i32
    return %c0_i32, %c0_i32_0 : i32, i32
  }
  func.func @transform_5(%arg0: i32) -> (i32, i32) {
    %c0_i32 = arith.constant 0 : i32
    %c0_i32_0 = arith.constant 0 : i32
    %c0_i32_1 = arith.constant 0 : i32
    return %c0_i32, %c0_i32_0 : i32, i32
  }
  func.func @transform_6(%arg0: i32) -> (i32, i32) {
    %c0_i32 = arith.constant 0 : i32
    %c0_i32_0 = arith.constant 0 : i32
    %c0_i32_1 = arith.constant 0 : i32
    return %c0_i32, %c0_i32_0 : i32, i32
  }
  func.func @transform_7(%arg0: i32) -> (i32, i32) {
    %c0_i32 = arith.constant 0 : i32
    %c0_i32_0 = arith.constant 0 : i32
    %c0_i32_1 = arith.constant 0 : i32
    return %c0_i32, %c0_i32_0 : i32, i32
  }
  func.func @transform_8(%arg0: i32) -> (i32, i32, i32) {
    %c0_i32 = arith.constant 0 : i32
    %c0_i32_0 = arith.constant 0 : i32
    %c0_i32_1 = arith.constant 0 : i32
    return %c0_i32, %c0_i32_0, %arg0 : i32, i32, i32
  }
  func.func @transform_9(%arg0: i32) -> (i32, i32) {
    %c0_i32 = arith.constant 0 : i32
    %c0_i32_0 = arith.constant 0 : i32
    %c0_i32_1 = arith.constant 0 : i32
    return %c0_i32, %c0_i32_0 : i32, i32
  }
  func.func @transform_10(%arg0: i32) -> (i32, i32) {
    %c0_i32 = arith.constant 0 : i32
    %c0_i32_0 = arith.constant 0 : i32
    %c0_i32_1 = arith.constant 0 : i32
    return %c0_i32, %c0_i32_0 : i32, i32
  }
  func.func @transform_11(%arg0: i32) -> (i32, i32) {
    %c0_i32 = arith.constant 0 : i32
    %c0_i32_0 = arith.constant 0 : i32
    %c0_i32_1 = arith.constant 0 : i32
    return %c0_i32, %c0_i32_0 : i32, i32
  }
  func.func @transform_12(%arg0: i32) -> (i32, i32) {
    %c0_i32 = arith.constant 0 : i32
    %c0_i32_0 = arith.constant 0 : i32
    %c0_i32_1 = arith.constant 0 : i32
    return %c0_i32, %c0_i32_0 : i32, i32
  }
  func.func @transform_13(%arg0: i32) -> (i32, i32) {
    %c0_i32 = arith.constant 0 : i32
    %c0_i32_0 = arith.constant 0 : i32
    return %c0_i32, %arg0 : i32, i32
  }
}

</mosaic_0001>

<llo_original>
// kernel: tpu_custom_call.1
$region0: #{tpu_custom_call.1}
  #allocation0 [shape = 'u32[]', space=smem, size = 0x4, offset = 0x4, fixed_abs, tag = 'smem constant byte address 0x4 - core index']
  #allocation1 [shape = 'u32[144,128]{1,0:T(1,128)}', space=vmem, size = 0x12000, scoped, tag = 'internal scratch']
  #allocation2 [shape = 'f32[7,64,2]{2,1,0:T(8,128)}', space=vmem, size = 0x38000, scoped, tag = 'scratch operand']
  #allocation3 [shape = 'f32[1,1]{1,0:T(1,128)S(1)}', space=vmem, size = 0x200, scoped, tag = 'scoped memory for tpu_custom_call.1']
  %s0 = inlined_call_operand.vmem [shape: f32[7,28,2], index: 0, kind: input, shape index: {}]
  %s1 = inlined_call_operand.vmem [shape: f32[8,28], index: 1, kind: input, shape index: {}]
  %s2 = inlined_call_operand.vmem [shape: f32[8,1], index: 2, kind: input, shape index: {}]
  %s3 = inlined_call_operand.vmem [shape: f32[64,8], index: 3, kind: input, shape index: {}]
  %s4 = inlined_call_operand.vmem [shape: f32[64,16], index: 4, kind: input, shape index: {}]
  %s5 = inlined_call_operand.vmem [shape: f32[64,1], index: 5, kind: input, shape index: {}]
  %s6 = inlined_call_operand.vmem [shape: f32[128,32], index: 6, kind: input, shape index: {}]
  %s7 = inlined_call_operand.vmem [shape: f32[64,1], index: 7, kind: input, shape index: {}]
  %s8 = inlined_call_operand.vmem [shape: f32[2,16,2], index: 8, kind: input, shape index: {}]
  %s9 = inlined_call_operand.vmem [shape: f32[6,16], index: 9, kind: input, shape index: {}]
  %s10 = inlined_call_operand.vmem [shape: f32[6,1], index: 10, kind: input, shape index: {}]
  %s11 = inlined_call_operand.vmem [shape: f32[1,6], index: 11, kind: input, shape index: {}]
  %s12 = inlined_call_operand.<no memory space> [shape: f32[1,1], index: 12, kind: input, shape index: {}]
  %s13 = inlined_call_operand.hbm [shape: f32[1,2], index: 13, kind: output, shape index: {}]
  %s14 = sld [smem:[#allocation0]]
  $region62: #{tpu_custom_call.1} parent=0
    _
  %s16 = ssub.s32 1, %s14
  %s17 = scalar_select 0, %s16, %s14
  %v18 = vstv %s12
  %19 = vst [vmem:[#allocation3] sm:$0x1] %v18
  $region1: #{tpu_custom_call.1} parent=0
    #allocation4 [shape = 'u8[512]{0}', space=vmem, size = 0x400, scoped, tag = 'output window, operand 0, single buffered']
    #allocation5 [shape = 's32[1]{0}', space=sflag, size = 0x4, scoped, tag = 'scoped memory for tpu_custom_call.1']
    %20 = vsyncpa [#allocation5], 0
    // Predicated region
    $region2: #{tpu_custom_call.1} parent=1 // pred_check
      _
    $region3: #{tpu_custom_call.1} parent=1 // pred_check_branch
      %22 = sbr.rel (0) target = $region5
    $region4: #{tpu_custom_call.1} parent=1 // pred_region
      _
    $region5: #{tpu_custom_call.1} parent=1 // pred_fallthru
      _
    // Predicated region
    $region6: #{tpu_custom_call.1} parent=1 // pred_check
      _
    $region7: #{tpu_custom_call.1} parent=1 // pred_check_branch
      %24 = sbr.rel (0) target = $region9
    $region8: #{tpu_custom_call.1} parent=1 // pred_region
      _
    $region9: #{tpu_custom_call.1} parent=1 // pred_fallthru
      _
    // Predicated region
    $region10: #{tpu_custom_call.1} parent=1 // pred_check
      _
    $region11: #{tpu_custom_call.1} parent=1 // pred_check_branch
      %26 = sbr.rel (0) target = $region13
    $region12: #{tpu_custom_call.1} parent=1 // pred_region
      _
    $region13: #{tpu_custom_call.1} parent=1 // pred_fallthru
      _
    // Predicated region
    $region14: #{tpu_custom_call.1} parent=1 // pred_check
      _
    $region15: #{tpu_custom_call.1} parent=1 // pred_check_branch
      %28 = sbr.rel (0) target = $region17
    $region16: #{tpu_custom_call.1} parent=1 // pred_region
      _
    $region17: #{tpu_custom_call.1} parent=1 // pred_fallthru
      _
    // Predicated region
    $region18: #{tpu_custom_call.1} parent=1 // pred_check
      _
    $region19: #{tpu_custom_call.1} parent=1 // pred_check_branch
      %30 = sbr.rel (0) target = $region21
    $region20: #{tpu_custom_call.1} parent=1 // pred_region
      _
    $region21: #{tpu_custom_call.1} parent=1 // pred_fallthru
      _
    // Predicated region
    $region22: #{tpu_custom_call.1} parent=1 // pred_check
      _
    $region23: #{tpu_custom_call.1} parent=1 // pred_check_branch
      %32 = sbr.rel (0) target = $region25
    $region24: #{tpu_custom_call.1} parent=1 // pred_region
      _
    $region25: #{tpu_custom_call.1} parent=1 // pred_fallthru
      _
    // Predicated region
    $region26: #{tpu_custom_call.1} parent=1 // pred_check
      _
    $region27: #{tpu_custom_call.1} parent=1 // pred_check_branch
      %34 = sbr.rel (0) target = $region29
    $region28: #{tpu_custom_call.1} parent=1 // pred_region
      _
    $region29: #{tpu_custom_call.1} parent=1 // pred_fallthru
      _
    // Predicated region
    $region30: #{tpu_custom_call.1} parent=1 // pred_check
      _
    $region31: #{tpu_custom_call.1} parent=1 // pred_check_branch
      %36 = sbr.rel (0) target = $region33
    $region32: #{tpu_custom_call.1} parent=1 // pred_region
      _
    $region33: #{tpu_custom_call.1} parent=1 // pred_fallthru
      _
    // Predicated region
    $region34: #{tpu_custom_call.1} parent=1 // pred_check
      _
    $region35: #{tpu_custom_call.1} parent=1 // pred_check_branch
      %38 = sbr.rel (0) target = $region37
    $region36: #{tpu_custom_call.1} parent=1 // pred_region
      _
    $region37: #{tpu_custom_call.1} parent=1 // pred_fallthru
      _
    // Predicated region
    $region38: #{tpu_custom_call.1} parent=1 // pred_check
      _
    $region39: #{tpu_custom_call.1} parent=1 // pred_check_branch
      %40 = sbr.rel (0) target = $region41
    $region40: #{tpu_custom_call.1} parent=1 // pred_region
      _
    $region41: #{tpu_custom_call.1} parent=1 // pred_fallthru
      _
    // Predicated region
    $region42: #{tpu_custom_call.1} parent=1 // pred_check
      _
    $region43: #{tpu_custom_call.1} parent=1 // pred_check_branch
      %42 = sbr.rel (0) target = $region45
    $region44: #{tpu_custom_call.1} parent=1 // pred_region
      _
    $region45: #{tpu_custom_call.1} parent=1 // pred_fallthru
      _
    // Predicated region
    $region46: #{tpu_custom_call.1} parent=1 // pred_check
      _
    $region47: #{tpu_custom_call.1} parent=1 // pred_check_branch
      %44 = sbr.rel (0) target = $region49
    $region48: #{tpu_custom_call.1} parent=1 // pred_region
      _
    $region49: #{tpu_custom_call.1} parent=1 // pred_fallthru
      _
    // Predicated region
    $region50: #{tpu_custom_call.1} parent=1 // pred_check
      _
    $region51: #{tpu_custom_call.1} parent=1 // pred_check_branch
      %46 = sbr.rel (0) target = $region53
    $region52: #{tpu_custom_call.1} parent=1 // pred_region
      _
    $region53: #{tpu_custom_call.1} parent=1 // pred_fallthru
      _
    %v47 = vld [vmem:[%s1] sm:$0xff]
    %v48 = vld [vmem:[%s2] sm:$0xff]
    %v49 = vld [vmem:[%s3] sm:$0xff]
    %v50 = vld [vmem:[%s3 + $0x8] sm:$0xff]
    %v51 = vld [vmem:[%s3 + $0x10] sm:$0xff]
    %v52 = vld [vmem:[%s3 + $0x18] sm:$0xff]
    %v53 = vld [vmem:[%s3 + $0x20] sm:$0xff]
    %v54 = vld [vmem:[%s3 + $0x28] sm:$0xff]
    %v55 = vld [vmem:[%s3 + $0x30] sm:$0xff]
    %v56 = vld [vmem:[%s3 + $0x38] sm:$0xff]
    %v57 = vld [vmem:[%s4] sm:$0xff]
    %v58 = vld [vmem:[%s4 + $0x8] sm:$0xff]
    %v59 = vld [vmem:[%s4 + $0x10] sm:$0xff]
    %v60 = vld [vmem:[%s4 + $0x18] sm:$0xff]
    %v61 = vld [vmem:[%s4 + $0x20] sm:$0xff]
    %v62 = vld [vmem:[%s4 + $0x28] sm:$0xff]
    %v63 = vld [vmem:[%s4 + $0x30] sm:$0xff]
    %v64 = vld [vmem:[%s4 + $0x38] sm:$0xff]
    %v65 = vld [vmem:[%s5] sm:$0xff]
    %v66 = vld [vmem:[%s5 + $0x8] sm:$0xff]
    %v67 = vld [vmem:[%s5 + $0x10] sm:$0xff]
    %v68 = vld [vmem:[%s5 + $0x18] sm:$0xff]
    %v69 = vld [vmem:[%s5 + $0x20] sm:$0xff]
    %v70 = vld [vmem:[%s5 + $0x28] sm:$0xff]
    %v71 = vld [vmem:[%s5 + $0x30] sm:$0xff]
    %v72 = vld [vmem:[%s5 + $0x38] sm:$0xff]
    %v73 = vld [vmem:[%s6] sm:$0xff]
    %v74 = vld [vmem:[%s6 + $0x8] sm:$0xff]
    %v75 = vld [vmem:[%s6 + $0x10] sm:$0xff]
    %v76 = vld [vmem:[%s6 + $0x18] sm:$0xff]
    %v77 = vld [vmem:[%s6 + $0x20] sm:$0xff]
    %v78 = vld [vmem:[%s6 + $0x28] sm:$0xff]
    %v79 = vld [vmem:[%s6 + $0x30] sm:$0xff]
    %v80 = vld [vmem:[%s6 + $0x38] sm:$0xff]
    %v81 = vld [vmem:[%s6 + $0x40] sm:$0xff]
    %v82 = vld [vmem:[%s6 + $0x48] sm:$0xff]
    %v83 = vld [vmem:[%s6 + $0x50] sm:$0xff]
    %v84 = vld [vmem:[%s6 + $0x58] sm:$0xff]
    %v85 = vld [vmem:[%s6 + $0x60] sm:$0xff]
    %v86 = vld [vmem:[%s6 + $0x68] sm:$0xff]
    %v87 = vld [vmem:[%s6 + $0x70] sm:$0xff]
    %v88 = vld [vmem:[%s6 + $0x78] sm:$0xff]
    %v89 = vld [vmem:[%s7] sm:$0xff]
    %v90 = vld [vmem:[%s7 + $0x8] sm:$0xff]
    %v91 = vld [vmem:[%s7 + $0x10] sm:$0xff]
    %v92 = vld [vmem:[%s7 + $0x18] sm:$0xff]
    %v93 = vld [vmem:[%s7 + $0x20] sm:$0xff]
    %v94 = vld [vmem:[%s7 + $0x28] sm:$0xff]
    %v95 = vld [vmem:[%s7 + $0x30] sm:$0xff]
    %v96 = vld [vmem:[%s7 + $0x38] sm:$0xff]
    %v97 = vld [vmem:[%s9] sm:$0x3f]
    %v98 = vld [vmem:[%s10] sm:$0x3f]
    %v99 = vld [vmem:[%s11] sm:$0x1]
    %v100 = vld [vmem:[#allocation3] sm:$0x1]
    %v101 = vlaneseq
    %v102 = vshrl.u32 %v101, 7
    %v103 = vadd.s32 %v102, 8
    %v104 = vadd.s32 %v102, 16
    %v105 = vadd.s32 %v102, 24
    %v106 = vadd.s32 %v102, 32
    %v107 = vadd.s32 %v102, 40
    %v108 = vadd.s32 %v102, 48
    %v109 = vadd.s32 %v102, 56
    %vm110 = vcmp.lt.s32.totalorder %v102, 48
    %vm111 = vcmp.lt.s32.totalorder %v103, 48
    %vm112 = vcmp.lt.s32.totalorder %v104, 48
    %vm113 = vcmp.lt.s32.totalorder %v105, 48
    %vm114 = vcmp.lt.s32.totalorder %v106, 48
    %vm115 = vcmp.lt.s32.totalorder %v107, 48
    %vm116 = vcmp.lt.s32.totalorder %v108, 48
    %vm117 = vcmp.lt.s32.totalorder %v109, 48
    %v118 = vsel %vm110, 0.5, 1.0
    %v119 = vsel %vm111, 0.5, 1.0
    %v120 = vsel %vm112, 0.5, 1.0
    %v121 = vsel %vm113, 0.5, 1.0
    %v122 = vsel %vm114, 0.5, 1.0
    %v123 = vsel %vm115, 0.5, 1.0
    %v124 = vsel %vm116, 0.5, 1.0
    %v125 = vsel %vm117, 0.5, 1.0
    %v126 = vsel %vm110, 0.5, 0.0
    %v127 = vsel %vm111, 0.5, 0.0
    %v128 = vsel %vm112, 0.5, 0.0
    %v129 = vsel %vm113, 0.5, 0.0
    %v130 = vsel %vm114, 0.5, 0.0
    %v131 = vsel %vm115, 0.5, 0.0
    %v132 = vsel %vm116, 0.5, 0.0
    %v133 = vsel %vm117, 0.5, 0.0
    %v134 = vld [vmem:[%s0] sm:$0xff]
    %v135 = vld [vmem:[%s0 + $0x8] sm:$0xff]
    %v136 = vld [vmem:[%s0 + $0x10] sm:$0xff]
    %v137 = vld [vmem:[%s0 + $0x18] sm:$0xf]
    %139 = vset.pattern.permute.xlu0 0
    %140 = vperm.xlu0 %139, %v48
    %v141 = vpop.permute.xlu0 %140
    %vm143 = vcmask 228352
    %v145 = vsel %vm143, %v47, 0
    %vm147 = vcmask 1043456
    %v149 = vsel %vm147, %v137, 0
    %151 = vmatprep.subr.mxu0 0.0
    %152 = vmatpush1.msra.mxu0 %v134
    %153 = vmatprep.subr.mxu0 0.0
    %154 = vmatpush1.msra.mxu0 %v135
    %155 = vmatprep.subr.mxu0 0.0
    %156 = vmatpush1.msra.mxu0 %v136
    %157 = vmatprep.subr.mxu0 0.0
    %158 = vmatpush1.msra.mxu0 %v149
    %159 = vmatprep.subr.mxu0 0.0
    %160 = vmatpush1.msra.mxu0 0.0
    %161 = vmatprep.subr.mxu0 0.0
    %162 = vmatpush1.msra.mxu0 0.0
    %163 = vmatprep.subr.mxu0 0.0
    %164 = vmatpush1.msra.mxu0 0.0
    %165 = vmatprep.subr.mxu0 0.0
    %166 = vmatpush1.msra.mxu0 0.0
    %167 = vmatprep.subr.mxu0 0.0
    %168 = vmatpush1.msra.mxu0 0.0
    %169 = vmatprep.subr.mxu0 0.0
    %170 = vmatpush1.msra.mxu0 0.0
    %171 = vmatprep.subr.mxu0 0.0
    %172 = vmatpush1.msra.mxu0 0.0
    %173 = vmatprep.subr.mxu0 0.0
    %174 = vmatpush1.msra.mxu0 0.0
    %175 = vmatprep.subr.mxu0 0.0
    %176 = vmatpush1.msra.mxu0 0.0
    %177 = vmatprep.subr.mxu0 0.0
    %178 = vmatpush1.msra.mxu0 0.0
    %179 = vmatprep.subr.mxu0 0.0
    %180 = vmatpush1.msra.mxu0 0.0
    %181 = vmatprep.subr.mxu0 0.0
    %182 = vmatpush1.msra.mxu0 0.0
    %183 = vmatprep.subr.mxu0 0.0
    %184 = vmatpush1.msra.mxu0 0.0
    %185 = vmatprep.subr.mxu0 0.0
    %186 = vmatpush1.msra.mxu0 0.0
    %187 = vmatprep.subr.mxu0 0.0
    %188 = vmatpush1.msra.mxu0 0.0
    %189 = vmatprep.subr.mxu0 0.0
    %190 = vmatpush1.msra.mxu0 0.0
    %191 = vmatprep.subr.mxu0 0.0
    %192 = vmatpush1.msra.mxu0 0.0
    %193 = vmatprep.subr.mxu0 0.0
    %194 = vmatpush1.msra.mxu0 0.0
    %195 = vmatprep.subr.mxu0 0.0
    %196 = vmatpush1.msra.mxu0 0.0
    %197 = vmatprep.subr.mxu0 0.0
    %198 = vmatpush1.msra.mxu0 0.0
    %199 = vmatprep.subr.mxu0 0.0
    %200 = vmatpush1.msra.mxu0 0.0
    %201 = vmatprep.subr.mxu0 0.0
    %202 = vmatpush1.msra.mxu0 0.0
    %203 = vmatprep.subr.mxu0 0.0
    %204 = vmatpush1.msra.mxu0 0.0
    %205 = vmatprep.subr.mxu0 0.0
    %206 = vmatpush1.msra.mxu0 0.0
    %207 = vmatprep.subr.mxu0 0.0
    %208 = vmatpush1.msra.mxu0 0.0
    %209 = vmatprep.subr.mxu0 0.0
    %210 = vmatpush1.msra.mxu0 0.0
    %211 = vmatprep.subr.mxu0 0.0
    %212 = vmatpush1.msra.mxu0 0.0
    %213 = vmatprep.subr.mxu0 0.0
    %214 = vmatpush1.msra.mxu0 0.0
    %215 = vmatprep.mubr.f32.mxu0 0.0
    %216 = vmatmul.mubr.f32.gmra.mrb[0].mxu0 %v145
    %v217 = vpop.f32.mrb[0].mxu0
    %v218 = vadd.f32 %v141, %v217
    %v219 = vpop.f32.mrb[0].mxu0
    %220 = vdwg.mxu0
    %v221 = vmax.f32 %v218, 0.0
    %223 = vset.pattern.permute.xlu0 0
    %224 = vperm.xlu0 %223, %v65
    %v225 = vpop.permute.xlu0 %224
    %228 = vset.pattern.permute.xlu0 0
    %229 = vperm.xlu0 %228, %v66
    %v230 = vpop.permute.xlu0 %229
    %233 = vset.pattern.permute.xlu0 0
    %234 = vperm.xlu0 %233, %v67
    %v235 = vpop.permute.xlu0 %234
    %238 = vset.pattern.permute.xlu0 0
    %239 = vperm.xlu0 %238, %v68
    %v240 = vpop.permute.xlu0 %239
    %243 = vset.pattern.permute.xlu0 0
    %244 = vperm.xlu0 %243, %v69
    %v245 = vpop.permute.xlu0 %244
    %248 = vset.pattern.permute.xlu0 0
    %249 = vperm.xlu0 %248, %v70
    %v250 = vpop.permute.xlu0 %249
    %253 = vset.pattern.permute.xlu0 0
    %254 = vperm.xlu0 %253, %v71
    %v255 = vpop.permute.xlu0 %254
    %258 = vset.pattern.permute.xlu0 0
    %259 = vperm.xlu0 %258, %v72
    %v260 = vpop.permute.xlu0 %259
    %vm262 = vcmask 64512
    %v264 = vsel %vm262, %v49, 0
    %v267 = vsel %vm262, %v50, 0
    %v270 = vsel %vm262, %v51, 0
    %v273 = vsel %vm262, %v52, 0
    %v276 = vsel %vm262, %v53, 0
    %v279 = vsel %vm262, %v54, 0
    %v282 = vsel %vm262, %v55, 0
    %v285 = vsel %vm262, %v56, 0
    %287 = vmatprep.subr.mxu0 0.0
    %288 = vmatpush1.msra.mxu0 %v221
    %289 = vmatprep.subr.mxu0 0.0
    %290 = vmatpush1.msra.mxu0 0.0
    %291 = vmatprep.subr.mxu0 0.0
    %292 = vmatpush1.msra.mxu0 0.0
    %293 = vmatprep.subr.mxu0 0.0
    %294 = vmatpush1.msra.mxu0 0.0
    %295 = vmatprep.subr.mxu0 0.0
    %296 = vmatpush1.msra.mxu0 0.0
    %297 = vmatprep.subr.mxu0 0.0
    %298 = vmatpush1.msra.mxu0 0.0
    %299 = vmatprep.subr.mxu0 0.0
    %300 = vmatpush1.msra.mxu0 0.0
    %301 = vmatprep.subr.mxu0 0.0
    %302 = vmatpush1.msra.mxu0 0.0
    %303 = vmatprep.subr.mxu0 0.0
    %304 = vmatpush1.msra.mxu0 0.0
    %305 = vmatprep.subr.mxu0 0.0
    %306 = vmatpush1.msra.mxu0 0.0
    %307 = vmatprep.subr.mxu0 0.0
    %308 = vmatpush1.msra.mxu0 0.0
    %309 = vmatprep.subr.mxu0 0.0
    %310 = vmatpush1.msra.mxu0 0.0
    %311 = vmatprep.subr.mxu0 0.0
    %312 = vmatpush1.msra.mxu0 0.0
    %313 = vmatprep.subr.mxu0 0.0
    %314 = vmatpush1.msra.mxu0 0.0
    %315 = vmatprep.subr.mxu0 0.0
    %316 = vmatpush1.msra.mxu0 0.0
    %317 = vmatprep.subr.mxu0 0.0
    %318 = vmatpush1.msra.mxu0 0.0
    %319 = vmatprep.subr.mxu0 0.0
    %320 = vmatpush1.msra.mxu0 0.0
    %321 = vmatprep.subr.mxu0 0.0
    %322 = vmatpush1.msra.mxu0 0.0
    %323 = vmatprep.subr.mxu0 0.0
    %324 = vmatpush1.msra.mxu0 0.0
    %325 = vmatprep.subr.mxu0 0.0
    %326 = vmatpush1.msra.mxu0 0.0
    %327 = vmatprep.subr.mxu0 0.0
    %328 = vmatpush1.msra.mxu0 0.0
    %329 = vmatprep.subr.mxu0 0.0
    %330 = vmatpush1.msra.mxu0 0.0
    %331 = vmatprep.subr.mxu0 0.0
    %332 = vmatpush1.msra.mxu0 0.0
    %333 = vmatprep.subr.mxu0 0.0
    %334 = vmatpush1.msra.mxu0 0.0
    %335 = vmatprep.subr.mxu0 0.0
    %336 = vmatpush1.msra.mxu0 0.0
    %337 = vmatprep.subr.mxu0 0.0
    %338 = vmatpush1.msra.mxu0 0.0
    %339 = vmatprep.subr.mxu0 0.0
    %340 = vmatpush1.msra.mxu0 0.0
    %341 = vmatprep.subr.mxu0 0.0
    %342 = vmatpush1.msra.mxu0 0.0
    %343 = vmatprep.subr.mxu0 0.0
    %344 = vmatpush1.msra.mxu0 0.0
    %345 = vmatprep.subr.mxu0 0.0
    %346 = vmatpush1.msra.mxu0 0.0
    %347 = vmatprep.subr.mxu0 0.0
    %348 = vmatpush1.msra.mxu0 0.0
    %349 = vmatprep.subr.mxu0 0.0
    %350 = vmatpush1.msra.mxu0 0.0
    %351 = vmatprep.mubr.f32.mxu0 0.0
    %352 = vmatmul.mubr.f32.gmra.mrb[0].mxu0 %v264
    %v353 = vpop.f32.mrb[0].mxu0
    %v354 = vadd.f32 %v225, %v353
    %v355 = vpop.f32.mrb[0].mxu0
    %356 = vmatprep.mubr.f32.mxu0 0.0
    %357 = vmatmul.mubr.f32.gmra.mrb[0].mxu0 %v267
    %v358 = vpop.f32.mrb[0].mxu0
    %v359 = vadd.f32 %v230, %v358
    %v360 = vpop.f32.mrb[0].mxu0
    %361 = vmatprep.mubr.f32.mxu0 0.0
    %362 = vmatmul.mubr.f32.gmra.mrb[0].mxu0 %v270
    %v363 = vpop.f32.mrb[0].mxu0
    %v364 = vadd.f32 %v235, %v363
    %v365 = vpop.f32.mrb[0].mxu0
    %366 = vmatprep.mubr.f32.mxu0 0.0
    %367 = vmatmul.mubr.f32.gmra.mrb[0].mxu0 %v273
    %v368 = vpop.f32.mrb[0].mxu0
    %v369 = vadd.f32 %v240, %v368
    %v370 = vpop.f32.mrb[0].mxu0
    %371 = vmatprep.mubr.f32.mxu0 0.0
    %372 = vmatmul.mubr.f32.gmra.mrb[0].mxu0 %v276
    %v373 = vpop.f32.mrb[0].mxu0
    %v374 = vadd.f32 %v245, %v373
    %v375 = vpop.f32.mrb[0].mxu0
    %376 = vmatprep.mubr.f32.mxu0 0.0
    %377 = vmatmul.mubr.f32.gmra.mrb[0].mxu0 %v279
    %v378 = vpop.f32.mrb[0].mxu0
    %v379 = vadd.f32 %v250, %v378
    %v380 = vpop.f32.mrb[0].mxu0
    %381 = vmatprep.mubr.f32.mxu0 0.0
    %382 = vmatmul.mubr.f32.gmra.mrb[0].mxu0 %v282
    %v383 = vpop.f32.mrb[0].mxu0
    %v384 = vadd.f32 %v255, %v383
    %v385 = vpop.f32.mrb[0].mxu0
    %386 = vmatprep.mubr.f32.mxu0 0.0
    %387 = vmatmul.mubr.f32.gmra.mrb[0].mxu0 %v285
    %v388 = vpop.f32.mrb[0].mxu0
    %v389 = vadd.f32 %v260, %v388
    %v390 = vpop.f32.mrb[0].mxu0
    %391 = vdwg.mxu0
    %vm392 = vcmask 15360
    %393 = vst.msk [vmem:[#allocation2] sm:$0xff] %vm392, %v354
    %394 = vst.msk [vmem:[#allocation2 + $0x8] sm:$0xff] %vm392, %v359
    %395 = vst.msk [vmem:[#allocation2 + $0x10] sm:$0xff] %vm392, %v364
    %396 = vst.msk [vmem:[#allocation2 + $0x18] sm:$0xff] %vm392, %v369
    %397 = vst.msk [vmem:[#allocation2 + $0x20] sm:$0xff] %vm392, %v374
    %398 = vst.msk [vmem:[#allocation2 + $0x28] sm:$0xff] %vm392, %v379
    %399 = vst.msk [vmem:[#allocation2 + $0x30] sm:$0xff] %vm392, %v384
    %400 = vst.msk [vmem:[#allocation2 + $0x38] sm:$0xff] %vm392, %v389
    %s401 = scalar_lea.vmem %s0, 32
    %v402 = vld [vmem:[%s401] sm:$0xff]
    %v403 = vld [vmem:[%s401 + $0x8] sm:$0xff]
    %v404 = vld [vmem:[%s401 + $0x10] sm:$0xff]
    %v405 = vld [vmem:[%s401 + $0x18] sm:$0xf]
    %v407 = vsel %vm147, %v405, 0
    %409 = vmatprep.subr.mxu0 0.0
    %410 = vmatpush1.msra.mxu0 %v402
    %411 = vmatprep.subr.mxu0 0.0
    %412 = vmatpush1.msra.mxu0 %v403
    %413 = vmatprep.subr.mxu0 0.0
    %414 = vmatpush1.msra.mxu0 %v404
    %415 = vmatprep.subr.mxu0 0.0
    %416 = vmatpush1.msra.mxu0 %v407
    %417 = vmatprep.subr.mxu0 0.0
    %418 = vmatpush1.msra.mxu0 0.0
    %419 = vmatprep.subr.mxu0 0.0
    %420 = vmatpush1.msra.mxu0 0.0
    %421 = vmatprep.subr.mxu0 0.0
    %422 = vmatpush1.msra.mxu0 0.0
    %423 = vmatprep.subr.mxu0 0.0
    %424 = vmatpush1.msra.mxu0 0.0
    %425 = vmatprep.subr.mxu0 0.0
    %426 = vmatpush1.msra.mxu0 0.0
    %427 = vmatprep.subr.mxu0 0.0
    %428 = vmatpush1.msra.mxu0 0.0
    %429 = vmatprep.subr.mxu0 0.0
    %430 = vmatpush1.msra.mxu0 0.0
    %431 = vmatprep.subr.mxu0 0.0
    %432 = vmatpush1.msra.mxu0 0.0
    %433 = vmatprep.subr.mxu0 0.0
    %434 = vmatpush1.msra.mxu0 0.0
    %435 = vmatprep.subr.mxu0 0.0
    %436 = vmatpush1.msra.mxu0 0.0
    %437 = vmatprep.subr.mxu0 0.0
    %438 = vmatpush1.msra.mxu0 0.0
    %439 = vmatprep.subr.mxu0 0.0
    %440 = vmatpush1.msra.mxu0 0.0
    %441 = vmatprep.subr.mxu0 0.0
    %442 = vmatpush1.msra.mxu0 0.0
    %443 = vmatprep.subr.mxu0 0.0
    %444 = vmatpush1.msra.mxu0 0.0
    %445 = vmatprep.subr.mxu0 0.0
    %446 = vmatpush1.msra.mxu0 0.0
    %447 = vmatprep.subr.mxu0 0.0
    %448 = vmatpush1.msra.mxu0 0.0
    %449 = vmatprep.subr.mxu0 0.0
    %450 = vmatpush1.msra.mxu0 0.0
    %451 = vmatprep.subr.mxu0 0.0
    %452 = vmatpush1.msra.mxu0 0.0
    %453 = vmatprep.subr.mxu0 0.0
    %454 = vmatpush1.msra.mxu0 0.0
    %455 = vmatprep.subr.mxu0 0.0
    %456 = vmatpush1.msra.mxu0 0.0
    %457 = vmatprep.subr.mxu0 0.0
    %458 = vmatpush1.msra.mxu0 0.0
    %459 = vmatprep.subr.mxu0 0.0
    %460 = vmatpush1.msra.mxu0 0.0
    %461 = vmatprep.subr.mxu0 0.0
    %462 = vmatpush1.msra.mxu0 0.0
    %463 = vmatprep.subr.mxu0 0.0
    %464 = vmatpush1.msra.mxu0 0.0
    %465 = vmatprep.subr.mxu0 0.0
    %466 = vmatpush1.msra.mxu0 0.0
    %467 = vmatprep.subr.mxu0 0.0
    %468 = vmatpush1.msra.mxu0 0.0
    %469 = vmatprep.subr.mxu0 0.0
    %470 = vmatpush1.msra.mxu0 0.0
    %471 = vmatprep.subr.mxu0 0.0
    %472 = vmatpush1.msra.mxu0 0.0
    %473 = vmatprep.mubr.f32.mxu0 0.0
    %474 = vmatmul.mubr.f32.gmra.mrb[0].mxu0 %v145
    %v475 = vpop.f32.mrb[0].mxu0
    %v476 = vadd.f32 %v141, %v475
    %v477 = vpop.f32.mrb[0].mxu0
    %478 = vdwg.mxu0
    %v479 = vmax.f32 %v476, 0.0
    %480 = vmatprep.subr.mxu0 0.0
    %481 = vmatpush1.msra.mxu0 %v479
    %482 = vmatprep.subr.mxu0 0.0
    %483 = vmatpush1.msra.mxu0 0.0
    %484 = vmatprep.subr.mxu0 0.0
    %485 = vmatpush1.msra.mxu0 0.0
    %486 = vmatprep.subr.mxu0 0.0
    %487 = vmatpush1.msra.mxu0 0.0
    %488 = vmatprep.subr.mxu0 0.0
    %489 = vmatpush1.msra.mxu0 0.0
    %490 = vmatprep.subr.mxu0 0.0
    %491 = vmatpush1.msra.mxu0 0.0
    %492 = vmatprep.subr.mxu0 0.0
    %493 = vmatpush1.msra.mxu0 0.0
    %494 = vmatprep.subr.mxu0 0.0
    %495 = vmatpush1.msra.mxu0 0.0
    %496 = vmatprep.subr.mxu0 0.0
    %497 = vmatpush1.msra.mxu0 0.0
    %498 = vmatprep.subr.mxu0 0.0
    %499 = vmatpush1.msra.mxu0 0.0
    %500 = vmatprep.subr.mxu0 0.0
    %501 = vmatpush1.msra.mxu0 0.0
    %502 = vmatprep.subr.mxu0 0.0
    %503 = vmatpush1.msra.mxu0 0.0
    %504 = vmatprep.subr.mxu0 0.0
    %505 = vmatpush1.msra.mxu0 0.0
    %506 = vmatprep.subr.mxu0 0.0
    %507 = vmatpush1.msra.mxu0 0.0
    %508 = vmatprep.subr.mxu0 0.0
    %509 = vmatpush1.msra.mxu0 0.0
    %510 = vmatprep.subr.mxu0 0.0
    %511 = vmatpush1.msra.mxu0 0.0
    %512 = vmatprep.subr.mxu0 0.0
    %513 = vmatpush1.msra.mxu0 0.0
    %514 = vmatprep.subr.mxu0 0.0
    %515 = vmatpush1.msra.mxu0 0.0
    %516 = vmatprep.subr.mxu0 0.0
    %517 = vmatpush1.msra.mxu0 0.0
    %518 = vmatprep.subr.mxu0 0.0
    %519 = vmatpush1.msra.mxu0 0.0
    %520 = vmatprep.subr.mxu0 0.0
    %521 = vmatpush1.msra.mxu0 0.0
    %522 = vmatprep.subr.mxu0 0.0
    %523 = vmatpush1.msra.mxu0 0.0
    %524 = vmatprep.subr.mxu0 0.0
    %525 = vmatpush1.msra.mxu0 0.0
    %526 = vmatprep.subr.mxu0 0.0
    %527 = vmatpush1.msra.mxu0 0.0
    %528 = vmatprep.subr.mxu0 0.0
    %529 = vmatpush1.msra.mxu0 0.0
    %530 = vmatprep.subr.mxu0 0.0
    %531 = vmatpush1.msra.mxu0 0.0
    %532 = vmatprep.subr.mxu0 0.0
    %533 = vmatpush1.msra.mxu0 0.0
    %534 = vmatprep.subr.mxu0 0.0
    %535 = vmatpush1.msra.mxu0 0.0
    %536 = vmatprep.subr.mxu0 0.0
    %537 = vmatpush1.msra.mxu0 0.0
    %538 = vmatprep.subr.mxu0 0.0
    %539 = vmatpush1.msra.mxu0 0.0
    %540 = vmatprep.subr.mxu0 0.0
    %541 = vmatpush1.msra.mxu0 0.0
    %542 = vmatprep.subr.mxu0 0.0
    %543 = vmatpush1.msra.mxu0 0.0
    %544 = vmatprep.mubr.f32.mxu0 0.0
    %545 = vmatmul.mubr.f32.gmra.mrb[0].mxu0 %v264
    %v546 = vpop.f32.mrb[0].mxu0
    %v547 = vadd.f32 %v225, %v546
    %v548 = vpop.f32.mrb[0].mxu0
    %549 = vmatprep.mubr.f32.mxu0 0.0
    %550 = vmatmul.mubr.f32.gmra.mrb[0].mxu0 %v267
    %v551 = vpop.f32.mrb[0].mxu0
    %v552 = vadd.f32 %v230, %v551
    %v553 = vpop.f32.mrb[0].mxu0
    %554 = vmatprep.mubr.f32.mxu0 0.0
    %555 = vmatmul.mubr.f32.gmra.mrb[0].mxu0 %v270
    %v556 = vpop.f32.mrb[0].mxu0
    %v557 = vadd.f32 %v235, %v556
    %v558 = vpop.f32.mrb[0].mxu0
    %559 = vmatprep.mubr.f32.mxu0 0.0
    %560 = vmatmul.mubr.f32.gmra.mrb[0].mxu0 %v273
    %v561 = vpop.f32.mrb[0].mxu0
    %v562 = vadd.f32 %v240, %v561
    %v563 = vpop.f32.mrb[0].mxu0
    %564 = vmatprep.mubr.f32.mxu0 0.0
    %565 = vmatmul.mubr.f32.gmra.mrb[0].mxu0 %v276
    %v566 = vpop.f32.mrb[0].mxu0
    %v567 = vadd.f32 %v245, %v566
    %v568 = vpop.f32.mrb[0].mxu0
    %569 = vmatprep.mubr.f32.mxu0 0.0
    %570 = vmatmul.mubr.f32.gmra.mrb[0].mxu0 %v279
    %v571 = vpop.f32.mrb[0].mxu0
    %v572 = vadd.f32 %v250, %v571
    %v573 = vpop.f32.mrb[0].mxu0
    %574 = vmatprep.mubr.f32.mxu0 0.0
    %575 = vmatmul.mubr.f32.gmra.mrb[0].mxu0 %v282
    %v576 = vpop.f32.mrb[0].mxu0
    %v577 = vadd.f32 %v255, %v576
    %v578 = vpop.f32.mrb[0].mxu0
    %579 = vmatprep.mubr.f32.mxu0 0.0
    %580 = vmatmul.mubr.f32.gmra.mrb[0].mxu0 %v285
    %v581 = vpop.f32.mrb[0].mxu0
    %v582 = vadd.f32 %v260, %v581
    %v583 = vpop.f32.mrb[0].mxu0
    %584 = vdwg.mxu0
    %s585 = scalar_lea.vmem [#allocation2], 64
    %586 = vst.msk [vmem:[%s585] sm:$0xff] %vm392, %v547
    %587 = vst.msk [vmem:[%s585 + $0x8] sm:$0xff] %vm392, %v552
    %588 = vst.msk [vmem:[%s585 + $0x10] sm:$0xff] %vm392, %v557
    %589 = vst.msk [vmem:[%s585 + $0x18] sm:$0xff] %vm392, %v562
    %590 = vst.msk [vmem:[%s585 + $0x20] sm:$0xff] %vm392, %v567
    %591 = vst.msk [vmem:[%s585 + $0x28] sm:$0xff] %vm392, %v572
    %592 = vst.msk [vmem:[%s585 + $0x30] sm:$0xff] %vm392, %v577
    %593 = vst.msk [vmem:[%s585 + $0x38] sm:$0xff] %vm392, %v582
    %s594 = scalar_lea.vmem %s0, 64
    %v595 = vld [vmem:[%s594] sm:$0xff]
    %v596 = vld [vmem:[%s594 + $0x8] sm:$0xff]
    %v597 = vld [vmem:[%s594 + $0x10] sm:$0xff]
    %v598 = vld [vmem:[%s594 + $0x18] sm:$0xf]
    %v600 = vsel %vm147, %v598, 0
    %602 = vmatprep.subr.mxu0 0.0
    %603 = vmatpush1.msra.mxu0 %v595
    %604 = vmatprep.subr.mxu0 0.0
    %605 = vmatpush1.msra.mxu0 %v596
    %606 = vmatprep.subr.mxu0 0.0
    %607 = vmatpush1.msra.mxu0 %v597
    %608 = vmatprep.subr.mxu0 0.0
    %609 = vmatpush1.msra.mxu0 %v600
    %610 = vmatprep.subr.mxu0 0.0
    %611 = vmatpush1.msra.mxu0 0.0
    %612 = vmatprep.subr.mxu0 0.0
    %613 = vmatpush1.msra.mxu0 0.0
    %614 = vmatprep.subr.mxu0 0.0
    %615 = vmatpush1.msra.mxu0 0.0
    %616 = vmatprep.subr.mxu0 0.0
    %617 = vmatpush1.msra.mxu0 0.0
    %618 = vmatprep.subr.mxu0 0.0
    %619 = vmatpush1.msra.mxu0 0.0
    %620 = vmatprep.subr.mxu0 0.0
    %621 = vmatpush1.msra.mxu0 0.0
    %622 = vmatprep.subr.mxu0 0.0
    %623 = vmatpush1.msra.mxu0 0.0
    %624 = vmatprep.subr.mxu0 0.0
    %625 = vmatpush1.msra.mxu0 0.0
    %626 = vmatprep.subr.mxu0 0.0
    %627 = vmatpush1.msra.mxu0 0.0
    %628 = vmatprep.subr.mxu0 0.0
    %629 = vmatpush1.msra.mxu0 0.0
    %630 = vmatprep.subr.mxu0 0.0
    %631 = vmatpush1.msra.mxu0 0.0
    %632 = vmatprep.subr.mxu0 0.0
    %633 = vmatpush1.msra.mxu0 0.0
    %634 = vmatprep.subr.mxu0 0.0
    %635 = vmatpush1.msra.mxu0 0.0
    %636 = vmatprep.subr.mxu0 0.0
    %637 = vmatpush1.msra.mxu0 0.0
    %638 = vmatprep.subr.mxu0 0.0
    %639 = vmatpush1.msra.mxu0 0.0
    %640 = vmatprep.subr.mxu0 0.0
    %641 = vmatpush1.msra.mxu0 0.0
    %642 = vmatprep.subr.mxu0 0.0
    %643 = vmatpush1.msra.mxu0 0.0
    %644 = vmatprep.subr.mxu0 0.0
    %645 = vmatpush1.msra.mxu0 0.0
    %646 = vmatprep.subr.mxu0 0.0
    %647 = vmatpush1.msra.mxu0 0.0
    %648 = vmatprep.subr.mxu0 0.0
    %649 = vmatpush1.msra.mxu0 0.0
    %650 = vmatprep.subr.mxu0 0.0
    %651 = vmatpush1.msra.mxu0 0.0
    %652 = vmatprep.subr.mxu0 0.0
    %653 = vmatpush1.msra.mxu0 0.0
    %654 = vmatprep.subr.mxu0 0.0
    %655 = vmatpush1.msra.mxu0 0.0
    %656 = vmatprep.subr.mxu0 0.0
    %657 = vmatpush1.msra.mxu0 0.0
    %658 = vmatprep.subr.mxu0 0.0
    %659 = vmatpush1.msra.mxu0 0.0
    %660 = vmatprep.subr.mxu0 0.0
    %661 = vmatpush1.msra.mxu0 0.0
    %662 = vmatprep.subr.mxu0 0.0
    %663 = vmatpush1.msra.mxu0 0.0
    %664 = vmatprep.subr.mxu0 0.0
    %665 = vmatpush1.msra.mxu0 0.0
    %666 = vmatprep.mubr.f32.mxu0 0.0
    %667 = vmatmul.mubr.f32.gmra.mrb[0].mxu0 %v145
    %v668 = vpop.f32.mrb[0].mxu0
    %v669 = vadd.f32 %v141, %v668
    %v670 = vpop.f32.mrb[0].mxu0
    %671 = vdwg.mxu0
    %v672 = vmax.f32 %v669, 0.0
    %673 = vmatprep.subr.mxu0 0.0
    %674 = vmatpush1.msra.mxu0 %v672
    %675 = vmatprep.subr.mxu0 0.0
    %676 = vmatpush1.msra.mxu0 0.0
    %677 = vmatprep.subr.mxu0 0.0
    %678 = vmatpush1.msra.mxu0 0.0
    %679 = vmatprep.subr.mxu0 0.0
    %680 = vmatpush1.msra.mxu0 0.0
    %681 = vmatprep.subr.mxu0 0.0
    %682 = vmatpush1.msra.mxu0 0.0
    %683 = vmatprep.subr.mxu0 0.0
    %684 = vmatpush1.msra.mxu0 0.0
    %685 = vmatprep.subr.mxu0 0.0
    %686 = vmatpush1.msra.mxu0 0.0
    %687 = vmatprep.subr.mxu0 0.0
    %688 = vmatpush1.msra.mxu0 0.0
    %689 = vmatprep.subr.mxu0 0.0
    %690 = vmatpush1.msra.mxu0 0.0
    %691 = vmatprep.subr.mxu0 0.0
    %692 = vmatpush1.msra.mxu0 0.0
    %693 = vmatprep.subr.mxu0 0.0
    %694 = vmatpush1.msra.mxu0 0.0
    %695 = vmatprep.subr.mxu0 0.0
    %696 = vmatpush1.msra.mxu0 0.0
    %697 = vmatprep.subr.mxu0 0.0
    %698 = vmatpush1.msra.mxu0 0.0
    %699 = vmatprep.subr.mxu0 0.0
    %700 = vmatpush1.msra.mxu0 0.0
    %701 = vmatprep.subr.mxu0 0.0
    %702 = vmatpush1.msra.mxu0 0.0
    %703 = vmatprep.subr.mxu0 0.0
    %704 = vmatpush1.msra.mxu0 0.0
    %705 = vmatprep.subr.mxu0 0.0
    %706 = vmatpush1.msra.mxu0 0.0
    %707 = vmatprep.subr.mxu0 0.0
    %708 = vmatpush1.msra.mxu0 0.0
    %709 = vmatprep.subr.mxu0 0.0
    %710 = vmatpush1.msra.mxu0 0.0
    %711 = vmatprep.subr.mxu0 0.0
    %712 = vmatpush1.msra.mxu0 0.0
    %713 = vmatprep.subr.mxu0 0.0
    %714 = vmatpush1.msra.mxu0 0.0
    %715 = vmatprep.subr.mxu0 0.0
    %716 = vmatpush1.msra.mxu0 0.0
    %717 = vmatprep.subr.mxu0 0.0
    %718 = vmatpush1.msra.mxu0 0.0
    %719 = vmatprep.subr.mxu0 0.0
    %720 = vmatpush1.msra.mxu0 0.0
    %721 = vmatprep.subr.mxu0 0.0
    %722 = vmatpush1.msra.mxu0 0.0
    %723 = vmatprep.subr.mxu0 0.0
    %724 = vmatpush1.msra.mxu0 0.0
    %725 = vmatprep.subr.mxu0 0.0
    %726 = vmatpush1.msra.mxu0 0.0
    %727 = vmatprep.subr.mxu0 0.0
    %728 = vmatpush1.msra.mxu0 0.0
    %729 = vmatprep.subr.mxu0 0.0
    %730 = vmatpush1.msra.mxu0 0.0
    %731 = vmatprep.subr.mxu0 0.0
    %732 = vmatpush1.msra.mxu0 0.0
    %733 = vmatprep.subr.mxu0 0.0
    %734 = vmatpush1.msra.mxu0 0.0
    %735 = vmatprep.subr.mxu0 0.0
    %736 = vmatpush1.msra.mxu0 0.0
    %737 = vmatprep.mubr.f32.mxu0 0.0
    %738 = vmatmul.mubr.f32.gmra.mrb[0].mxu0 %v264
    %v739 = vpop.f32.mrb[0].mxu0
    %v740 = vadd.f32 %v225, %v739
    %v741 = vpop.f32.mrb[0].mxu0
    %742 = vmatprep.mubr.f32.mxu0 0.0
    %743 = vmatmul.mubr.f32.gmra.mrb[0].mxu0 %v267
    %v744 = vpop.f32.mrb[0].mxu0
    %v745 = vadd.f32 %v230, %v744
    %v746 = vpop.f32.mrb[0].mxu0
    %747 = vmatprep.mubr.f32.mxu0 0.0
    %748 = vmatmul.mubr.f32.gmra.mrb[0].mxu0 %v270
    %v749 = vpop.f32.mrb[0].mxu0
    %v750 = vadd.f32 %v235, %v749
    %v751 = vpop.f32.mrb[0].mxu0
    %752 = vmatprep.mubr.f32.mxu0 0.0
    %753 = vmatmul.mubr.f32.gmra.mrb[0].mxu0 %v273
    %v754 = vpop.f32.mrb[0].mxu0
    %v755 = vadd.f32 %v240, %v754
    %v756 = vpop.f32.mrb[0].mxu0
    %757 = vmatprep.mubr.f32.mxu0 0.0
    %758 = vmatmul.mubr.f32.gmra.mrb[0].mxu0 %v276
    %v759 = vpop.f32.mrb[0].mxu0
    %v760 = vadd.f32 %v245, %v759
    %v761 = vpop.f32.mrb[0].mxu0
    %762 = vmatprep.mubr.f32.mxu0 0.0
    %763 = vmatmul.mubr.f32.gmra.mrb[0].mxu0 %v279
    %v764 = vpop.f32.mrb[0].mxu0
    %v765 = vadd.f32 %v250, %v764
    %v766 = vpop.f32.mrb[0].mxu0
    %767 = vmatprep.mubr.f32.mxu0 0.0
    %768 = vmatmul.mubr.f32.gmra.mrb[0].mxu0 %v282
    %v769 = vpop.f32.mrb[0].mxu0
    %v770 = vadd.f32 %v255, %v769
    %v771 = vpop.f32.mrb[0].mxu0
    %772 = vmatprep.mubr.f32.mxu0 0.0
    %773 = vmatmul.mubr.f32.gmra.mrb[0].mxu0 %v285
    %v774 = vpop.f32.mrb[0].mxu0
    %v775 = vadd.f32 %v260, %v774
    %v776 = vpop.f32.mrb[0].mxu0
    %777 = vdwg.mxu0
    %s778 = scalar_lea.vmem [#allocation2], 128
    %779 = vst.msk [vmem:[%s778] sm:$0xff] %vm392, %v740
    %780 = vst.msk [vmem:[%s778 + $0x8] sm:$0xff] %vm392, %v745
    %781 = vst.msk [vmem:[%s778 + $0x10] sm:$0xff] %vm392, %v750
    %782 = vst.msk [vmem:[%s778 + $0x18] sm:$0xff] %vm392, %v755
    %783 = vst.msk [vmem:[%s778 + $0x20] sm:$0xff] %vm392, %v760
    %784 = vst.msk [vmem:[%s778 + $0x28] sm:$0xff] %vm392, %v765
    %785 = vst.msk [vmem:[%s778 + $0x30] sm:$0xff] %vm392, %v770
    %786 = vst.msk [vmem:[%s778 + $0x38] sm:$0xff] %vm392, %v775
    %s787 = scalar_lea.vmem %s0, 96
    %v788 = vld [vmem:[%s787] sm:$0xff]
    %v789 = vld [vmem:[%s787 + $0x8] sm:$0xff]
    %v790 = vld [vmem:[%s787 + $0x10] sm:$0xff]
    %v791 = vld [vmem:[%s787 + $0x18] sm:$0xf]
    %v793 = vsel %vm147, %v791, 0
    %795 = vmatprep.subr.mxu0 0.0
    %796 = vmatpush1.msra.mxu0 %v788
    %797 = vmatprep.subr.mxu0 0.0
    %798 = vmatpush1.msra.mxu0 %v789
    %799 = vmatprep.subr.mxu0 0.0
    %800 = vmatpush1.msra.mxu0 %v790
    %801 = vmatprep.subr.mxu0 0.0
    %802 = vmatpush1.msra.mxu0 %v793
    %803 = vmatprep.subr.mxu0 0.0
    %804 = vmatpush1.msra.mxu0 0.0
    %805 = vmatprep.subr.mxu0 0.0
    %806 = vmatpush1.msra.mxu0 0.0
    %807 = vmatprep.subr.mxu0 0.0
    %808 = vmatpush1.msra.mxu0 0.0
    %809 = vmatprep.subr.mxu0 0.0
    %810 = vmatpush1.msra.mxu0 0.0
    %811 = vmatprep.subr.mxu0 0.0
    %812 = vmatpush1.msra.mxu0 0.0
    %813 = vmatprep.subr.mxu0 0.0
    %814 = vmatpush1.msra.mxu0 0.0
    %815 = vmatprep.subr.mxu0 0.0
    %816 = vmatpush1.msra.mxu0 0.0
    %817 = vmatprep.subr.mxu0 0.0
    %818 = vmatpush1.msra.mxu0 0.0
    %819 = vmatprep.subr.mxu0 0.0
    %820 = vmatpush1.msra.mxu0 0.0
    %821 = vmatprep.subr.mxu0 0.0
    %822 = vmatpush1.msra.mxu0 0.0
    %823 = vmatprep.subr.mxu0 0.0
    %824 = vmatpush1.msra.mxu0 0.0
    %825 = vmatprep.subr.mxu0 0.0
    %826 = vmatpush1.msra.mxu0 0.0
    %827 = vmatprep.subr.mxu0 0.0
    %828 = vmatpush1.msra.mxu0 0.0
    %829 = vmatprep.subr.mxu0 0.0
    %830 = vmatpush1.msra.mxu0 0.0
    %831 = vmatprep.subr.mxu0 0.0
    %832 = vmatpush1.msra.mxu0 0.0
    %833 = vmatprep.subr.mxu0 0.0
    %834 = vmatpush1.msra.mxu0 0.0
    %835 = vmatprep.subr.mxu0 0.0
    %836 = vmatpush1.msra.mxu0 0.0
    %837 = vmatprep.subr.mxu0 0.0
    %838 = vmatpush1.msra.mxu0 0.0
    %839 = vmatprep.subr.mxu0 0.0
    %840 = vmatpush1.msra.mxu0 0.0
    %841 = vmatprep.subr.mxu0 0.0
    %842 = vmatpush1.msra.mxu0 0.0
    %843 = vmatprep.subr.mxu0 0.0
    %844 = vmatpush1.msra.mxu0 0.0
    %845 = vmatprep.subr.mxu0 0.0
    %846 = vmatpush1.msra.mxu0 0.0
    %847 = vmatprep.subr.mxu0 0.0
    %848 = vmatpush1.msra.mxu0 0.0
    %849 = vmatprep.subr.mxu0 0.0
    %850 = vmatpush1.msra.mxu0 0.0
    %851 = vmatprep.subr.mxu0 0.0
    %852 = vmatpush1.msra.mxu0 0.0
    %853 = vmatprep.subr.mxu0 0.0
    %854 = vmatpush1.msra.mxu0 0.0
    %855 = vmatprep.subr.mxu0 0.0
    %856 = vmatpush1.msra.mxu0 0.0
    %857 = vmatprep.subr.mxu0 0.0
    %858 = vmatpush1.msra.mxu0 0.0
    %859 = vmatprep.mubr.f32.mxu0 0.0
    %860 = vmatmul.mubr.f32.gmra.mrb[0].mxu0 %v145
    %v861 = vpop.f32.mrb[0].mxu0
    %v862 = vadd.f32 %v141, %v861
    %v863 = vpop.f32.mrb[0].mxu0
    %864 = vdwg.mxu0
    %v865 = vmax.f32 %v862, 0.0
    %866 = vmatprep.subr.mxu0 0.0
    %867 = vmatpush1.msra.mxu0 %v865
    %868 = vmatprep.subr.mxu0 0.0
    %869 = vmatpush1.msra.mxu0 0.0
    %870 = vmatprep.subr.mxu0 0.0
    %871 = vmatpush1.msra.mxu0 0.0
    %872 = vmatprep.subr.mxu0 0.0
    %873 = vmatpush1.msra.mxu0 0.0
    %874 = vmatprep.subr.mxu0 0.0
    %875 = vmatpush1.msra.mxu0 0.0
    %876 = vmatprep.subr.mxu0 0.0
    %877 = vmatpush1.msra.mxu0 0.0
    %878 = vmatprep.subr.mxu0 0.0
    %879 = vmatpush1.msra.mxu0 0.0
    %880 = vmatprep.subr.mxu0 0.0
    %881 = vmatpush1.msra.mxu0 0.0
    %882 = vmatprep.subr.mxu0 0.0
    %883 = vmatpush1.msra.mxu0 0.0
    %884 = vmatprep.subr.mxu0 0.0
    %885 = vmatpush1.msra.mxu0 0.0
    %886 = vmatprep.subr.mxu0 0.0
    %887 = vmatpush1.msra.mxu0 0.0
    %888 = vmatprep.subr.mxu0 0.0
    %889 = vmatpush1.msra.mxu0 0.0
    %890 = vmatprep.subr.mxu0 0.0
    %891 = vmatpush1.msra.mxu0 0.0
    %892 = vmatprep.subr.mxu0 0.0
    %893 = vmatpush1.msra.mxu0 0.0
    %894 = vmatprep.subr.mxu0 0.0
    %895 = vmatpush1.msra.mxu0 0.0
    %896 = vmatprep.subr.mxu0 0.0
    %897 = vmatpush1.msra.mxu0 0.0
    %898 = vmatprep.subr.mxu0 0.0
    %899 = vmatpush1.msra.mxu0 0.0
    %900 = vmatprep.subr.mxu0 0.0
    %901 = vmatpush1.msra.mxu0 0.0
    %902 = vmatprep.subr.mxu0 0.0
    %903 = vmatpush1.msra.mxu0 0.0
    %904 = vmatprep.subr.mxu0 0.0
    %905 = vmatpush1.msra.mxu0 0.0
    %906 = vmatprep.subr.mxu0 0.0
    %907 = vmatpush1.msra.mxu0 0.0
    %908 = vmatprep.subr.mxu0 0.0
    %909 = vmatpush1.msra.mxu0 0.0
    %910 = vmatprep.subr.mxu0 0.0
    %911 = vmatpush1.msra.mxu0 0.0
    %912 = vmatprep.subr.mxu0 0.0
    %913 = vmatpush1.msra.mxu0 0.0
    %914 = vmatprep.subr.mxu0 0.0
    %915 = vmatpush1.msra.mxu0 0.0
    %916 = vmatprep.subr.mxu0 0.0
    %917 = vmatpush1.msra.mxu0 0.0
    %918 = vmatprep.subr.mxu0 0.0
    %919 = vmatpush1.msra.mxu0 0.0
    %920 = vmatprep.subr.mxu0 0.0
    %921 = vmatpush1.msra.mxu0 0.0
    %922 = vmatprep.subr.mxu0 0.0
    %923 = vmatpush1.msra.mxu0 0.0
    %924 = vmatprep.subr.mxu0 0.0
    %925 = vmatpush1.msra.mxu0 0.0
    %926 = vmatprep.subr.mxu0 0.0
    %927 = vmatpush1.msra.mxu0 0.0
    %928 = vmatprep.subr.mxu0 0.0
    %929 = vmatpush1.msra.mxu0 0.0
    %930 = vmatprep.mubr.f32.mxu0 0.0
    %931 = vmatmul.mubr.f32.gmra.mrb[0].mxu0 %v264
    %v932 = vpop.f32.mrb[0].mxu0
    %v933 = vadd.f32 %v225, %v932
    %v934 = vpop.f32.mrb[0].mxu0
    %935 = vmatprep.mubr.f32.mxu0 0.0
    %936 = vmatmul.mubr.f32.gmra.mrb[0].mxu0 %v267
    %v937 = vpop.f32.mrb[0].mxu0
    %v938 = vadd.f32 %v230, %v937
    %v939 = vpop.f32.mrb[0].mxu0
    %940 = vmatprep.mubr.f32.mxu0 0.0
    %941 = vmatmul.mubr.f32.gmra.mrb[0].mxu0 %v270
    %v942 = vpop.f32.mrb[0].mxu0
    %v943 = vadd.f32 %v235, %v942
    %v944 = vpop.f32.mrb[0].mxu0
    %945 = vmatprep.mubr.f32.mxu0 0.0
    %946 = vmatmul.mubr.f32.gmra.mrb[0].mxu0 %v273
    %v947 = vpop.f32.mrb[0].mxu0
    %v948 = vadd.f32 %v240, %v947
    %v949 = vpop.f32.mrb[0].mxu0
    %950 = vmatprep.mubr.f32.mxu0 0.0
    %951 = vmatmul.mubr.f32.gmra.mrb[0].mxu0 %v276
    %v952 = vpop.f32.mrb[0].mxu0
    %v953 = vadd.f32 %v245, %v952
    %v954 = vpop.f32.mrb[0].mxu0
    %955 = vmatprep.mubr.f32.mxu0 0.0
    %956 = vmatmul.mubr.f32.gmra.mrb[0].mxu0 %v279
    %v957 = vpop.f32.mrb[0].mxu0
    %v958 = vadd.f32 %v250, %v957
    %v959 = vpop.f32.mrb[0].mxu0
    %960 = vmatprep.mubr.f32.mxu0 0.0
    %961 = vmatmul.mubr.f32.gmra.mrb[0].mxu0 %v282
    %v962 = vpop.f32.mrb[0].mxu0
    %v963 = vadd.f32 %v255, %v962
    %v964 = vpop.f32.mrb[0].mxu0
    %965 = vmatprep.mubr.f32.mxu0 0.0
    %966 = vmatmul.mubr.f32.gmra.mrb[0].mxu0 %v285
    %v967 = vpop.f32.mrb[0].mxu0
    %v968 = vadd.f32 %v260, %v967
    %v969 = vpop.f32.mrb[0].mxu0
    %970 = vdwg.mxu0
    %s971 = scalar_lea.vmem [#allocation2], 192
    %972 = vst.msk [vmem:[%s971] sm:$0xff] %vm392, %v933
    %973 = vst.msk [vmem:[%s971 + $0x8] sm:$0xff] %vm392, %v938
    %974 = vst.msk [vmem:[%s971 + $0x10] sm:$0xff] %vm392, %v943
    %975 = vst.msk [vmem:[%s971 + $0x18] sm:$0xff] %vm392, %v948
    %976 = vst.msk [vmem:[%s971 + $0x20] sm:$0xff] %vm392, %v953
    %977 = vst.msk [vmem:[%s971 + $0x28] sm:$0xff] %vm392, %v958
    %978 = vst.msk [vmem:[%s971 + $0x30] sm:$0xff] %vm392, %v963
    %979 = vst.msk [vmem:[%s971 + $0x38] sm:$0xff] %vm392, %v968
    %s980 = scalar_lea.vmem %s0, 128
    %v981 = vld [vmem:[%s980] sm:$0xff]
    %v982 = vld [vmem:[%s980 + $0x8] sm:$0xff]
    %v983 = vld [vmem:[%s980 + $0x10] sm:$0xff]
    %v984 = vld [vmem:[%s980 + $0x18] sm:$0xf]
    %v986 = vsel %vm147, %v984, 0
    %988 = vmatprep.subr.mxu0 0.0
    %989 = vmatpush1.msra.mxu0 %v981
    %990 = vmatprep.subr.mxu0 0.0
    %991 = vmatpush1.msra.mxu0 %v982
    %992 = vmatprep.subr.mxu0 0.0
    %993 = vmatpush1.msra.mxu0 %v983
    %994 = vmatprep.subr.mxu0 0.0
    %995 = vmatpush1.msra.mxu0 %v986
    %996 = vmatprep.subr.mxu0 0.0
    %997 = vmatpush1.msra.mxu0 0.0
    %998 = vmatprep.subr.mxu0 0.0
    %999 = vmatpush1.msra.mxu0 0.0
    %1000 = vmatprep.subr.mxu0 0.0
    %1001 = vmatpush1.msra.mxu0 0.0
    %1002 = vmatprep.subr.mxu0 0.0
    %1003 = vmatpush1.msra.mxu0 0.0
    %1004 = vmatprep.subr.mxu0 0.0
    %1005 = vmatpush1.msra.mxu0 0.0
    %1006 = vmatprep.subr.mxu0 0.0
    %1007 = vmatpush1.msra.mxu0 0.0
    %1008 = vmatprep.subr.mxu0 0.0
    %1009 = vmatpush1.msra.mxu0 0.0
    %1010 = vmatprep.subr.mxu0 0.0
    %1011 = vmatpush1.msra.mxu0 0.0
    %1012 = vmatprep.subr.mxu0 0.0
    %1013 = vmatpush1.msra.mxu0 0.0
    %1014 = vmatprep.subr.mxu0 0.0
    %1015 = vmatpush1.msra.mxu0 0.0
    %1016 = vmatprep.subr.mxu0 0.0
    %1017 = vmatpush1.msra.mxu0 0.0
    %1018 = vmatprep.subr.mxu0 0.0
    %1019 = vmatpush1.msra.mxu0 0.0
    %1020 = vmatprep.subr.mxu0 0.0
    %1021 = vmatpush1.msra.mxu0 0.0
    %1022 = vmatprep.subr.mxu0 0.0
    %1023 = vmatpush1.msra.mxu0 0.0
    %1024 = vmatprep.subr.mxu0 0.0
    %1025 = vmatpush1.msra.mxu0 0.0
    %1026 = vmatprep.subr.mxu0 0.0
    %1027 = vmatpush1.msra.mxu0 0.0
    %1028 = vmatprep.subr.mxu0 0.0
    %1029 = vmatpush1.msra.mxu0 0.0
    %1030 = vmatprep.subr.mxu0 0.0
    %1031 = vmatpush1.msra.mxu0 0.0
    %1032 = vmatprep.subr.mxu0 0.0
    %1033 = vmatpush1.msra.mxu0 0.0
    %1034 = vmatprep.subr.mxu0 0.0
    %1035 = vmatpush1.msra.mxu0 0.0
    %1036 = vmatprep.subr.mxu0 0.0
    %1037 = vmatpush1.msra.mxu0 0.0
    %1038 = vmatprep.subr.mxu0 0.0
    %1039 = vmatpush1.msra.mxu0 0.0
    %1040 = vmatprep.subr.mxu0 0.0
    %1041 = vmatpush1.msra.mxu0 0.0
    %1042 = vmatprep.subr.mxu0 0.0
    %1043 = vmatpush1.msra.mxu0 0.0
    %1044 = vmatprep.subr.mxu0 0.0
    %1045 = vmatpush1.msra.mxu0 0.0
    %1046 = vmatprep.subr.mxu0 0.0
    %1047 = vmatpush1.msra.mxu0 0.0
    %1048 = vmatprep.subr.mxu0 0.0
    %1049 = vmatpush1.msra.mxu0 0.0
    %1050 = vmatprep.subr.mxu0 0.0
    %1051 = vmatpush1.msra.mxu0 0.0
    %1052 = vmatprep.mubr.f32.mxu0 0.0
    %1053 = vmatmul.mubr.f32.gmra.mrb[0].mxu0 %v145
    %v1054 = vpop.f32.mrb[0].mxu0
    %v1055 = vadd.f32 %v141, %v1054
    %v1056 = vpop.f32.mrb[0].mxu0
    %1057 = vdwg.mxu0
    %v1058 = vmax.f32 %v1055, 0.0
    %1059 = vmatprep.subr.mxu0 0.0
    %1060 = vmatpush1.msra.mxu0 %v1058
    %1061 = vmatprep.subr.mxu0 0.0
    %1062 = vmatpush1.msra.mxu0 0.0
    %1063 = vmatprep.subr.mxu0 0.0
    %1064 = vmatpush1.msra.mxu0 0.0
    %1065 = vmatprep.subr.mxu0 0.0
    %1066 = vmatpush1.msra.mxu0 0.0
    %1067 = vmatprep.subr.mxu0 0.0
    %1068 = vmatpush1.msra.mxu0 0.0
    %1069 = vmatprep.subr.mxu0 0.0
    %1070 = vmatpush1.msra.mxu0 0.0
    %1071 = vmatprep.subr.mxu0 0.0
    %1072 = vmatpush1.msra.mxu0 0.0
    %1073 = vmatprep.subr.mxu0 0.0
    %1074 = vmatpush1.msra.mxu0 0.0
    %1075 = vmatprep.subr.mxu0 0.0
    %1076 = vmatpush1.msra.mxu0 0.0
    %1077 = vmatprep.subr.mxu0 0.0
    %1078 = vmatpush1.msra.mxu0 0.0
    %1079 = vmatprep.subr.mxu0 0.0
    %1080 = vmatpush1.msra.mxu0 0.0
    %1081 = vmatprep.subr.mxu0 0.0
    %1082 = vmatpush1.msra.mxu0 0.0
    %1083 = vmatprep.subr.mxu0 0.0
    %1084 = vmatpush1.msra.mxu0 0.0
    %1085 = vmatprep.subr.mxu0 0.0
    %1086 = vmatpush1.msra.mxu0 0.0
    %1087 = vmatprep.subr.mxu0 0.0
    %1088 = vmatpush1.msra.mxu0 0.0
    %1089 = vmatprep.subr.mxu0 0.0
    %1090 = vmatpush1.msra.mxu0 0.0
    %1091 = vmatprep.subr.mxu0 0.0
    %1092 = vmatpush1.msra.mxu0 0.0
    %1093 = vmatprep.subr.mxu0 0.0
    %1094 = vmatpush1.msra.mxu0 0.0
    %1095 = vmatprep.subr.mxu0 0.0
    %1096 = vmatpush1.msra.mxu0 0.0
    %1097 = vmatprep.subr.mxu0 0.0
    %1098 = vmatpush1.msra.mxu0 0.0
    %1099 = vmatprep.subr.mxu0 0.0
    %1100 = vmatpush1.msra.mxu0 0.0
    %1101 = vmatprep.subr.mxu0 0.0
    %1102 = vmatpush1.msra.mxu0 0.0
    %1103 = vmatprep.subr.mxu0 0.0
    %1104 = vmatpush1.msra.mxu0 0.0
    %1105 = vmatprep.subr.mxu0 0.0
    %1106 = vmatpush1.msra.mxu0 0.0
    %1107 = vmatprep.subr.mxu0 0.0
    %1108 = vmatpush1.msra.mxu0 0.0
    %1109 = vmatprep.subr.mxu0 0.0
    %1110 = vmatpush1.msra.mxu0 0.0
    %1111 = vmatprep.subr.mxu0 0.0
    %1112 = vmatpush1.msra.mxu0 0.0
    %1113 = vmatprep.subr.mxu0 0.0
    %1114 = vmatpush1.msra.mxu0 0.0
    %1115 = vmatprep.subr.mxu0 0.0
    %1116 = vmatpush1.msra.mxu0 0.0
    %1117 = vmatprep.subr.mxu0 0.0
    %1118 = vmatpush1.msra.mxu0 0.0
    %1119 = vmatprep.subr.mxu0 0.0
    %1120 = vmatpush1.msra.mxu0 0.0
    %1121 = vmatprep.subr.mxu0 0.0
    %1122 = vmatpush1.msra.mxu0 0.0
    %1123 = vmatprep.mubr.f32.mxu0 0.0
    %1124 = vmatmul.mubr.f32.gmra.mrb[0].mxu0 %v264
    %v1125 = vpop.f32.mrb[0].mxu0
    %v1126 = vadd.f32 %v225, %v1125
    %v1127 = vpop.f32.mrb[0].mxu0
    %1128 = vmatprep.mubr.f32.mxu0 0.0
    %1129 = vmatmul.mubr.f32.gmra.mrb[0].mxu0 %v267
    %v1130 = vpop.f32.mrb[0].mxu0
    %v1131 = vadd.f32 %v230, %v1130
    %v1132 = vpop.f32.mrb[0].mxu0
    %1133 = vmatprep.mubr.f32.mxu0 0.0
    %1134 = vmatmul.mubr.f32.gmra.mrb[0].mxu0 %v270
    %v1135 = vpop.f32.mrb[0].mxu0
    %v1136 = vadd.f32 %v235, %v1135
    %v1137 = vpop.f32.mrb[0].mxu0
    %1138 = vmatprep.mubr.f32.mxu0 0.0
    %1139 = vmatmul.mubr.f32.gmra.mrb[0].mxu0 %v273
    %v1140 = vpop.f32.mrb[0].mxu0
    %v1141 = vadd.f32 %v240, %v1140
    %v1142 = vpop.f32.mrb[0].mxu0
    %1143 = vmatprep.mubr.f32.mxu0 0.0
    %1144 = vmatmul.mubr.f32.gmra.mrb[0].mxu0 %v276
    %v1145 = vpop.f32.mrb[0].mxu0
    %v1146 = vadd.f32 %v245, %v1145
    %v1147 = vpop.f32.mrb[0].mxu0
    %1148 = vmatprep.mubr.f32.mxu0 0.0
    %1149 = vmatmul.mubr.f32.gmra.mrb[0].mxu0 %v279
    %v1150 = vpop.f32.mrb[0].mxu0
    %v1151 = vadd.f32 %v250, %v1150
    %v1152 = vpop.f32.mrb[0].mxu0
    %1153 = vmatprep.mubr.f32.mxu0 0.0
    %1154 = vmatmul.mubr.f32.gmra.mrb[0].mxu0 %v282
    %v1155 = vpop.f32.mrb[0].mxu0
    %v1156 = vadd.f32 %v255, %v1155
    %v1157 = vpop.f32.mrb[0].mxu0
    %1158 = vmatprep.mubr.f32.mxu0 0.0
    %1159 = vmatmul.mubr.f32.gmra.mrb[0].mxu0 %v285
    %v1160 = vpop.f32.mrb[0].mxu0
    %v1161 = vadd.f32 %v260, %v1160
    %v1162 = vpop.f32.mrb[0].mxu0
    %1163 = vdwg.mxu0
    %s1164 = scalar_lea.vmem [#allocation2], 256
    %1165 = vst.msk [vmem:[%s1164] sm:$0xff] %vm392, %v1126
    %1166 = vst.msk [vmem:[%s1164 + $0x8] sm:$0xff] %vm392, %v1131
    %1167 = vst.msk [vmem:[%s1164 + $0x10] sm:$0xff] %vm392, %v1136
    %1168 = vst.msk [vmem:[%s1164 + $0x18] sm:$0xff] %vm392, %v1141
    %1169 = vst.msk [vmem:[%s1164 + $0x20] sm:$0xff] %vm392, %v1146
    %1170 = vst.msk [vmem:[%s1164 + $0x28] sm:$0xff] %vm392, %v1151
    %1171 = vst.msk [vmem:[%s1164 + $0x30] sm:$0xff] %vm392, %v1156
    %1172 = vst.msk [vmem:[%s1164 + $0x38] sm:$0xff] %vm392, %v1161
    %s1173 = scalar_lea.vmem %s0, 160
    %v1174 = vld [vmem:[%s1173] sm:$0xff]
    %v1175 = vld [vmem:[%s1173 + $0x8] sm:$0xff]
    %v1176 = vld [vmem:[%s1173 + $0x10] sm:$0xff]
    %v1177 = vld [vmem:[%s1173 + $0x18] sm:$0xf]
    %v1179 = vsel %vm147, %v1177, 0
    %1181 = vmatprep.subr.mxu0 0.0
    %1182 = vmatpush1.msra.mxu0 %v1174
    %1183 = vmatprep.subr.mxu0 0.0
    %1184 = vmatpush1.msra.mxu0 %v1175
    %1185 = vmatprep.subr.mxu0 0.0
    %1186 = vmatpush1.msra.mxu0 %v1176
    %1187 = vmatprep.subr.mxu0 0.0
    %1188 = vmatpush1.msra.mxu0 %v1179
    %1189 = vmatprep.subr.mxu0 0.0
    %1190 = vmatpush1.msra.mxu0 0.0
    %1191 = vmatprep.subr.mxu0 0.0
    %1192 = vmatpush1.msra.mxu0 0.0
    %1193 = vmatprep.subr.mxu0 0.0
    %1194 = vmatpush1.msra.mxu0 0.0
    %1195 = vmatprep.subr.mxu0 0.0
    %1196 = vmatpush1.msra.mxu0 0.0
    %1197 = vmatprep.subr.mxu0 0.0
    %1198 = vmatpush1.msra.mxu0 0.0
    %1199 = vmatprep.subr.mxu0 0.0
    %1200 = vmatpush1.msra.mxu0 0.0
    %1201 = vmatprep.subr.mxu0 0.0
    %1202 = vmatpush1.msra.mxu0 0.0
    %1203 = vmatprep.subr.mxu0 0.0
    %1204 = vmatpush1.msra.mxu0 0.0
    %1205 = vmatprep.subr.mxu0 0.0
    %1206 = vmatpush1.msra.mxu0 0.0
    %1207 = vmatprep.subr.mxu0 0.0
    %1208 = vmatpush1.msra.mxu0 0.0
    %1209 = vmatprep.subr.mxu0 0.0
    %1210 = vmatpush1.msra.mxu0 0.0
    %1211 = vmatprep.subr.mxu0 0.0
    %1212 = vmatpush1.msra.mxu0 0.0
    %1213 = vmatprep.subr.mxu0 0.0
    %1214 = vmatpush1.msra.mxu0 0.0
    %1215 = vmatprep.subr.mxu0 0.0
    %1216 = vmatpush1.msra.mxu0 0.0
    %1217 = vmatprep.subr.mxu0 0.0
    %1218 = vmatpush1.msra.mxu0 0.0
    %1219 = vmatprep.subr.mxu0 0.0
    %1220 = vmatpush1.msra.mxu0 0.0
    %1221 = vmatprep.subr.mxu0 0.0
    %1222 = vmatpush1.msra.mxu0 0.0
    %1223 = vmatprep.subr.mxu0 0.0
    %1224 = vmatpush1.msra.mxu0 0.0
    %1225 = vmatprep.subr.mxu0 0.0
    %1226 = vmatpush1.msra.mxu0 0.0
    %1227 = vmatprep.subr.mxu0 0.0
    %1228 = vmatpush1.msra.mxu0 0.0
    %1229 = vmatprep.subr.mxu0 0.0
    %1230 = vmatpush1.msra.mxu0 0.0
    %1231 = vmatprep.subr.mxu0 0.0
    %1232 = vmatpush1.msra.mxu0 0.0
    %1233 = vmatprep.subr.mxu0 0.0
    %1234 = vmatpush1.msra.mxu0 0.0
    %1235 = vmatprep.subr.mxu0 0.0
    %1236 = vmatpush1.msra.mxu0 0.0
    %1237 = vmatprep.subr.mxu0 0.0
    %1238 = vmatpush1.msra.mxu0 0.0
    %1239 = vmatprep.subr.mxu0 0.0
    %1240 = vmatpush1.msra.mxu0 0.0
    %1241 = vmatprep.subr.mxu0 0.0
    %1242 = vmatpush1.msra.mxu0 0.0
    %1243 = vmatprep.subr.mxu0 0.0
    %1244 = vmatpush1.msra.mxu0 0.0
    %1245 = vmatprep.mubr.f32.mxu0 0.0
    %1246 = vmatmul.mubr.f32.gmra.mrb[0].mxu0 %v145
    %v1247 = vpop.f32.mrb[0].mxu0
    %v1248 = vadd.f32 %v141, %v1247
    %v1249 = vpop.f32.mrb[0].mxu0
    %1250 = vdwg.mxu0
    %v1251 = vmax.f32 %v1248, 0.0
    %1252 = vmatprep.subr.mxu0 0.0
    %1253 = vmatpush1.msra.mxu0 %v1251
    %1254 = vmatprep.subr.mxu0 0.0
    %1255 = vmatpush1.msra.mxu0 0.0
    %1256 = vmatprep.subr.mxu0 0.0
    %1257 = vmatpush1.msra.mxu0 0.0
    %1258 = vmatprep.subr.mxu0 0.0
    %1259 = vmatpush1.msra.mxu0 0.0
    %1260 = vmatprep.subr.mxu0 0.0
    %1261 = vmatpush1.msra.mxu0 0.0
    %1262 = vmatprep.subr.mxu0 0.0
    %1263 = vmatpush1.msra.mxu0 0.0
    %1264 = vmatprep.subr.mxu0 0.0
    %1265 = vmatpush1.msra.mxu0 0.0
    %1266 = vmatprep.subr.mxu0 0.0
    %1267 = vmatpush1.msra.mxu0 0.0
    %1268 = vmatprep.subr.mxu0 0.0
    %1269 = vmatpush1.msra.mxu0 0.0
    %1270 = vmatprep.subr.mxu0 0.0
    %1271 = vmatpush1.msra.mxu0 0.0
    %1272 = vmatprep.subr.mxu0 0.0
    %1273 = vmatpush1.msra.mxu0 0.0
    %1274 = vmatprep.subr.mxu0 0.0
    %1275 = vmatpush1.msra.mxu0 0.0
    %1276 = vmatprep.subr.mxu0 0.0
    %1277 = vmatpush1.msra.mxu0 0.0
    %1278 = vmatprep.subr.mxu0 0.0
    %1279 = vmatpush1.msra.mxu0 0.0
    %1280 = vmatprep.subr.mxu0 0.0
    %1281 = vmatpush1.msra.mxu0 0.0
    %1282 = vmatprep.subr.mxu0 0.0
    %1283 = vmatpush1.msra.mxu0 0.0
    %1284 = vmatprep.subr.mxu0 0.0
    %1285 = vmatpush1.msra.mxu0 0.0
    %1286 = vmatprep.subr.mxu0 0.0
    %1287 = vmatpush1.msra.mxu0 0.0
    %1288 = vmatprep.subr.mxu0 0.0
    %1289 = vmatpush1.msra.mxu0 0.0
    %1290 = vmatprep.subr.mxu0 0.0
    %1291 = vmatpush1.msra.mxu0 0.0
    %1292 = vmatprep.subr.mxu0 0.0
    %1293 = vmatpush1.msra.mxu0 0.0
    %1294 = vmatprep.subr.mxu0 0.0
    %1295 = vmatpush1.msra.mxu0 0.0
    %1296 = vmatprep.subr.mxu0 0.0
    %1297 = vmatpush1.msra.mxu0 0.0
    %1298 = vmatprep.subr.mxu0 0.0
    %1299 = vmatpush1.msra.mxu0 0.0
    %1300 = vmatprep.subr.mxu0 0.0
    %1301 = vmatpush1.msra.mxu0 0.0
    %1302 = vmatprep.subr.mxu0 0.0
    %1303 = vmatpush1.msra.mxu0 0.0
    %1304 = vmatprep.subr.mxu0 0.0
    %1305 = vmatpush1.msra.mxu0 0.0
    %1306 = vmatprep.subr.mxu0 0.0
    %1307 = vmatpush1.msra.mxu0 0.0
    %1308 = vmatprep.subr.mxu0 0.0
    %1309 = vmatpush1.msra.mxu0 0.0
    %1310 = vmatprep.subr.mxu0 0.0
    %1311 = vmatpush1.msra.mxu0 0.0
    %1312 = vmatprep.subr.mxu0 0.0
    %1313 = vmatpush1.msra.mxu0 0.0
    %1314 = vmatprep.subr.mxu0 0.0
    %1315 = vmatpush1.msra.mxu0 0.0
    %1316 = vmatprep.mubr.f32.mxu0 0.0
    %1317 = vmatmul.mubr.f32.gmra.mrb[0].mxu0 %v264
    %v1318 = vpop.f32.mrb[0].mxu0
    %v1319 = vadd.f32 %v225, %v1318
    %v1320 = vpop.f32.mrb[0].mxu0
    %1321 = vmatprep.mubr.f32.mxu0 0.0
    %1322 = vmatmul.mubr.f32.gmra.mrb[0].mxu0 %v267
    %v1323 = vpop.f32.mrb[0].mxu0
    %v1324 = vadd.f32 %v230, %v1323
    %v1325 = vpop.f32.mrb[0].mxu0
    %1326 = vmatprep.mubr.f32.mxu0 0.0
    %1327 = vmatmul.mubr.f32.gmra.mrb[0].mxu0 %v270
    %v1328 = vpop.f32.mrb[0].mxu0
    %v1329 = vadd.f32 %v235, %v1328
    %v1330 = vpop.f32.mrb[0].mxu0
    %1331 = vmatprep.mubr.f32.mxu0 0.0
    %1332 = vmatmul.mubr.f32.gmra.mrb[0].mxu0 %v273
    %v1333 = vpop.f32.mrb[0].mxu0
    %v1334 = vadd.f32 %v240, %v1333
    %v1335 = vpop.f32.mrb[0].mxu0
    %1336 = vmatprep.mubr.f32.mxu0 0.0
    %1337 = vmatmul.mubr.f32.gmra.mrb[0].mxu0 %v276
    %v1338 = vpop.f32.mrb[0].mxu0
    %v1339 = vadd.f32 %v245, %v1338
    %v1340 = vpop.f32.mrb[0].mxu0
    %1341 = vmatprep.mubr.f32.mxu0 0.0
    %1342 = vmatmul.mubr.f32.gmra.mrb[0].mxu0 %v279
    %v1343 = vpop.f32.mrb[0].mxu0
    %v1344 = vadd.f32 %v250, %v1343
    %v1345 = vpop.f32.mrb[0].mxu0
    %1346 = vmatprep.mubr.f32.mxu0 0.0
    %1347 = vmatmul.mubr.f32.gmra.mrb[0].mxu0 %v282
    %v1348 = vpop.f32.mrb[0].mxu0
    %v1349 = vadd.f32 %v255, %v1348
    %v1350 = vpop.f32.mrb[0].mxu0
    %1351 = vmatprep.mubr.f32.mxu0 0.0
    %1352 = vmatmul.mubr.f32.gmra.mrb[0].mxu0 %v285
    %v1353 = vpop.f32.mrb[0].mxu0
    %v1354 = vadd.f32 %v260, %v1353
    %v1355 = vpop.f32.mrb[0].mxu0
    %1356 = vdwg.mxu0
    %s1357 = scalar_lea.vmem [#allocation2], 320
    %1358 = vst.msk [vmem:[%s1357] sm:$0xff] %vm392, %v1319
    %1359 = vst.msk [vmem:[%s1357 + $0x8] sm:$0xff] %vm392, %v1324
    %1360 = vst.msk [vmem:[%s1357 + $0x10] sm:$0xff] %vm392, %v1329
    %1361 = vst.msk [vmem:[%s1357 + $0x18] sm:$0xff] %vm392, %v1334
    %1362 = vst.msk [vmem:[%s1357 + $0x20] sm:$0xff] %vm392, %v1339
    %1363 = vst.msk [vmem:[%s1357 + $0x28] sm:$0xff] %vm392, %v1344
    %1364 = vst.msk [vmem:[%s1357 + $0x30] sm:$0xff] %vm392, %v1349
    %1365 = vst.msk [vmem:[%s1357 + $0x38] sm:$0xff] %vm392, %v1354
    %s1366 = scalar_lea.vmem %s0, 192
    %v1367 = vld [vmem:[%s1366] sm:$0xff]
    %v1368 = vld [vmem:[%s1366 + $0x8] sm:$0xff]
    %v1369 = vld [vmem:[%s1366 + $0x10] sm:$0xff]
    %v1370 = vld [vmem:[%s1366 + $0x18] sm:$0xf]
    %v1372 = vsel %vm147, %v1370, 0
    %1374 = vmatprep.subr.mxu0 0.0
    %1375 = vmatpush1.msra.mxu0 %v1367
    %1376 = vmatprep.subr.mxu0 0.0
    %1377 = vmatpush1.msra.mxu0 %v1368
    %1378 = vmatprep.subr.mxu0 0.0
    %1379 = vmatpush1.msra.mxu0 %v1369
    %1380 = vmatprep.subr.mxu0 0.0
    %1381 = vmatpush1.msra.mxu0 %v1372
    %1382 = vmatprep.subr.mxu0 0.0
    %1383 = vmatpush1.msra.mxu0 0.0
    %1384 = vmatprep.subr.mxu0 0.0
    %1385 = vmatpush1.msra.mxu0 0.0
    %1386 = vmatprep.subr.mxu0 0.0
    %1387 = vmatpush1.msra.mxu0 0.0
    %1388 = vmatprep.subr.mxu0 0.0
    %1389 = vmatpush1.msra.mxu0 0.0
    %1390 = vmatprep.subr.mxu0 0.0
    %1391 = vmatpush1.msra.mxu0 0.0
    %1392 = vmatprep.subr.mxu0 0.0
    %1393 = vmatpush1.msra.mxu0 0.0
    %1394 = vmatprep.subr.mxu0 0.0
    %1395 = vmatpush1.msra.mxu0 0.0
    %1396 = vmatprep.subr.mxu0 0.0
    %1397 = vmatpush1.msra.mxu0 0.0
    %1398 = vmatprep.subr.mxu0 0.0
    %1399 = vmatpush1.msra.mxu0 0.0
    %1400 = vmatprep.subr.mxu0 0.0
    %1401 = vmatpush1.msra.mxu0 0.0
    %1402 = vmatprep.subr.mxu0 0.0
    %1403 = vmatpush1.msra.mxu0 0.0
    %1404 = vmatprep.subr.mxu0 0.0
    %1405 = vmatpush1.msra.mxu0 0.0
    %1406 = vmatprep.subr.mxu0 0.0
    %1407 = vmatpush1.msra.mxu0 0.0
    %1408 = vmatprep.subr.mxu0 0.0
    %1409 = vmatpush1.msra.mxu0 0.0
    %1410 = vmatprep.subr.mxu0 0.0
    %1411 = vmatpush1.msra.mxu0 0.0
    %1412 = vmatprep.subr.mxu0 0.0
    %1413 = vmatpush1.msra.mxu0 0.0
    %1414 = vmatprep.subr.mxu0 0.0
    %1415 = vmatpush1.msra.mxu0 0.0
    %1416 = vmatprep.subr.mxu0 0.0
    %1417 = vmatpush1.msra.mxu0 0.0
    %1418 = vmatprep.subr.mxu0 0.0
    %1419 = vmatpush1.msra.mxu0 0.0
    %1420 = vmatprep.subr.mxu0 0.0
    %1421 = vmatpush1.msra.mxu0 0.0
    %1422 = vmatprep.subr.mxu0 0.0
    %1423 = vmatpush1.msra.mxu0 0.0
    %1424 = vmatprep.subr.mxu0 0.0
    %1425 = vmatpush1.msra.mxu0 0.0
    %1426 = vmatprep.subr.mxu0 0.0
    %1427 = vmatpush1.msra.mxu0 0.0
    %1428 = vmatprep.subr.mxu0 0.0
    %1429 = vmatpush1.msra.mxu0 0.0
    %1430 = vmatprep.subr.mxu0 0.0
    %1431 = vmatpush1.msra.mxu0 0.0
    %1432 = vmatprep.subr.mxu0 0.0
    %1433 = vmatpush1.msra.mxu0 0.0
    %1434 = vmatprep.subr.mxu0 0.0
    %1435 = vmatpush1.msra.mxu0 0.0
    %1436 = vmatprep.subr.mxu0 0.0
    %1437 = vmatpush1.msra.mxu0 0.0
    %1438 = vmatprep.mubr.f32.mxu0 0.0
    %1439 = vmatmul.mubr.f32.gmra.mrb[0].mxu0 %v145
    %v1440 = vpop.f32.mrb[0].mxu0
    %v1441 = vadd.f32 %v141, %v1440
    %v1442 = vpop.f32.mrb[0].mxu0
    %1443 = vdwg.mxu0
    %v1444 = vmax.f32 %v1441, 0.0
    %1445 = vmatprep.subr.mxu0 0.0
    %1446 = vmatpush1.msra.mxu0 %v1444
    %1447 = vmatprep.subr.mxu0 0.0
    %1448 = vmatpush1.msra.mxu0 0.0
    %1449 = vmatprep.subr.mxu0 0.0
    %1450 = vmatpush1.msra.mxu0 0.0
    %1451 = vmatprep.subr.mxu0 0.0
    %1452 = vmatpush1.msra.mxu0 0.0
    %1453 = vmatprep.subr.mxu0 0.0
    %1454 = vmatpush1.msra.mxu0 0.0
    %1455 = vmatprep.subr.mxu0 0.0
    %1456 = vmatpush1.msra.mxu0 0.0
    %1457 = vmatprep.subr.mxu0 0.0
    %1458 = vmatpush1.msra.mxu0 0.0
    %1459 = vmatprep.subr.mxu0 0.0
    %1460 = vmatpush1.msra.mxu0 0.0
    %1461 = vmatprep.subr.mxu0 0.0
    %1462 = vmatpush1.msra.mxu0 0.0
    %1463 = vmatprep.subr.mxu0 0.0
    %1464 = vmatpush1.msra.mxu0 0.0
    %1465 = vmatprep.subr.mxu0 0.0
    %1466 = vmatpush1.msra.mxu0 0.0
    %1467 = vmatprep.subr.mxu0 0.0
    %1468 = vmatpush1.msra.mxu0 0.0
    %1469 = vmatprep.subr.mxu0 0.0
    %1470 = vmatpush1.msra.mxu0 0.0
    %1471 = vmatprep.subr.mxu0 0.0
    %1472 = vmatpush1.msra.mxu0 0.0
    %1473 = vmatprep.subr.mxu0 0.0
    %1474 = vmatpush1.msra.mxu0 0.0
    %1475 = vmatprep.subr.mxu0 0.0
    %1476 = vmatpush1.msra.mxu0 0.0
    %1477 = vmatprep.subr.mxu0 0.0
    %1478 = vmatpush1.msra.mxu0 0.0
    %1479 = vmatprep.subr.mxu0 0.0
    %1480 = vmatpush1.msra.mxu0 0.0
    %1481 = vmatprep.subr.mxu0 0.0
    %1482 = vmatpush1.msra.mxu0 0.0
    %1483 = vmatprep.subr.mxu0 0.0
    %1484 = vmatpush1.msra.mxu0 0.0
    %1485 = vmatprep.subr.mxu0 0.0
    %1486 = vmatpush1.msra.mxu0 0.0
    %1487 = vmatprep.subr.mxu0 0.0
    %1488 = vmatpush1.msra.mxu0 0.0
    %1489 = vmatprep.subr.mxu0 0.0
    %1490 = vmatpush1.msra.mxu0 0.0
    %1491 = vmatprep.subr.mxu0 0.0
    %1492 = vmatpush1.msra.mxu0 0.0
    %1493 = vmatprep.subr.mxu0 0.0
    %1494 = vmatpush1.msra.mxu0 0.0
    %1495 = vmatprep.subr.mxu0 0.0
    %1496 = vmatpush1.msra.mxu0 0.0
    %1497 = vmatprep.subr.mxu0 0.0
    %1498 = vmatpush1.msra.mxu0 0.0
    %1499 = vmatprep.subr.mxu0 0.0
    %1500 = vmatpush1.msra.mxu0 0.0
    %1501 = vmatprep.subr.mxu0 0.0
    %1502 = vmatpush1.msra.mxu0 0.0
    %1503 = vmatprep.subr.mxu0 0.0
    %1504 = vmatpush1.msra.mxu0 0.0
    %1505 = vmatprep.subr.mxu0 0.0
    %1506 = vmatpush1.msra.mxu0 0.0
    %1507 = vmatprep.subr.mxu0 0.0
    %1508 = vmatpush1.msra.mxu0 0.0
    %1509 = vmatprep.mubr.f32.mxu0 0.0
    %1510 = vmatmul.mubr.f32.gmra.mrb[0].mxu0 %v264
    %v1511 = vpop.f32.mrb[0].mxu0
    %v1512 = vadd.f32 %v225, %v1511
    %v1513 = vpop.f32.mrb[0].mxu0
    %1514 = vmatprep.mubr.f32.mxu0 0.0
    %1515 = vmatmul.mubr.f32.gmra.mrb[0].mxu0 %v267
    %v1516 = vpop.f32.mrb[0].mxu0
    %v1517 = vadd.f32 %v230, %v1516
    %v1518 = vpop.f32.mrb[0].mxu0
    %1519 = vmatprep.mubr.f32.mxu0 0.0
    %1520 = vmatmul.mubr.f32.gmra.mrb[0].mxu0 %v270
    %v1521 = vpop.f32.mrb[0].mxu0
    %v1522 = vadd.f32 %v235, %v1521
    %v1523 = vpop.f32.mrb[0].mxu0
    %1524 = vmatprep.mubr.f32.mxu0 0.0
    %1525 = vmatmul.mubr.f32.gmra.mrb[0].mxu0 %v273
    %v1526 = vpop.f32.mrb[0].mxu0
    %v1527 = vadd.f32 %v240, %v1526
    %v1528 = vpop.f32.mrb[0].mxu0
    %1529 = vmatprep.mubr.f32.mxu0 0.0
    %1530 = vmatmul.mubr.f32.gmra.mrb[0].mxu0 %v276
    %v1531 = vpop.f32.mrb[0].mxu0
    %v1532 = vadd.f32 %v245, %v1531
    %v1533 = vpop.f32.mrb[0].mxu0
    %1534 = vmatprep.mubr.f32.mxu0 0.0
    %1535 = vmatmul.mubr.f32.gmra.mrb[0].mxu0 %v279
    %v1536 = vpop.f32.mrb[0].mxu0
    %v1537 = vadd.f32 %v250, %v1536
    %v1538 = vpop.f32.mrb[0].mxu0
    %1539 = vmatprep.mubr.f32.mxu0 0.0
    %1540 = vmatmul.mubr.f32.gmra.mrb[0].mxu0 %v282
    %v1541 = vpop.f32.mrb[0].mxu0
    %v1542 = vadd.f32 %v255, %v1541
    %v1543 = vpop.f32.mrb[0].mxu0
    %1544 = vmatprep.mubr.f32.mxu0 0.0
    %1545 = vmatmul.mubr.f32.gmra.mrb[0].mxu0 %v285
    %v1546 = vpop.f32.mrb[0].mxu0
    %v1547 = vadd.f32 %v260, %v1546
    %v1548 = vpop.f32.mrb[0].mxu0
    %1549 = vdwg.mxu0
    %s1550 = scalar_lea.vmem [#allocation2], 384
    %1551 = vst.msk [vmem:[%s1550] sm:$0xff] %vm392, %v1512
    %1552 = vst.msk [vmem:[%s1550 + $0x8] sm:$0xff] %vm392, %v1517
    %1553 = vst.msk [vmem:[%s1550 + $0x10] sm:$0xff] %vm392, %v1522
    %1554 = vst.msk [vmem:[%s1550 + $0x18] sm:$0xff] %vm392, %v1527
    %1555 = vst.msk [vmem:[%s1550 + $0x20] sm:$0xff] %vm392, %v1532
    %1556 = vst.msk [vmem:[%s1550 + $0x28] sm:$0xff] %vm392, %v1537
    %1557 = vst.msk [vmem:[%s1550 + $0x30] sm:$0xff] %vm392, %v1542
    %1558 = vst.msk [vmem:[%s1550 + $0x38] sm:$0xff] %vm392, %v1547
    %v1559 = vld [vmem:[%s8] sm:$0xff]
    %v1560 = vld [vmem:[%s8 + $0x8] sm:$0xff]
    %s1561 = scalar_lea.vmem %s8, 16
    %v1562 = vld [vmem:[%s1561] sm:$0xff]
    %v1563 = vld [vmem:[%s1561 + $0x8] sm:$0xff]
    %vm1564 = vcmask 130048
    %v1566 = vsel %vm1564, %v57, 0
    %v1569 = vsel %vm1564, %v58, 0
    %v1572 = vsel %vm1564, %v59, 0
    %v1575 = vsel %vm1564, %v60, 0
    %v1578 = vsel %vm1564, %v61, 0
    %v1581 = vsel %vm1564, %v62, 0
    %v1584 = vsel %vm1564, %v63, 0
    %v1587 = vsel %vm1564, %v64, 0
    %1589 = vmatprep.subr.mxu0 0.0
    %1590 = vmatpush1.msra.mxu0 %v1559
    %1591 = vmatprep.subr.mxu0 0.0
    %1592 = vmatpush1.msra.mxu0 %v1560
    %1593 = vmatprep.subr.mxu0 0.0
    %1594 = vmatpush1.msra.mxu0 0.0
    %1595 = vmatprep.subr.mxu0 0.0
    %1596 = vmatpush1.msra.mxu0 0.0
    %1597 = vmatprep.subr.mxu0 0.0
    %1598 = vmatpush1.msra.mxu0 0.0
    %1599 = vmatprep.subr.mxu0 0.0
    %1600 = vmatpush1.msra.mxu0 0.0
    %1601 = vmatprep.subr.mxu0 0.0
    %1602 = vmatpush1.msra.mxu0 0.0
    %1603 = vmatprep.subr.mxu0 0.0
    %1604 = vmatpush1.msra.mxu0 0.0
    %1605 = vmatprep.subr.mxu0 0.0
    %1606 = vmatpush1.msra.mxu0 0.0
    %1607 = vmatprep.subr.mxu0 0.0
    %1608 = vmatpush1.msra.mxu0 0.0
    %1609 = vmatprep.subr.mxu0 0.0
    %1610 = vmatpush1.msra.mxu0 0.0
    %1611 = vmatprep.subr.mxu0 0.0
    %1612 = vmatpush1.msra.mxu0 0.0
    %1613 = vmatprep.subr.mxu0 0.0
    %1614 = vmatpush1.msra.mxu0 0.0
    %1615 = vmatprep.subr.mxu0 0.0
    %1616 = vmatpush1.msra.mxu0 0.0
    %1617 = vmatprep.subr.mxu0 0.0
    %1618 = vmatpush1.msra.mxu0 0.0
    %1619 = vmatprep.subr.mxu0 0.0
    %1620 = vmatpush1.msra.mxu0 0.0
    %1621 = vmatprep.subr.mxu0 0.0
    %1622 = vmatpush1.msra.mxu0 0.0
    %1623 = vmatprep.subr.mxu0 0.0
    %1624 = vmatpush1.msra.mxu0 0.0
    %1625 = vmatprep.subr.mxu0 0.0
    %1626 = vmatpush1.msra.mxu0 0.0
    %1627 = vmatprep.subr.mxu0 0.0
    %1628 = vmatpush1.msra.mxu0 0.0
    %1629 = vmatprep.subr.mxu0 0.0
    %1630 = vmatpush1.msra.mxu0 0.0
    %1631 = vmatprep.subr.mxu0 0.0
    %1632 = vmatpush1.msra.mxu0 0.0
    %1633 = vmatprep.subr.mxu0 0.0
    %1634 = vmatpush1.msra.mxu0 0.0
    %1635 = vmatprep.subr.mxu0 0.0
    %1636 = vmatpush1.msra.mxu0 0.0
    %1637 = vmatprep.subr.mxu0 0.0
    %1638 = vmatpush1.msra.mxu0 0.0
    %1639 = vmatprep.subr.mxu0 0.0
    %1640 = vmatpush1.msra.mxu0 0.0
    %1641 = vmatprep.subr.mxu0 0.0
    %1642 = vmatpush1.msra.mxu0 0.0
    %1643 = vmatprep.subr.mxu0 0.0
    %1644 = vmatpush1.msra.mxu0 0.0
    %1645 = vmatprep.subr.mxu0 0.0
    %1646 = vmatpush1.msra.mxu0 0.0
    %1647 = vmatprep.subr.mxu0 0.0
    %1648 = vmatpush1.msra.mxu0 0.0
    %1649 = vmatprep.subr.mxu0 0.0
    %1650 = vmatpush1.msra.mxu0 0.0
    %1651 = vmatprep.subr.mxu0 0.0
    %1652 = vmatpush1.msra.mxu0 0.0
    %1653 = vmatprep.mubr.f32.mxu0 0.0
    %1654 = vmatmul.mubr.f32.gmra.mrb[0].mxu0 %v1566
    %v1655 = vpop.f32.mrb[0].mxu0
    %v1656 = vadd.f32 0.0, %v1655
    %v1657 = vpop.f32.mrb[0].mxu0
    %1658 = vmatprep.mubr.f32.mxu0 0.0
    %1659 = vmatmul.mubr.f32.gmra.mrb[0].mxu0 %v1569
    %v1660 = vpop.f32.mrb[0].mxu0
    %v1661 = vadd.f32 0.0, %v1660
    %v1662 = vpop.f32.mrb[0].mxu0
    %1663 = vmatprep.mubr.f32.mxu0 0.0
    %1664 = vmatmul.mubr.f32.gmra.mrb[0].mxu0 %v1572
    %v1665 = vpop.f32.mrb[0].mxu0
    %v1666 = vadd.f32 0.0, %v1665
    %v1667 = vpop.f32.mrb[0].mxu0
    %1668 = vmatprep.mubr.f32.mxu0 0.0
    %1669 = vmatmul.mubr.f32.gmra.mrb[0].mxu0 %v1575
    %v1670 = vpop.f32.mrb[0].mxu0
    %v1671 = vadd.f32 0.0, %v1670
    %v1672 = vpop.f32.mrb[0].mxu0
    %1673 = vmatprep.mubr.f32.mxu0 0.0
    %1674 = vmatmul.mubr.f32.gmra.mrb[0].mxu0 %v1578
    %v1675 = vpop.f32.mrb[0].mxu0
    %v1676 = vadd.f32 0.0, %v1675
    %v1677 = vpop.f32.mrb[0].mxu0
    %1678 = vmatprep.mubr.f32.mxu0 0.0
    %1679 = vmatmul.mubr.f32.gmra.mrb[0].mxu0 %v1581
    %v1680 = vpop.f32.mrb[0].mxu0
    %v1681 = vadd.f32 0.0, %v1680
    %v1682 = vpop.f32.mrb[0].mxu0
    %1683 = vmatprep.mubr.f32.mxu0 0.0
    %1684 = vmatmul.mubr.f32.gmra.mrb[0].mxu0 %v1584
    %v1685 = vpop.f32.mrb[0].mxu0
    %v1686 = vadd.f32 0.0, %v1685
    %v1687 = vpop.f32.mrb[0].mxu0
    %1688 = vmatprep.mubr.f32.mxu0 0.0
    %1689 = vmatmul.mubr.f32.gmra.mrb[0].mxu0 %v1587
    %v1690 = vpop.f32.mrb[0].mxu0
    %v1691 = vadd.f32 0.0, %v1690
    %v1692 = vpop.f32.mrb[0].mxu0
    %1693 = vdwg.mxu0
    %v1694 = vld [vmem:[#allocation2] sm:$0xff]
    %v1695 = vld [vmem:[#allocation2 + $0x8] sm:$0xff]
    %v1696 = vld [vmem:[#allocation2 + $0x10] sm:$0xff]
    %v1697 = vld [vmem:[#allocation2 + $0x18] sm:$0xff]
    %v1698 = vld [vmem:[#allocation2 + $0x20] sm:$0xff]
    %v1699 = vld [vmem:[#allocation2 + $0x28] sm:$0xff]
    %v1700 = vld [vmem:[#allocation2 + $0x30] sm:$0xff]
    %v1701 = vld [vmem:[#allocation2 + $0x38] sm:$0xff]
    %v1702 = vadd.f32 %v1694, %v1656
    %v1703 = vadd.f32 %v1695, %v1661
    %v1704 = vadd.f32 %v1696, %v1666
    %v1705 = vadd.f32 %v1697, %v1671
    %v1706 = vadd.f32 %v1698, %v1676
    %v1707 = vadd.f32 %v1699, %v1681
    %v1708 = vadd.f32 %v1700, %v1686
    %v1709 = vadd.f32 %v1701, %v1691
    %v1710 = vtanh.pop %v1702
    %v1711 = vtanh.pop %v1703
    %v1712 = vtanh.pop %v1704
    %v1713 = vtanh.pop %v1705
    %v1714 = vtanh.pop %v1706
    %v1715 = vtanh.pop %v1707
    %v1716 = vtanh.pop %v1708
    %v1717 = vtanh.pop %v1709
    %v1718 = vmul.f32 %v1710, %v118
    %v1719 = vmul.f32 %v1711, %v119
    %v1720 = vmul.f32 %v1712, %v120
    %v1721 = vmul.f32 %v1713, %v121
    %v1722 = vmul.f32 %v1714, %v122
    %v1723 = vmul.f32 %v1715, %v123
    %v1724 = vmul.f32 %v1716, %v124
    %v1725 = vmul.f32 %v1717, %v125
    %v1726 = vadd.f32 %v1718, %v126
    %v1727 = vadd.f32 %v1719, %v127
    %v1728 = vadd.f32 %v1720, %v128
    %v1729 = vadd.f32 %v1721, %v129
    %v1730 = vadd.f32 %v1722, %v130
    %v1731 = vadd.f32 %v1723, %v131
    %v1732 = vadd.f32 %v1724, %v132
    %v1733 = vadd.f32 %v1725, %v133
    %v1734 = vmul.f32 %v1728, %v1559
    %v1735 = vmul.f32 %v1729, %v1560
    %v1736 = vmul.f32 %v1726, %v1732
    %v1737 = vmul.f32 %v1727, %v1733
    %v1738 = vadd.f32 %v1734, %v1736
    %v1739 = vadd.f32 %v1735, %v1737
    %v1740 = vtanh.pop %v1738
    %v1741 = vtanh.pop %v1739
    %v1742 = vmul.f32 %v1730, %v1740
    %v1743 = vmul.f32 %v1731, %v1741
    %vm1744 = vcmask 261120
    %v1746 = vsel %vm1744, %v73, 0
    %v1749 = vsel %vm1744, %v74, 0
    %v1752 = vsel %vm1744, %v75, 0
    %v1755 = vsel %vm1744, %v76, 0
    %v1758 = vsel %vm1744, %v77, 0
    %v1761 = vsel %vm1744, %v78, 0
    %v1764 = vsel %vm1744, %v79, 0
    %v1767 = vsel %vm1744, %v80, 0
    %v1770 = vsel %vm1744, %v81, 0
    %v1773 = vsel %vm1744, %v82, 0
    %v1776 = vsel %vm1744, %v83, 0
    %v1779 = vsel %vm1744, %v84, 0
    %v1782 = vsel %vm1744, %v85, 0
    %v1785 = vsel %vm1744, %v86, 0
    %v1788 = vsel %vm1744, %v87, 0
    %v1791 = vsel %vm1744, %v88, 0
    %1793 = vmatprep.subr.mxu0 0.0
    %1794 = vmatpush1.msra.mxu0 %v1742
    %1795 = vmatprep.subr.mxu0 0.0
    %1796 = vmatpush1.msra.mxu0 %v1743
    %1797 = vmatprep.subr.mxu0 0.0
    %1798 = vmatpush1.msra.mxu0 %v1562
    %1799 = vmatprep.subr.mxu0 0.0
    %1800 = vmatpush1.msra.mxu0 %v1563
    %1801 = vmatprep.subr.mxu0 0.0
    %1802 = vmatpush1.msra.mxu0 0.0
    %1803 = vmatprep.subr.mxu0 0.0
    %1804 = vmatpush1.msra.mxu0 0.0
    %1805 = vmatprep.subr.mxu0 0.0
    %1806 = vmatpush1.msra.mxu0 0.0
    %1807 = vmatprep.subr.mxu0 0.0
    %1808 = vmatpush1.msra.mxu0 0.0
    %1809 = vmatprep.subr.mxu0 0.0
    %1810 = vmatpush1.msra.mxu0 0.0
    %1811 = vmatprep.subr.mxu0 0.0
    %1812 = vmatpush1.msra.mxu0 0.0
    %1813 = vmatprep.subr.mxu0 0.0
    %1814 = vmatpush1.msra.mxu0 0.0
    %1815 = vmatprep.subr.mxu0 0.0
    %1816 = vmatpush1.msra.mxu0 0.0
    %1817 = vmatprep.subr.mxu0 0.0
    %1818 = vmatpush1.msra.mxu0 0.0
    %1819 = vmatprep.subr.mxu0 0.0
    %1820 = vmatpush1.msra.mxu0 0.0
    %1821 = vmatprep.subr.mxu0 0.0
    %1822 = vmatpush1.msra.mxu0 0.0
    %1823 = vmatprep.subr.mxu0 0.0
    %1824 = vmatpush1.msra.mxu0 0.0
    %1825 = vmatprep.subr.mxu0 0.0
    %1826 = vmatpush1.msra.mxu0 0.0
    %1827 = vmatprep.subr.mxu0 0.0
    %1828 = vmatpush1.msra.mxu0 0.0
    %1829 = vmatprep.subr.mxu0 0.0
    %1830 = vmatpush1.msra.mxu0 0.0
    %1831 = vmatprep.subr.mxu0 0.0
    %1832 = vmatpush1.msra.mxu0 0.0
    %1833 = vmatprep.subr.mxu0 0.0
    %1834 = vmatpush1.msra.mxu0 0.0
    %1835 = vmatprep.subr.mxu0 0.0
    %1836 = vmatpush1.msra.mxu0 0.0
    %1837 = vmatprep.subr.mxu0 0.0
    %1838 = vmatpush1.msra.mxu0 0.0
    %1839 = vmatprep.subr.mxu0 0.0
    %1840 = vmatpush1.msra.mxu0 0.0
    %1841 = vmatprep.subr.mxu0 0.0
    %1842 = vmatpush1.msra.mxu0 0.0
    %1843 = vmatprep.subr.mxu0 0.0
    %1844 = vmatpush1.msra.mxu0 0.0
    %1845 = vmatprep.subr.mxu0 0.0
    %1846 = vmatpush1.msra.mxu0 0.0
    %1847 = vmatprep.subr.mxu0 0.0
    %1848 = vmatpush1.msra.mxu0 0.0
    %1849 = vmatprep.subr.mxu0 0.0
    %1850 = vmatpush1.msra.mxu0 0.0
    %1851 = vmatprep.subr.mxu0 0.0
    %1852 = vmatpush1.msra.mxu0 0.0
    %1853 = vmatprep.subr.mxu0 0.0
    %1854 = vmatpush1.msra.mxu0 0.0
    %1855 = vmatprep.subr.mxu0 0.0
    %1856 = vmatpush1.msra.mxu0 0.0
    %1857 = vmatprep.mubr.f32.mxu0 0.0
    %1858 = vmatmul.mubr.f32.gmra.mrb[0].mxu0 %v1746
    %v1859 = vpop.f32.mrb[0].mxu0
    %v1860 = vadd.f32 0.0, %v1859
    %v1861 = vpop.f32.mrb[0].mxu0
    %1862 = vmatprep.mubr.f32.mxu0 0.0
    %1863 = vmatmul.mubr.f32.gmra.mrb[0].mxu0 %v1749
    %v1864 = vpop.f32.mrb[0].mxu0
    %v1865 = vadd.f32 0.0, %v1864
    %v1866 = vpop.f32.mrb[0].mxu0
    %1867 = vmatprep.mubr.f32.mxu0 0.0
    %1868 = vmatmul.mubr.f32.gmra.mrb[0].mxu0 %v1752
    %v1869 = vpop.f32.mrb[0].mxu0
    %v1870 = vadd.f32 0.0, %v1869
    %v1871 = vpop.f32.mrb[0].mxu0
    %1872 = vmatprep.mubr.f32.mxu0 0.0
    %1873 = vmatmul.mubr.f32.gmra.mrb[0].mxu0 %v1755
    %v1874 = vpop.f32.mrb[0].mxu0
    %v1875 = vadd.f32 0.0, %v1874
    %v1876 = vpop.f32.mrb[0].mxu0
    %1877 = vmatprep.mubr.f32.mxu0 0.0
    %1878 = vmatmul.mubr.f32.gmra.mrb[0].mxu0 %v1758
    %v1879 = vpop.f32.mrb[0].mxu0
    %v1880 = vadd.f32 0.0, %v1879
    %v1881 = vpop.f32.mrb[0].mxu0
    %1882 = vmatprep.mubr.f32.mxu0 0.0
    %1883 = vmatmul.mubr.f32.gmra.mrb[0].mxu0 %v1761
    %v1884 = vpop.f32.mrb[0].mxu0
    %v1885 = vadd.f32 0.0, %v1884
    %v1886 = vpop.f32.mrb[0].mxu0
    %1887 = vmatprep.mubr.f32.mxu0 0.0
    %1888 = vmatmul.mubr.f32.gmra.mrb[0].mxu0 %v1764
    %v1889 = vpop.f32.mrb[0].mxu0
    %v1890 = vadd.f32 0.0, %v1889
    %v1891 = vpop.f32.mrb[0].mxu0
    %1892 = vmatprep.mubr.f32.mxu0 0.0
    %1893 = vmatmul.mubr.f32.gmra.mrb[0].mxu0 %v1767
    %v1894 = vpop.f32.mrb[0].mxu0
    %v1895 = vadd.f32 0.0, %v1894
    %v1896 = vpop.f32.mrb[0].mxu0
    %1897 = vmatprep.mubr.f32.mxu0 0.0
    %1898 = vmatmul.mubr.f32.gmra.mrb[0].mxu0 %v1770
    %v1899 = vpop.f32.mrb[0].mxu0
    %v1900 = vadd.f32 0.0, %v1899
    %v1901 = vpop.f32.mrb[0].mxu0
    %1902 = vmatprep.mubr.f32.mxu0 0.0
    %1903 = vmatmul.mubr.f32.gmra.mrb[0].mxu0 %v1773
    %v1904 = vpop.f32.mrb[0].mxu0
    %v1905 = vadd.f32 0.0, %v1904
    %v1906 = vpop.f32.mrb[0].mxu0
    %1907 = vmatprep.mubr.f32.mxu0 0.0
    %1908 = vmatmul.mubr.f32.gmra.mrb[0].mxu0 %v1776
    %v1909 = vpop.f32.mrb[0].mxu0
    %v1910 = vadd.f32 0.0, %v1909
    %v1911 = vpop.f32.mrb[0].mxu0
    %1912 = vmatprep.mubr.f32.mxu0 0.0
    %1913 = vmatmul.mubr.f32.gmra.mrb[0].mxu0 %v1779
    %v1914 = vpop.f32.mrb[0].mxu0
    %v1915 = vadd.f32 0.0, %v1914
    %v1916 = vpop.f32.mrb[0].mxu0
    %1917 = vmatprep.mubr.f32.mxu0 0.0
    %1918 = vmatmul.mubr.f32.gmra.mrb[0].mxu0 %v1782
    %v1919 = vpop.f32.mrb[0].mxu0
    %v1920 = vadd.f32 0.0, %v1919
    %v1921 = vpop.f32.mrb[0].mxu0
    %1922 = vmatprep.mubr.f32.mxu0 0.0
    %1923 = vmatmul.mubr.f32.gmra.mrb[0].mxu0 %v1785
    %v1924 = vpop.f32.mrb[0].mxu0
    %v1925 = vadd.f32 0.0, %v1924
    %v1926 = vpop.f32.mrb[0].mxu0
    %1927 = vmatprep.mubr.f32.mxu0 0.0
    %1928 = vmatmul.mubr.f32.gmra.mrb[0].mxu0 %v1788
    %v1929 = vpop.f32.mrb[0].mxu0
    %v1930 = vadd.f32 0.0, %v1929
    %v1931 = vpop.f32.mrb[0].mxu0
    %1932 = vmatprep.mubr.f32.mxu0 0.0
    %1933 = vmatmul.mubr.f32.gmra.mrb[0].mxu0 %v1791
    %v1934 = vpop.f32.mrb[0].mxu0
    %v1935 = vadd.f32 0.0, %v1934
    %v1936 = vpop.f32.mrb[0].mxu0
    %1937 = vdwg.mxu0
    %1939 = vset.pattern.permute.xlu0 0
    %1940 = vperm.xlu0 %1939, %v89
    %v1941 = vpop.permute.xlu0 %1940
    %1944 = vset.pattern.permute.xlu0 0
    %1945 = vperm.xlu0 %1944, %v90
    %v1946 = vpop.permute.xlu0 %1945
    %1949 = vset.pattern.permute.xlu0 0
    %1950 = vperm.xlu0 %1949, %v91
    %v1951 = vpop.permute.xlu0 %1950
    %1954 = vset.pattern.permute.xlu0 0
    %1955 = vperm.xlu0 %1954, %v92
    %v1956 = vpop.permute.xlu0 %1955
    %1959 = vset.pattern.permute.xlu0 0
    %1960 = vperm.xlu0 %1959, %v93
    %v1961 = vpop.permute.xlu0 %1960
    %1964 = vset.pattern.permute.xlu0 0
    %1965 = vperm.xlu0 %1964, %v94
    %v1966 = vpop.permute.xlu0 %1965
    %1969 = vset.pattern.permute.xlu0 0
    %1970 = vperm.xlu0 %1969, %v95
    %v1971 = vpop.permute.xlu0 %1970
    %1974 = vset.pattern.permute.xlu0 0
    %1975 = vperm.xlu0 %1974, %v96
    %v1976 = vpop.permute.xlu0 %1975
    %v1978 = vadd.f32 %v1860, %v1941
    %v1979 = vadd.f32 %v1865, %v1946
    %v1980 = vadd.f32 %v1870, %v1951
    %v1981 = vadd.f32 %v1875, %v1956
    %v1982 = vadd.f32 %v1880, %v1961
    %v1983 = vadd.f32 %v1885, %v1966
    %v1984 = vadd.f32 %v1890, %v1971
    %v1985 = vadd.f32 %v1895, %v1976
    %v1986 = vtanh.pop %v1978
    %v1987 = vtanh.pop %v1979
    %v1988 = vtanh.pop %v1980
    %v1989 = vtanh.pop %v1981
    %v1990 = vtanh.pop %v1982
    %v1991 = vtanh.pop %v1983
    %v1992 = vtanh.pop %v1984
    %v1993 = vtanh.pop %v1985
    %v1994 = vmul.f32 %v1986, %v118
    %v1995 = vmul.f32 %v1987, %v119
    %v1996 = vmul.f32 %v1988, %v120
    %v1997 = vmul.f32 %v1989, %v121
    %v1998 = vmul.f32 %v1990, %v122
    %v1999 = vmul.f32 %v1991, %v123
    %v2000 = vmul.f32 %v1992, %v124
    %v2001 = vmul.f32 %v1993, %v125
    %v2002 = vadd.f32 %v1994, %v126
    %v2003 = vadd.f32 %v1995, %v127
    %v2004 = vadd.f32 %v1996, %v128
    %v2005 = vadd.f32 %v1997, %v129
    %v2006 = vadd.f32 %v1998, %v130
    %v2007 = vadd.f32 %v1999, %v131
    %v2008 = vadd.f32 %v2000, %v132
    %v2009 = vadd.f32 %v2001, %v133
    %v2010 = vmul.f32 %v2004, %v1562
    %v2011 = vmul.f32 %v2005, %v1563
    %v2012 = vmul.f32 %v2002, %v2008
    %v2013 = vmul.f32 %v2003, %v2009
    %v2014 = vadd.f32 %v2010, %v2012
    %v2015 = vadd.f32 %v2011, %v2013
    %v2016 = vtanh.pop %v2014
    %v2017 = vtanh.pop %v2015
    %v2018 = vmul.f32 %v2006, %v2016
    %v2019 = vmul.f32 %v2007, %v2017
    %v2020 = vld [vmem:[%s585] sm:$0xff]
    %v2021 = vld [vmem:[%s585 + $0x8] sm:$0xff]
    %v2022 = vld [vmem:[%s585 + $0x10] sm:$0xff]
    %v2023 = vld [vmem:[%s585 + $0x18] sm:$0xff]
    %v2024 = vld [vmem:[%s585 + $0x20] sm:$0xff]
    %v2025 = vld [vmem:[%s585 + $0x28] sm:$0xff]
    %v2026 = vld [vmem:[%s585 + $0x30] sm:$0xff]
    %v2027 = vld [vmem:[%s585 + $0x38] sm:$0xff]
    %v2028 = vadd.f32 %v2020, %v1900
    %v2029 = vadd.f32 %v2021, %v1905
    %v2030 = vadd.f32 %v2022, %v1910
    %v2031 = vadd.f32 %v2023, %v1915
    %v2032 = vadd.f32 %v2024, %v1920
    %v2033 = vadd.f32 %v2025, %v1925
    %v2034 = vadd.f32 %v2026, %v1930
    %v2035 = vadd.f32 %v2027, %v1935
    %v2036 = vtanh.pop %v2028
    %v2037 = vtanh.pop %v2029
    %v2038 = vtanh.pop %v2030
    %v2039 = vtanh.pop %v2031
    %v2040 = vtanh.pop %v2032
    %v2041 = vtanh.pop %v2033
    %v2042 = vtanh.pop %v2034
    %v2043 = vtanh.pop %v2035
    %v2044 = vmul.f32 %v2036, %v118
    %v2045 = vmul.f32 %v2037, %v119
    %v2046 = vmul.f32 %v2038, %v120
    %v2047 = vmul.f32 %v2039, %v121
    %v2048 = vmul.f32 %v2040, %v122
    %v2049 = vmul.f32 %v2041, %v123
    %v2050 = vmul.f32 %v2042, %v124
    %v2051 = vmul.f32 %v2043, %v125
    %v2052 = vadd.f32 %v2044, %v126
    %v2053 = vadd.f32 %v2045, %v127
    %v2054 = vadd.f32 %v2046, %v128
    %v2055 = vadd.f32 %v2047, %v129
    %v2056 = vadd.f32 %v2048, %v130
    %v2057 = vadd.f32 %v2049, %v131
    %v2058 = vadd.f32 %v2050, %v132
    %v2059 = vadd.f32 %v2051, %v133
    %v2060 = vmul.f32 %v2054, %v1738
    %v2061 = vmul.f32 %v2055, %v1739
    %v2062 = vmul.f32 %v2052, %v2058
    %v2063 = vmul.f32 %v2053, %v2059
    %v2064 = vadd.f32 %v2060, %v2062
    %v2065 = vadd.f32 %v2061, %v2063
    %v2066 = vtanh.pop %v2064
    %v2067 = vtanh.pop %v2065
    %v2068 = vmul.f32 %v2056, %v2066
    %v2069 = vmul.f32 %v2057, %v2067
    %2070 = vmatprep.subr.mxu0 0.0
    %2071 = vmatpush1.msra.mxu0 %v2068
    %2072 = vmatprep.subr.mxu0 0.0
    %2073 = vmatpush1.msra.mxu0 %v2069
    %2074 = vmatprep.subr.mxu0 0.0
    %2075 = vmatpush1.msra.mxu0 %v2018
    %2076 = vmatprep.subr.mxu0 0.0
    %2077 = vmatpush1.msra.mxu0 %v2019
    %2078 = vmatprep.subr.mxu0 0.0
    %2079 = vmatpush1.msra.mxu0 0.0
    %2080 = vmatprep.subr.mxu0 0.0
    %2081 = vmatpush1.msra.mxu0 0.0
    %2082 = vmatprep.subr.mxu0 0.0
    %2083 = vmatpush1.msra.mxu0 0.0
    %2084 = vmatprep.subr.mxu0 0.0
    %2085 = vmatpush1.msra.mxu0 0.0
    %2086 = vmatprep.subr.mxu0 0.0
    %2087 = vmatpush1.msra.mxu0 0.0
    %2088 = vmatprep.subr.mxu0 0.0
    %2089 = vmatpush1.msra.mxu0 0.0
    %2090 = vmatprep.subr.mxu0 0.0
    %2091 = vmatpush1.msra.mxu0 0.0
    %2092 = vmatprep.subr.mxu0 0.0
    %2093 = vmatpush1.msra.mxu0 0.0
    %2094 = vmatprep.subr.mxu0 0.0
    %2095 = vmatpush1.msra.mxu0 0.0
    %2096 = vmatprep.subr.mxu0 0.0
    %2097 = vmatpush1.msra.mxu0 0.0
    %2098 = vmatprep.subr.mxu0 0.0
    %2099 = vmatpush1.msra.mxu0 0.0
    %2100 = vmatprep.subr.mxu0 0.0
    %2101 = vmatpush1.msra.mxu0 0.0
    %2102 = vmatprep.subr.mxu0 0.0
    %2103 = vmatpush1.msra.mxu0 0.0
    %2104 = vmatprep.subr.mxu0 0.0
    %2105 = vmatpush1.msra.mxu0 0.0
    %2106 = vmatprep.subr.mxu0 0.0
    %2107 = vmatpush1.msra.mxu0 0.0
    %2108 = vmatprep.subr.mxu0 0.0
    %2109 = vmatpush1.msra.mxu0 0.0
    %2110 = vmatprep.subr.mxu0 0.0
    %2111 = vmatpush1.msra.mxu0 0.0
    %2112 = vmatprep.subr.mxu0 0.0
    %2113 = vmatpush1.msra.mxu0 0.0
    %2114 = vmatprep.subr.mxu0 0.0
    %2115 = vmatpush1.msra.mxu0 0.0
    %2116 = vmatprep.subr.mxu0 0.0
    %2117 = vmatpush1.msra.mxu0 0.0
    %2118 = vmatprep.subr.mxu0 0.0
    %2119 = vmatpush1.msra.mxu0 0.0
    %2120 = vmatprep.subr.mxu0 0.0
    %2121 = vmatpush1.msra.mxu0 0.0
    %2122 = vmatprep.subr.mxu0 0.0
    %2123 = vmatpush1.msra.mxu0 0.0
    %2124 = vmatprep.subr.mxu0 0.0
    %2125 = vmatpush1.msra.mxu0 0.0
    %2126 = vmatprep.subr.mxu0 0.0
    %2127 = vmatpush1.msra.mxu0 0.0
    %2128 = vmatprep.subr.mxu0 0.0
    %2129 = vmatpush1.msra.mxu0 0.0
    %2130 = vmatprep.subr.mxu0 0.0
    %2131 = vmatpush1.msra.mxu0 0.0
    %2132 = vmatprep.subr.mxu0 0.0
    %2133 = vmatpush1.msra.mxu0 0.0
    %2134 = vmatprep.mubr.f32.mxu0 0.0
    %2135 = vmatmul.mubr.f32.gmra.mrb[0].mxu0 %v1746
    %v2136 = vpop.f32.mrb[0].mxu0
    %v2137 = vadd.f32 0.0, %v2136
    %v2138 = vpop.f32.mrb[0].mxu0
    %2139 = vmatprep.mubr.f32.mxu0 0.0
    %2140 = vmatmul.mubr.f32.gmra.mrb[0].mxu0 %v1749
    %v2141 = vpop.f32.mrb[0].mxu0
    %v2142 = vadd.f32 0.0, %v2141
    %v2143 = vpop.f32.mrb[0].mxu0
    %2144 = vmatprep.mubr.f32.mxu0 0.0
    %2145 = vmatmul.mubr.f32.gmra.mrb[0].mxu0 %v1752
    %v2146 = vpop.f32.mrb[0].mxu0
    %v2147 = vadd.f32 0.0, %v2146
    %v2148 = vpop.f32.mrb[0].mxu0
    %2149 = vmatprep.mubr.f32.mxu0 0.0
    %2150 = vmatmul.mubr.f32.gmra.mrb[0].mxu0 %v1755
    %v2151 = vpop.f32.mrb[0].mxu0
    %v2152 = vadd.f32 0.0, %v2151
    %v2153 = vpop.f32.mrb[0].mxu0
    %2154 = vmatprep.mubr.f32.mxu0 0.0
    %2155 = vmatmul.mubr.f32.gmra.mrb[0].mxu0 %v1758
    %v2156 = vpop.f32.mrb[0].mxu0
    %v2157 = vadd.f32 0.0, %v2156
    %v2158 = vpop.f32.mrb[0].mxu0
    %2159 = vmatprep.mubr.f32.mxu0 0.0
    %2160 = vmatmul.mubr.f32.gmra.mrb[0].mxu0 %v1761
    %v2161 = vpop.f32.mrb[0].mxu0
    %v2162 = vadd.f32 0.0, %v2161
    %v2163 = vpop.f32.mrb[0].mxu0
    %2164 = vmatprep.mubr.f32.mxu0 0.0
    %2165 = vmatmul.mubr.f32.gmra.mrb[0].mxu0 %v1764
    %v2166 = vpop.f32.mrb[0].mxu0
    %v2167 = vadd.f32 0.0, %v2166
    %v2168 = vpop.f32.mrb[0].mxu0
    %2169 = vmatprep.mubr.f32.mxu0 0.0
    %2170 = vmatmul.mubr.f32.gmra.mrb[0].mxu0 %v1767
    %v2171 = vpop.f32.mrb[0].mxu0
    %v2172 = vadd.f32 0.0, %v2171
    %v2173 = vpop.f32.mrb[0].mxu0
    %2174 = vmatprep.mubr.f32.mxu0 0.0
    %2175 = vmatmul.mubr.f32.gmra.mrb[0].mxu0 %v1770
    %v2176 = vpop.f32.mrb[0].mxu0
    %v2177 = vadd.f32 0.0, %v2176
    %v2178 = vpop.f32.mrb[0].mxu0
    %2179 = vmatprep.mubr.f32.mxu0 0.0
    %2180 = vmatmul.mubr.f32.gmra.mrb[0].mxu0 %v1773
    %v2181 = vpop.f32.mrb[0].mxu0
    %v2182 = vadd.f32 0.0, %v2181
    %v2183 = vpop.f32.mrb[0].mxu0
    %2184 = vmatprep.mubr.f32.mxu0 0.0
    %2185 = vmatmul.mubr.f32.gmra.mrb[0].mxu0 %v1776
    %v2186 = vpop.f32.mrb[0].mxu0
    %v2187 = vadd.f32 0.0, %v2186
    %v2188 = vpop.f32.mrb[0].mxu0
    %2189 = vmatprep.mubr.f32.mxu0 0.0
    %2190 = vmatmul.mubr.f32.gmra.mrb[0].mxu0 %v1779
    %v2191 = vpop.f32.mrb[0].mxu0
    %v2192 = vadd.f32 0.0, %v2191
    %v2193 = vpop.f32.mrb[0].mxu0
    %2194 = vmatprep.mubr.f32.mxu0 0.0
    %2195 = vmatmul.mubr.f32.gmra.mrb[0].mxu0 %v1782
    %v2196 = vpop.f32.mrb[0].mxu0
    %v2197 = vadd.f32 0.0, %v2196
    %v2198 = vpop.f32.mrb[0].mxu0
    %2199 = vmatprep.mubr.f32.mxu0 0.0
    %2200 = vmatmul.mubr.f32.gmra.mrb[0].mxu0 %v1785
    %v2201 = vpop.f32.mrb[0].mxu0
    %v2202 = vadd.f32 0.0, %v2201
    %v2203 = vpop.f32.mrb[0].mxu0
    %2204 = vmatprep.mubr.f32.mxu0 0.0
    %2205 = vmatmul.mubr.f32.gmra.mrb[0].mxu0 %v1788
    %v2206 = vpop.f32.mrb[0].mxu0
    %v2207 = vadd.f32 0.0, %v2206
    %v2208 = vpop.f32.mrb[0].mxu0
    %2209 = vmatprep.mubr.f32.mxu0 0.0
    %2210 = vmatmul.mubr.f32.gmra.mrb[0].mxu0 %v1791
    %v2211 = vpop.f32.mrb[0].mxu0
    %v2212 = vadd.f32 0.0, %v2211
    %v2213 = vpop.f32.mrb[0].mxu0
    %2214 = vdwg.mxu0
    %v2215 = vadd.f32 %v2137, %v1941
    %v2216 = vadd.f32 %v2142, %v1946
    %v2217 = vadd.f32 %v2147, %v1951
    %v2218 = vadd.f32 %v2152, %v1956
    %v2219 = vadd.f32 %v2157, %v1961
    %v2220 = vadd.f32 %v2162, %v1966
    %v2221 = vadd.f32 %v2167, %v1971
    %v2222 = vadd.f32 %v2172, %v1976
    %v2223 = vtanh.pop %v2215
    %v2224 = vtanh.pop %v2216
    %v2225 = vtanh.pop %v2217
    %v2226 = vtanh.pop %v2218
    %v2227 = vtanh.pop %v2219
    %v2228 = vtanh.pop %v2220
    %v2229 = vtanh.pop %v2221
    %v2230 = vtanh.pop %v2222
    %v2231 = vmul.f32 %v2223, %v118
    %v2232 = vmul.f32 %v2224, %v119
    %v2233 = vmul.f32 %v2225, %v120
    %v2234 = vmul.f32 %v2226, %v121
    %v2235 = vmul.f32 %v2227, %v122
    %v2236 = vmul.f32 %v2228, %v123
    %v2237 = vmul.f32 %v2229, %v124
    %v2238 = vmul.f32 %v2230, %v125
    %v2239 = vadd.f32 %v2231, %v126
    %v2240 = vadd.f32 %v2232, %v127
    %v2241 = vadd.f32 %v2233, %v128
    %v2242 = vadd.f32 %v2234, %v129
    %v2243 = vadd.f32 %v2235, %v130
    %v2244 = vadd.f32 %v2236, %v131
    %v2245 = vadd.f32 %v2237, %v132
    %v2246 = vadd.f32 %v2238, %v133
    %v2247 = vmul.f32 %v2241, %v2014
    %v2248 = vmul.f32 %v2242, %v2015
    %v2249 = vmul.f32 %v2239, %v2245
    %v2250 = vmul.f32 %v2240, %v2246
    %v2251 = vadd.f32 %v2247, %v2249
    %v2252 = vadd.f32 %v2248, %v2250
    %v2253 = vtanh.pop %v2251
    %v2254 = vtanh.pop %v2252
    %v2255 = vmul.f32 %v2243, %v2253
    %v2256 = vmul.f32 %v2244, %v2254
    %v2257 = vld [vmem:[%s778] sm:$0xff]
    %v2258 = vld [vmem:[%s778 + $0x8] sm:$0xff]
    %v2259 = vld [vmem:[%s778 + $0x10] sm:$0xff]
    %v2260 = vld [vmem:[%s778 + $0x18] sm:$0xff]
    %v2261 = vld [vmem:[%s778 + $0x20] sm:$0xff]
    %v2262 = vld [vmem:[%s778 + $0x28] sm:$0xff]
    %v2263 = vld [vmem:[%s778 + $0x30] sm:$0xff]
    %v2264 = vld [vmem:[%s778 + $0x38] sm:$0xff]
    %v2265 = vadd.f32 %v2257, %v2177
    %v2266 = vadd.f32 %v2258, %v2182
    %v2267 = vadd.f32 %v2259, %v2187
    %v2268 = vadd.f32 %v2260, %v2192
    %v2269 = vadd.f32 %v2261, %v2197
    %v2270 = vadd.f32 %v2262, %v2202
    %v2271 = vadd.f32 %v2263, %v2207
    %v2272 = vadd.f32 %v2264, %v2212
    %v2273 = vtanh.pop %v2265
    %v2274 = vtanh.pop %v2266
    %v2275 = vtanh.pop %v2267
    %v2276 = vtanh.pop %v2268
    %v2277 = vtanh.pop %v2269
    %v2278 = vtanh.pop %v2270
    %v2279 = vtanh.pop %v2271
    %v2280 = vtanh.pop %v2272
    %v2281 = vmul.f32 %v2273, %v118
    %v2282 = vmul.f32 %v2274, %v119
    %v2283 = vmul.f32 %v2275, %v120
    %v2284 = vmul.f32 %v2276, %v121
    %v2285 = vmul.f32 %v2277, %v122
    %v2286 = vmul.f32 %v2278, %v123
    %v2287 = vmul.f32 %v2279, %v124
    %v2288 = vmul.f32 %v2280, %v125
    %v2289 = vadd.f32 %v2281, %v126
    %v2290 = vadd.f32 %v2282, %v127
    %v2291 = vadd.f32 %v2283, %v128
    %v2292 = vadd.f32 %v2284, %v129
    %v2293 = vadd.f32 %v2285, %v130
    %v2294 = vadd.f32 %v2286, %v131
    %v2295 = vadd.f32 %v2287, %v132
    %v2296 = vadd.f32 %v2288, %v133
    %v2297 = vmul.f32 %v2291, %v2064
    %v2298 = vmul.f32 %v2292, %v2065
    %v2299 = vmul.f32 %v2289, %v2295
    %v2300 = vmul.f32 %v2290, %v2296
    %v2301 = vadd.f32 %v2297, %v2299
    %v2302 = vadd.f32 %v2298, %v2300
    %v2303 = vtanh.pop %v2301
    %v2304 = vtanh.pop %v2302
    %v2305 = vmul.f32 %v2293, %v2303
    %v2306 = vmul.f32 %v2294, %v2304
    %2307 = vmatprep.subr.mxu0 0.0
    %2308 = vmatpush1.msra.mxu0 %v2305
    %2309 = vmatprep.subr.mxu0 0.0
    %2310 = vmatpush1.msra.mxu0 %v2306
    %2311 = vmatprep.subr.mxu0 0.0
    %2312 = vmatpush1.msra.mxu0 %v2255
    %2313 = vmatprep.subr.mxu0 0.0
    %2314 = vmatpush1.msra.mxu0 %v2256
    %2315 = vmatprep.subr.mxu0 0.0
    %2316 = vmatpush1.msra.mxu0 0.0
    %2317 = vmatprep.subr.mxu0 0.0
    %2318 = vmatpush1.msra.mxu0 0.0
    %2319 = vmatprep.subr.mxu0 0.0
    %2320 = vmatpush1.msra.mxu0 0.0
    %2321 = vmatprep.subr.mxu0 0.0
    %2322 = vmatpush1.msra.mxu0 0.0
    %2323 = vmatprep.subr.mxu0 0.0
    %2324 = vmatpush1.msra.mxu0 0.0
    %2325 = vmatprep.subr.mxu0 0.0
    %2326 = vmatpush1.msra.mxu0 0.0
    %2327 = vmatprep.subr.mxu0 0.0
    %2328 = vmatpush1.msra.mxu0 0.0
    %2329 = vmatprep.subr.mxu0 0.0
    %2330 = vmatpush1.msra.mxu0 0.0
    %2331 = vmatprep.subr.mxu0 0.0
    %2332 = vmatpush1.msra.mxu0 0.0
    %2333 = vmatprep.subr.mxu0 0.0
    %2334 = vmatpush1.msra.mxu0 0.0
    %2335 = vmatprep.subr.mxu0 0.0
    %2336 = vmatpush1.msra.mxu0 0.0
    %2337 = vmatprep.subr.mxu0 0.0
    %2338 = vmatpush1.msra.mxu0 0.0
    %2339 = vmatprep.subr.mxu0 0.0
    %2340 = vmatpush1.msra.mxu0 0.0
    %2341 = vmatprep.subr.mxu0 0.0
    %2342 = vmatpush1.msra.mxu0 0.0
    %2343 = vmatprep.subr.mxu0 0.0
    %2344 = vmatpush1.msra.mxu0 0.0
    %2345 = vmatprep.subr.mxu0 0.0
    %2346 = vmatpush1.msra.mxu0 0.0
    %2347 = vmatprep.subr.mxu0 0.0
    %2348 = vmatpush1.msra.mxu0 0.0
    %2349 = vmatprep.subr.mxu0 0.0
    %2350 = vmatpush1.msra.mxu0 0.0
    %2351 = vmatprep.subr.mxu0 0.0
    %2352 = vmatpush1.msra.mxu0 0.0
    %2353 = vmatprep.subr.mxu0 0.0
    %2354 = vmatpush1.msra.mxu0 0.0
    %2355 = vmatprep.subr.mxu0 0.0
    %2356 = vmatpush1.msra.mxu0 0.0
    %2357 = vmatprep.subr.mxu0 0.0
    %2358 = vmatpush1.msra.mxu0 0.0
    %2359 = vmatprep.subr.mxu0 0.0
    %2360 = vmatpush1.msra.mxu0 0.0
    %2361 = vmatprep.subr.mxu0 0.0
    %2362 = vmatpush1.msra.mxu0 0.0
    %2363 = vmatprep.subr.mxu0 0.0
    %2364 = vmatpush1.msra.mxu0 0.0
    %2365 = vmatprep.subr.mxu0 0.0
    %2366 = vmatpush1.msra.mxu0 0.0
    %2367 = vmatprep.subr.mxu0 0.0
    %2368 = vmatpush1.msra.mxu0 0.0
    %2369 = vmatprep.subr.mxu0 0.0
    %2370 = vmatpush1.msra.mxu0 0.0
    %2371 = vmatprep.mubr.f32.mxu0 0.0
    %2372 = vmatmul.mubr.f32.gmra.mrb[0].mxu0 %v1746
    %v2373 = vpop.f32.mrb[0].mxu0
    %v2374 = vadd.f32 0.0, %v2373
    %v2375 = vpop.f32.mrb[0].mxu0
    %2376 = vmatprep.mubr.f32.mxu0 0.0
    %2377 = vmatmul.mubr.f32.gmra.mrb[0].mxu0 %v1749
    %v2378 = vpop.f32.mrb[0].mxu0
    %v2379 = vadd.f32 0.0, %v2378
    %v2380 = vpop.f32.mrb[0].mxu0
    %2381 = vmatprep.mubr.f32.mxu0 0.0
    %2382 = vmatmul.mubr.f32.gmra.mrb[0].mxu0 %v1752
    %v2383 = vpop.f32.mrb[0].mxu0
    %v2384 = vadd.f32 0.0, %v2383
    %v2385 = vpop.f32.mrb[0].mxu0
    %2386 = vmatprep.mubr.f32.mxu0 0.0
    %2387 = vmatmul.mubr.f32.gmra.mrb[0].mxu0 %v1755
    %v2388 = vpop.f32.mrb[0].mxu0
    %v2389 = vadd.f32 0.0, %v2388
    %v2390 = vpop.f32.mrb[0].mxu0
    %2391 = vmatprep.mubr.f32.mxu0 0.0
    %2392 = vmatmul.mubr.f32.gmra.mrb[0].mxu0 %v1758
    %v2393 = vpop.f32.mrb[0].mxu0
    %v2394 = vadd.f32 0.0, %v2393
    %v2395 = vpop.f32.mrb[0].mxu0
    %2396 = vmatprep.mubr.f32.mxu0 0.0
    %2397 = vmatmul.mubr.f32.gmra.mrb[0].mxu0 %v1761
    %v2398 = vpop.f32.mrb[0].mxu0
    %v2399 = vadd.f32 0.0, %v2398
    %v2400 = vpop.f32.mrb[0].mxu0
    %2401 = vmatprep.mubr.f32.mxu0 0.0
    %2402 = vmatmul.mubr.f32.gmra.mrb[0].mxu0 %v1764
    %v2403 = vpop.f32.mrb[0].mxu0
    %v2404 = vadd.f32 0.0, %v2403
    %v2405 = vpop.f32.mrb[0].mxu0
    %2406 = vmatprep.mubr.f32.mxu0 0.0
    %2407 = vmatmul.mubr.f32.gmra.mrb[0].mxu0 %v1767
    %v2408 = vpop.f32.mrb[0].mxu0
    %v2409 = vadd.f32 0.0, %v2408
    %v2410 = vpop.f32.mrb[0].mxu0
    %2411 = vmatprep.mubr.f32.mxu0 0.0
    %2412 = vmatmul.mubr.f32.gmra.mrb[0].mxu0 %v1770
    %v2413 = vpop.f32.mrb[0].mxu0
    %v2414 = vadd.f32 0.0, %v2413
    %v2415 = vpop.f32.mrb[0].mxu0
    %2416 = vmatprep.mubr.f32.mxu0 0.0
    %2417 = vmatmul.mubr.f32.gmra.mrb[0].mxu0 %v1773
    %v2418 = vpop.f32.mrb[0].mxu0
    %v2419 = vadd.f32 0.0, %v2418
    %v2420 = vpop.f32.mrb[0].mxu0
    %2421 = vmatprep.mubr.f32.mxu0 0.0
    %2422 = vmatmul.mubr.f32.gmra.mrb[0].mxu0 %v1776
    %v2423 = vpop.f32.mrb[0].mxu0
    %v2424 = vadd.f32 0.0, %v2423
    %v2425 = vpop.f32.mrb[0].mxu0
    %2426 = vmatprep.mubr.f32.mxu0 0.0
    %2427 = vmatmul.mubr.f32.gmra.mrb[0].mxu0 %v1779
    %v2428 = vpop.f32.mrb[0].mxu0
    %v2429 = vadd.f32 0.0, %v2428
    %v2430 = vpop.f32.mrb[0].mxu0
    %2431 = vmatprep.mubr.f32.mxu0 0.0
    %2432 = vmatmul.mubr.f32.gmra.mrb[0].mxu0 %v1782
    %v2433 = vpop.f32.mrb[0].mxu0
    %v2434 = vadd.f32 0.0, %v2433
    %v2435 = vpop.f32.mrb[0].mxu0
    %2436 = vmatprep.mubr.f32.mxu0 0.0
    %2437 = vmatmul.mubr.f32.gmra.mrb[0].mxu0 %v1785
    %v2438 = vpop.f32.mrb[0].mxu0
    %v2439 = vadd.f32 0.0, %v2438
    %v2440 = vpop.f32.mrb[0].mxu0
    %2441 = vmatprep.mubr.f32.mxu0 0.0
    %2442 = vmatmul.mubr.f32.gmra.mrb[0].mxu0 %v1788
    %v2443 = vpop.f32.mrb[0].mxu0
    %v2444 = vadd.f32 0.0, %v2443
    %v2445 = vpop.f32.mrb[0].mxu0
    %2446 = vmatprep.mubr.f32.mxu0 0.0
    %2447 = vmatmul.mubr.f32.gmra.mrb[0].mxu0 %v1791
    %v2448 = vpop.f32.mrb[0].mxu0
    %v2449 = vadd.f32 0.0, %v2448
    %v2450 = vpop.f32.mrb[0].mxu0
    %2451 = vdwg.mxu0
    %v2452 = vadd.f32 %v2374, %v1941
    %v2453 = vadd.f32 %v2379, %v1946
    %v2454 = vadd.f32 %v2384, %v1951
    %v2455 = vadd.f32 %v2389, %v1956
    %v2456 = vadd.f32 %v2394, %v1961
    %v2457 = vadd.f32 %v2399, %v1966
    %v2458 = vadd.f32 %v2404, %v1971
    %v2459 = vadd.f32 %v2409, %v1976
    %v2460 = vtanh.pop %v2452
    %v2461 = vtanh.pop %v2453
    %v2462 = vtanh.pop %v2454
    %v2463 = vtanh.pop %v2455
    %v2464 = vtanh.pop %v2456
    %v2465 = vtanh.pop %v2457
    %v2466 = vtanh.pop %v2458
    %v2467 = vtanh.pop %v2459
    %v2468 = vmul.f32 %v2460, %v118
    %v2469 = vmul.f32 %v2461, %v119
    %v2470 = vmul.f32 %v2462, %v120
    %v2471 = vmul.f32 %v2463, %v121
    %v2472 = vmul.f32 %v2464, %v122
    %v2473 = vmul.f32 %v2465, %v123
    %v2474 = vmul.f32 %v2466, %v124
    %v2475 = vmul.f32 %v2467, %v125
    %v2476 = vadd.f32 %v2468, %v126
    %v2477 = vadd.f32 %v2469, %v127
    %v2478 = vadd.f32 %v2470, %v128
    %v2479 = vadd.f32 %v2471, %v129
    %v2480 = vadd.f32 %v2472, %v130
    %v2481 = vadd.f32 %v2473, %v131
    %v2482 = vadd.f32 %v2474, %v132
    %v2483 = vadd.f32 %v2475, %v133
    %v2484 = vmul.f32 %v2478, %v2251
    %v2485 = vmul.f32 %v2479, %v2252
    %v2486 = vmul.f32 %v2476, %v2482
    %v2487 = vmul.f32 %v2477, %v2483
    %v2488 = vadd.f32 %v2484, %v2486
    %v2489 = vadd.f32 %v2485, %v2487
    %v2490 = vtanh.pop %v2488
    %v2491 = vtanh.pop %v2489
    %v2492 = vmul.f32 %v2480, %v2490
    %v2493 = vmul.f32 %v2481, %v2491
    %v2494 = vld [vmem:[%s971] sm:$0xff]
    %v2495 = vld [vmem:[%s971 + $0x8] sm:$0xff]
    %v2496 = vld [vmem:[%s971 + $0x10] sm:$0xff]
    %v2497 = vld [vmem:[%s971 + $0x18] sm:$0xff]
    %v2498 = vld [vmem:[%s971 + $0x20] sm:$0xff]
    %v2499 = vld [vmem:[%s971 + $0x28] sm:$0xff]
    %v2500 = vld [vmem:[%s971 + $0x30] sm:$0xff]
    %v2501 = vld [vmem:[%s971 + $0x38] sm:$0xff]
    %v2502 = vadd.f32 %v2494, %v2414
    %v2503 = vadd.f32 %v2495, %v2419
    %v2504 = vadd.f32 %v2496, %v2424
    %v2505 = vadd.f32 %v2497, %v2429
    %v2506 = vadd.f32 %v2498, %v2434
    %v2507 = vadd.f32 %v2499, %v2439
    %v2508 = vadd.f32 %v2500, %v2444
    %v2509 = vadd.f32 %v2501, %v2449
    %v2510 = vtanh.pop %v2502
    %v2511 = vtanh.pop %v2503
    %v2512 = vtanh.pop %v2504
    %v2513 = vtanh.pop %v2505
    %v2514 = vtanh.pop %v2506
    %v2515 = vtanh.pop %v2507
    %v2516 = vtanh.pop %v2508
    %v2517 = vtanh.pop %v2509
    %v2518 = vmul.f32 %v2510, %v118
    %v2519 = vmul.f32 %v2511, %v119
    %v2520 = vmul.f32 %v2512, %v120
    %v2521 = vmul.f32 %v2513, %v121
    %v2522 = vmul.f32 %v2514, %v122
    %v2523 = vmul.f32 %v2515, %v123
    %v2524 = vmul.f32 %v2516, %v124
    %v2525 = vmul.f32 %v2517, %v125
    %v2526 = vadd.f32 %v2518, %v126
    %v2527 = vadd.f32 %v2519, %v127
    %v2528 = vadd.f32 %v2520, %v128
    %v2529 = vadd.f32 %v2521, %v129
    %v2530 = vadd.f32 %v2522, %v130
    %v2531 = vadd.f32 %v2523, %v131
    %v2532 = vadd.f32 %v2524, %v132
    %v2533 = vadd.f32 %v2525, %v133
    %v2534 = vmul.f32 %v2528, %v2301
    %v2535 = vmul.f32 %v2529, %v2302
    %v2536 = vmul.f32 %v2526, %v2532
    %v2537 = vmul.f32 %v2527, %v2533
    %v2538 = vadd.f32 %v2534, %v2536
    %v2539 = vadd.f32 %v2535, %v2537
    %v2540 = vtanh.pop %v2538
    %v2541 = vtanh.pop %v2539
    %v2542 = vmul.f32 %v2530, %v2540
    %v2543 = vmul.f32 %v2531, %v2541
    %2544 = vmatprep.subr.mxu0 0.0
    %2545 = vmatpush1.msra.mxu0 %v2542
    %2546 = vmatprep.subr.mxu0 0.0
    %2547 = vmatpush1.msra.mxu0 %v2543
    %2548 = vmatprep.subr.mxu0 0.0
    %2549 = vmatpush1.msra.mxu0 %v2492
    %2550 = vmatprep.subr.mxu0 0.0
    %2551 = vmatpush1.msra.mxu0 %v2493
    %2552 = vmatprep.subr.mxu0 0.0
    %2553 = vmatpush1.msra.mxu0 0.0
    %2554 = vmatprep.subr.mxu0 0.0
    %2555 = vmatpush1.msra.mxu0 0.0
    %2556 = vmatprep.subr.mxu0 0.0
    %2557 = vmatpush1.msra.mxu0 0.0
    %2558 = vmatprep.subr.mxu0 0.0
    %2559 = vmatpush1.msra.mxu0 0.0
    %2560 = vmatprep.subr.mxu0 0.0
    %2561 = vmatpush1.msra.mxu0 0.0
    %2562 = vmatprep.subr.mxu0 0.0
    %2563 = vmatpush1.msra.mxu0 0.0
    %2564 = vmatprep.subr.mxu0 0.0
    %2565 = vmatpush1.msra.mxu0 0.0
    %2566 = vmatprep.subr.mxu0 0.0
    %2567 = vmatpush1.msra.mxu0 0.0
    %2568 = vmatprep.subr.mxu0 0.0
    %2569 = vmatpush1.msra.mxu0 0.0
    %2570 = vmatprep.subr.mxu0 0.0
    %2571 = vmatpush1.msra.mxu0 0.0
    %2572 = vmatprep.subr.mxu0 0.0
    %2573 = vmatpush1.msra.mxu0 0.0
    %2574 = vmatprep.subr.mxu0 0.0
    %2575 = vmatpush1.msra.mxu0 0.0
    %2576 = vmatprep.subr.mxu0 0.0
    %2577 = vmatpush1.msra.mxu0 0.0
    %2578 = vmatprep.subr.mxu0 0.0
    %2579 = vmatpush1.msra.mxu0 0.0
    %2580 = vmatprep.subr.mxu0 0.0
    %2581 = vmatpush1.msra.mxu0 0.0
    %2582 = vmatprep.subr.mxu0 0.0
    %2583 = vmatpush1.msra.mxu0 0.0
    %2584 = vmatprep.subr.mxu0 0.0
    %2585 = vmatpush1.msra.mxu0 0.0
    %2586 = vmatprep.subr.mxu0 0.0
    %2587 = vmatpush1.msra.mxu0 0.0
    %2588 = vmatprep.subr.mxu0 0.0
    %2589 = vmatpush1.msra.mxu0 0.0
    %2590 = vmatprep.subr.mxu0 0.0
    %2591 = vmatpush1.msra.mxu0 0.0
    %2592 = vmatprep.subr.mxu0 0.0
    %2593 = vmatpush1.msra.mxu0 0.0
    %2594 = vmatprep.subr.mxu0 0.0
    %2595 = vmatpush1.msra.mxu0 0.0
    %2596 = vmatprep.subr.mxu0 0.0
    %2597 = vmatpush1.msra.mxu0 0.0
    %2598 = vmatprep.subr.mxu0 0.0
    %2599 = vmatpush1.msra.mxu0 0.0
    %2600 = vmatprep.subr.mxu0 0.0
    %2601 = vmatpush1.msra.mxu0 0.0
    %2602 = vmatprep.subr.mxu0 0.0
    %2603 = vmatpush1.msra.mxu0 0.0
    %2604 = vmatprep.subr.mxu0 0.0
    %2605 = vmatpush1.msra.mxu0 0.0
    %2606 = vmatprep.subr.mxu0 0.0
    %2607 = vmatpush1.msra.mxu0 0.0
    %2608 = vmatprep.mubr.f32.mxu0 0.0
    %2609 = vmatmul.mubr.f32.gmra.mrb[0].mxu0 %v1746
    %v2610 = vpop.f32.mrb[0].mxu0
    %v2611 = vadd.f32 0.0, %v2610
    %v2612 = vpop.f32.mrb[0].mxu0
    %2613 = vmatprep.mubr.f32.mxu0 0.0
    %2614 = vmatmul.mubr.f32.gmra.mrb[0].mxu0 %v1749
    %v2615 = vpop.f32.mrb[0].mxu0
    %v2616 = vadd.f32 0.0, %v2615
    %v2617 = vpop.f32.mrb[0].mxu0
    %2618 = vmatprep.mubr.f32.mxu0 0.0
    %2619 = vmatmul.mubr.f32.gmra.mrb[0].mxu0 %v1752
    %v2620 = vpop.f32.mrb[0].mxu0
    %v2621 = vadd.f32 0.0, %v2620
    %v2622 = vpop.f32.mrb[0].mxu0
    %2623 = vmatprep.mubr.f32.mxu0 0.0
    %2624 = vmatmul.mubr.f32.gmra.mrb[0].mxu0 %v1755
    %v2625 = vpop.f32.mrb[0].mxu0
    %v2626 = vadd.f32 0.0, %v2625
    %v2627 = vpop.f32.mrb[0].mxu0
    %2628 = vmatprep.mubr.f32.mxu0 0.0
    %2629 = vmatmul.mubr.f32.gmra.mrb[0].mxu0 %v1758
    %v2630 = vpop.f32.mrb[0].mxu0
    %v2631 = vadd.f32 0.0, %v2630
    %v2632 = vpop.f32.mrb[0].mxu0
    %2633 = vmatprep.mubr.f32.mxu0 0.0
    %2634 = vmatmul.mubr.f32.gmra.mrb[0].mxu0 %v1761
    %v2635 = vpop.f32.mrb[0].mxu0
    %v2636 = vadd.f32 0.0, %v2635
    %v2637 = vpop.f32.mrb[0].mxu0
    %2638 = vmatprep.mubr.f32.mxu0 0.0
    %2639 = vmatmul.mubr.f32.gmra.mrb[0].mxu0 %v1764
    %v2640 = vpop.f32.mrb[0].mxu0
    %v2641 = vadd.f32 0.0, %v2640
    %v2642 = vpop.f32.mrb[0].mxu0
    %2643 = vmatprep.mubr.f32.mxu0 0.0
    %2644 = vmatmul.mubr.f32.gmra.mrb[0].mxu0 %v1767
    %v2645 = vpop.f32.mrb[0].mxu0
    %v2646 = vadd.f32 0.0, %v2645
    %v2647 = vpop.f32.mrb[0].mxu0
    %2648 = vmatprep.mubr.f32.mxu0 0.0
    %2649 = vmatmul.mubr.f32.gmra.mrb[0].mxu0 %v1770
    %v2650 = vpop.f32.mrb[0].mxu0
    %v2651 = vadd.f32 0.0, %v2650
    %v2652 = vpop.f32.mrb[0].mxu0
    %2653 = vmatprep.mubr.f32.mxu0 0.0
    %2654 = vmatmul.mubr.f32.gmra.mrb[0].mxu0 %v1773
    %v2655 = vpop.f32.mrb[0].mxu0
    %v2656 = vadd.f32 0.0, %v2655
    %v2657 = vpop.f32.mrb[0].mxu0
    %2658 = vmatprep.mubr.f32.mxu0 0.0
    %2659 = vmatmul.mubr.f32.gmra.mrb[0].mxu0 %v1776
    %v2660 = vpop.f32.mrb[0].mxu0
    %v2661 = vadd.f32 0.0, %v2660
    %v2662 = vpop.f32.mrb[0].mxu0
    %2663 = vmatprep.mubr.f32.mxu0 0.0
    %2664 = vmatmul.mubr.f32.gmra.mrb[0].mxu0 %v1779
    %v2665 = vpop.f32.mrb[0].mxu0
    %v2666 = vadd.f32 0.0, %v2665
    %v2667 = vpop.f32.mrb[0].mxu0
    %2668 = vmatprep.mubr.f32.mxu0 0.0
    %2669 = vmatmul.mubr.f32.gmra.mrb[0].mxu0 %v1782
    %v2670 = vpop.f32.mrb[0].mxu0
    %v2671 = vadd.f32 0.0, %v2670
    %v2672 = vpop.f32.mrb[0].mxu0
    %2673 = vmatprep.mubr.f32.mxu0 0.0
    %2674 = vmatmul.mubr.f32.gmra.mrb[0].mxu0 %v1785
    %v2675 = vpop.f32.mrb[0].mxu0
    %v2676 = vadd.f32 0.0, %v2675
    %v2677 = vpop.f32.mrb[0].mxu0
    %2678 = vmatprep.mubr.f32.mxu0 0.0
    %2679 = vmatmul.mubr.f32.gmra.mrb[0].mxu0 %v1788
    %v2680 = vpop.f32.mrb[0].mxu0
    %v2681 = vadd.f32 0.0, %v2680
    %v2682 = vpop.f32.mrb[0].mxu0
    %2683 = vmatprep.mubr.f32.mxu0 0.0
    %2684 = vmatmul.mubr.f32.gmra.mrb[0].mxu0 %v1791
    %v2685 = vpop.f32.mrb[0].mxu0
    %v2686 = vadd.f32 0.0, %v2685
    %v2687 = vpop.f32.mrb[0].mxu0
    %2688 = vdwg.mxu0
    %v2689 = vadd.f32 %v2611, %v1941
    %v2690 = vadd.f32 %v2616, %v1946
    %v2691 = vadd.f32 %v2621, %v1951
    %v2692 = vadd.f32 %v2626, %v1956
    %v2693 = vadd.f32 %v2631, %v1961
    %v2694 = vadd.f32 %v2636, %v1966
    %v2695 = vadd.f32 %v2641, %v1971
    %v2696 = vadd.f32 %v2646, %v1976
    %v2697 = vtanh.pop %v2689
    %v2698 = vtanh.pop %v2690
    %v2699 = vtanh.pop %v2691
    %v2700 = vtanh.pop %v2692
    %v2701 = vtanh.pop %v2693
    %v2702 = vtanh.pop %v2694
    %v2703 = vtanh.pop %v2695
    %v2704 = vtanh.pop %v2696
    %v2705 = vmul.f32 %v2697, %v118
    %v2706 = vmul.f32 %v2698, %v119
    %v2707 = vmul.f32 %v2699, %v120
    %v2708 = vmul.f32 %v2700, %v121
    %v2709 = vmul.f32 %v2701, %v122
    %v2710 = vmul.f32 %v2702, %v123
    %v2711 = vmul.f32 %v2703, %v124
    %v2712 = vmul.f32 %v2704, %v125
    %v2713 = vadd.f32 %v2705, %v126
    %v2714 = vadd.f32 %v2706, %v127
    %v2715 = vadd.f32 %v2707, %v128
    %v2716 = vadd.f32 %v2708, %v129
    %v2717 = vadd.f32 %v2709, %v130
    %v2718 = vadd.f32 %v2710, %v131
    %v2719 = vadd.f32 %v2711, %v132
    %v2720 = vadd.f32 %v2712, %v133
    %v2721 = vmul.f32 %v2715, %v2488
    %v2722 = vmul.f32 %v2716, %v2489
    %v2723 = vmul.f32 %v2713, %v2719
    %v2724 = vmul.f32 %v2714, %v2720
    %v2725 = vadd.f32 %v2721, %v2723
    %v2726 = vadd.f32 %v2722, %v2724
    %v2727 = vtanh.pop %v2725
    %v2728 = vtanh.pop %v2726
    %v2729 = vmul.f32 %v2717, %v2727
    %v2730 = vmul.f32 %v2718, %v2728
    %v2731 = vld [vmem:[%s1164] sm:$0xff]
    %v2732 = vld [vmem:[%s1164 + $0x8] sm:$0xff]
    %v2733 = vld [vmem:[%s1164 + $0x10] sm:$0xff]
    %v2734 = vld [vmem:[%s1164 + $0x18] sm:$0xff]
    %v2735 = vld [vmem:[%s1164 + $0x20] sm:$0xff]
    %v2736 = vld [vmem:[%s1164 + $0x28] sm:$0xff]
    %v2737 = vld [vmem:[%s1164 + $0x30] sm:$0xff]
    %v2738 = vld [vmem:[%s1164 + $0x38] sm:$0xff]
    %v2739 = vadd.f32 %v2731, %v2651
    %v2740 = vadd.f32 %v2732, %v2656
    %v2741 = vadd.f32 %v2733, %v2661
    %v2742 = vadd.f32 %v2734, %v2666
    %v2743 = vadd.f32 %v2735, %v2671
    %v2744 = vadd.f32 %v2736, %v2676
    %v2745 = vadd.f32 %v2737, %v2681
    %v2746 = vadd.f32 %v2738, %v2686
    %v2747 = vtanh.pop %v2739
    %v2748 = vtanh.pop %v2740
    %v2749 = vtanh.pop %v2741
    %v2750 = vtanh.pop %v2742
    %v2751 = vtanh.pop %v2743
    %v2752 = vtanh.pop %v2744
    %v2753 = vtanh.pop %v2745
    %v2754 = vtanh.pop %v2746
    %v2755 = vmul.f32 %v2747, %v118
    %v2756 = vmul.f32 %v2748, %v119
    %v2757 = vmul.f32 %v2749, %v120
    %v2758 = vmul.f32 %v2750, %v121
    %v2759 = vmul.f32 %v2751, %v122
    %v2760 = vmul.f32 %v2752, %v123
    %v2761 = vmul.f32 %v2753, %v124
    %v2762 = vmul.f32 %v2754, %v125
    %v2763 = vadd.f32 %v2755, %v126
    %v2764 = vadd.f32 %v2756, %v127
    %v2765 = vadd.f32 %v2757, %v128
    %v2766 = vadd.f32 %v2758, %v129
    %v2767 = vadd.f32 %v2759, %v130
    %v2768 = vadd.f32 %v2760, %v131
    %v2769 = vadd.f32 %v2761, %v132
    %v2770 = vadd.f32 %v2762, %v133
    %v2771 = vmul.f32 %v2765, %v2538
    %v2772 = vmul.f32 %v2766, %v2539
    %v2773 = vmul.f32 %v2763, %v2769
    %v2774 = vmul.f32 %v2764, %v2770
    %v2775 = vadd.f32 %v2771, %v2773
    %v2776 = vadd.f32 %v2772, %v2774
    %v2777 = vtanh.pop %v2775
    %v2778 = vtanh.pop %v2776
    %v2779 = vmul.f32 %v2767, %v2777
    %v2780 = vmul.f32 %v2768, %v2778
    %2781 = vmatprep.subr.mxu0 0.0
    %2782 = vmatpush1.msra.mxu0 %v2779
    %2783 = vmatprep.subr.mxu0 0.0
    %2784 = vmatpush1.msra.mxu0 %v2780
    %2785 = vmatprep.subr.mxu0 0.0
    %2786 = vmatpush1.msra.mxu0 %v2729
    %2787 = vmatprep.subr.mxu0 0.0
    %2788 = vmatpush1.msra.mxu0 %v2730
    %2789 = vmatprep.subr.mxu0 0.0
    %2790 = vmatpush1.msra.mxu0 0.0
    %2791 = vmatprep.subr.mxu0 0.0
    %2792 = vmatpush1.msra.mxu0 0.0
    %2793 = vmatprep.subr.mxu0 0.0
    %2794 = vmatpush1.msra.mxu0 0.0
    %2795 = vmatprep.subr.mxu0 0.0
    %2796 = vmatpush1.msra.mxu0 0.0
    %2797 = vmatprep.subr.mxu0 0.0
    %2798 = vmatpush1.msra.mxu0 0.0
    %2799 = vmatprep.subr.mxu0 0.0
    %2800 = vmatpush1.msra.mxu0 0.0
    %2801 = vmatprep.subr.mxu0 0.0
    %2802 = vmatpush1.msra.mxu0 0.0
    %2803 = vmatprep.subr.mxu0 0.0
    %2804 = vmatpush1.msra.mxu0 0.0
    %2805 = vmatprep.subr.mxu0 0.0
    %2806 = vmatpush1.msra.mxu0 0.0
    %2807 = vmatprep.subr.mxu0 0.0
    %2808 = vmatpush1.msra.mxu0 0.0
    %2809 = vmatprep.subr.mxu0 0.0
    %2810 = vmatpush1.msra.mxu0 0.0
    %2811 = vmatprep.subr.mxu0 0.0
    %2812 = vmatpush1.msra.mxu0 0.0
    %2813 = vmatprep.subr.mxu0 0.0
    %2814 = vmatpush1.msra.mxu0 0.0
    %2815 = vmatprep.subr.mxu0 0.0
    %2816 = vmatpush1.msra.mxu0 0.0
    %2817 = vmatprep.subr.mxu0 0.0
    %2818 = vmatpush1.msra.mxu0 0.0
    %2819 = vmatprep.subr.mxu0 0.0
    %2820 = vmatpush1.msra.mxu0 0.0
    %2821 = vmatprep.subr.mxu0 0.0
    %2822 = vmatpush1.msra.mxu0 0.0
    %2823 = vmatprep.subr.mxu0 0.0
    %2824 = vmatpush1.msra.mxu0 0.0
    %2825 = vmatprep.subr.mxu0 0.0
    %2826 = vmatpush1.msra.mxu0 0.0
    %2827 = vmatprep.subr.mxu0 0.0
    %2828 = vmatpush1.msra.mxu0 0.0
    %2829 = vmatprep.subr.mxu0 0.0
    %2830 = vmatpush1.msra.mxu0 0.0
    %2831 = vmatprep.subr.mxu0 0.0
    %2832 = vmatpush1.msra.mxu0 0.0
    %2833 = vmatprep.subr.mxu0 0.0
    %2834 = vmatpush1.msra.mxu0 0.0
    %2835 = vmatprep.subr.mxu0 0.0
    %2836 = vmatpush1.msra.mxu0 0.0
    %2837 = vmatprep.subr.mxu0 0.0
    %2838 = vmatpush1.msra.mxu0 0.0
    %2839 = vmatprep.subr.mxu0 0.0
    %2840 = vmatpush1.msra.mxu0 0.0
    %2841 = vmatprep.subr.mxu0 0.0
    %2842 = vmatpush1.msra.mxu0 0.0
    %2843 = vmatprep.subr.mxu0 0.0
    %2844 = vmatpush1.msra.mxu0 0.0
    %2845 = vmatprep.mubr.f32.mxu0 0.0
    %2846 = vmatmul.mubr.f32.gmra.mrb[0].mxu0 %v1746
    %v2847 = vpop.f32.mrb[0].mxu0
    %v2848 = vadd.f32 0.0, %v2847
    %v2849 = vpop.f32.mrb[0].mxu0
    %2850 = vmatprep.mubr.f32.mxu0 0.0
    %2851 = vmatmul.mubr.f32.gmra.mrb[0].mxu0 %v1749
    %v2852 = vpop.f32.mrb[0].mxu0
    %v2853 = vadd.f32 0.0, %v2852
    %v2854 = vpop.f32.mrb[0].mxu0
    %2855 = vmatprep.mubr.f32.mxu0 0.0
    %2856 = vmatmul.mubr.f32.gmra.mrb[0].mxu0 %v1752
    %v2857 = vpop.f32.mrb[0].mxu0
    %v2858 = vadd.f32 0.0, %v2857
    %v2859 = vpop.f32.mrb[0].mxu0
    %2860 = vmatprep.mubr.f32.mxu0 0.0
    %2861 = vmatmul.mubr.f32.gmra.mrb[0].mxu0 %v1755
    %v2862 = vpop.f32.mrb[0].mxu0
    %v2863 = vadd.f32 0.0, %v2862
    %v2864 = vpop.f32.mrb[0].mxu0
    %2865 = vmatprep.mubr.f32.mxu0 0.0
    %2866 = vmatmul.mubr.f32.gmra.mrb[0].mxu0 %v1758
    %v2867 = vpop.f32.mrb[0].mxu0
    %v2868 = vadd.f32 0.0, %v2867
    %v2869 = vpop.f32.mrb[0].mxu0
    %2870 = vmatprep.mubr.f32.mxu0 0.0
    %2871 = vmatmul.mubr.f32.gmra.mrb[0].mxu0 %v1761
    %v2872 = vpop.f32.mrb[0].mxu0
    %v2873 = vadd.f32 0.0, %v2872
    %v2874 = vpop.f32.mrb[0].mxu0
    %2875 = vmatprep.mubr.f32.mxu0 0.0
    %2876 = vmatmul.mubr.f32.gmra.mrb[0].mxu0 %v1764
    %v2877 = vpop.f32.mrb[0].mxu0
    %v2878 = vadd.f32 0.0, %v2877
    %v2879 = vpop.f32.mrb[0].mxu0
    %2880 = vmatprep.mubr.f32.mxu0 0.0
    %2881 = vmatmul.mubr.f32.gmra.mrb[0].mxu0 %v1767
    %v2882 = vpop.f32.mrb[0].mxu0
    %v2883 = vadd.f32 0.0, %v2882
    %v2884 = vpop.f32.mrb[0].mxu0
    %2885 = vmatprep.mubr.f32.mxu0 0.0
    %2886 = vmatmul.mubr.f32.gmra.mrb[0].mxu0 %v1770
    %v2887 = vpop.f32.mrb[0].mxu0
    %v2888 = vadd.f32 0.0, %v2887
    %v2889 = vpop.f32.mrb[0].mxu0
    %2890 = vmatprep.mubr.f32.mxu0 0.0
    %2891 = vmatmul.mubr.f32.gmra.mrb[0].mxu0 %v1773
    %v2892 = vpop.f32.mrb[0].mxu0
    %v2893 = vadd.f32 0.0, %v2892
    %v2894 = vpop.f32.mrb[0].mxu0
    %2895 = vmatprep.mubr.f32.mxu0 0.0
    %2896 = vmatmul.mubr.f32.gmra.mrb[0].mxu0 %v1776
    %v2897 = vpop.f32.mrb[0].mxu0
    %v2898 = vadd.f32 0.0, %v2897
    %v2899 = vpop.f32.mrb[0].mxu0
    %2900 = vmatprep.mubr.f32.mxu0 0.0
    %2901 = vmatmul.mubr.f32.gmra.mrb[0].mxu0 %v1779
    %v2902 = vpop.f32.mrb[0].mxu0
    %v2903 = vadd.f32 0.0, %v2902
    %v2904 = vpop.f32.mrb[0].mxu0
    %2905 = vmatprep.mubr.f32.mxu0 0.0
    %2906 = vmatmul.mubr.f32.gmra.mrb[0].mxu0 %v1782
    %v2907 = vpop.f32.mrb[0].mxu0
    %v2908 = vadd.f32 0.0, %v2907
    %v2909 = vpop.f32.mrb[0].mxu0
    %2910 = vmatprep.mubr.f32.mxu0 0.0
    %2911 = vmatmul.mubr.f32.gmra.mrb[0].mxu0 %v1785
    %v2912 = vpop.f32.mrb[0].mxu0
    %v2913 = vadd.f32 0.0, %v2912
    %v2914 = vpop.f32.mrb[0].mxu0
    %2915 = vmatprep.mubr.f32.mxu0 0.0
    %2916 = vmatmul.mubr.f32.gmra.mrb[0].mxu0 %v1788
    %v2917 = vpop.f32.mrb[0].mxu0
    %v2918 = vadd.f32 0.0, %v2917
    %v2919 = vpop.f32.mrb[0].mxu0
    %2920 = vmatprep.mubr.f32.mxu0 0.0
    %2921 = vmatmul.mubr.f32.gmra.mrb[0].mxu0 %v1791
    %v2922 = vpop.f32.mrb[0].mxu0
    %v2923 = vadd.f32 0.0, %v2922
    %v2924 = vpop.f32.mrb[0].mxu0
    %2925 = vdwg.mxu0
    %v2926 = vadd.f32 %v2848, %v1941
    %v2927 = vadd.f32 %v2853, %v1946
    %v2928 = vadd.f32 %v2858, %v1951
    %v2929 = vadd.f32 %v2863, %v1956
    %v2930 = vadd.f32 %v2868, %v1961
    %v2931 = vadd.f32 %v2873, %v1966
    %v2932 = vadd.f32 %v2878, %v1971
    %v2933 = vadd.f32 %v2883, %v1976
    %v2934 = vtanh.pop %v2926
    %v2935 = vtanh.pop %v2927
    %v2936 = vtanh.pop %v2928
    %v2937 = vtanh.pop %v2929
    %v2938 = vtanh.pop %v2930
    %v2939 = vtanh.pop %v2931
    %v2940 = vtanh.pop %v2932
    %v2941 = vtanh.pop %v2933
    %v2942 = vmul.f32 %v2934, %v118
    %v2943 = vmul.f32 %v2935, %v119
    %v2944 = vmul.f32 %v2936, %v120
    %v2945 = vmul.f32 %v2937, %v121
    %v2946 = vmul.f32 %v2938, %v122
    %v2947 = vmul.f32 %v2939, %v123
    %v2948 = vmul.f32 %v2940, %v124
    %v2949 = vmul.f32 %v2941, %v125
    %v2950 = vadd.f32 %v2942, %v126
    %v2951 = vadd.f32 %v2943, %v127
    %v2952 = vadd.f32 %v2944, %v128
    %v2953 = vadd.f32 %v2945, %v129
    %v2954 = vadd.f32 %v2946, %v130
    %v2955 = vadd.f32 %v2947, %v131
    %v2956 = vadd.f32 %v2948, %v132
    %v2957 = vadd.f32 %v2949, %v133
    %v2958 = vmul.f32 %v2952, %v2725
    %v2959 = vmul.f32 %v2953, %v2726
    %v2960 = vmul.f32 %v2950, %v2956
    %v2961 = vmul.f32 %v2951, %v2957
    %v2962 = vadd.f32 %v2958, %v2960
    %v2963 = vadd.f32 %v2959, %v2961
    %v2964 = vtanh.pop %v2962
    %v2965 = vtanh.pop %v2963
    %v2966 = vmul.f32 %v2954, %v2964
    %v2967 = vmul.f32 %v2955, %v2965
    %v2968 = vld [vmem:[%s1357] sm:$0xff]
    %v2969 = vld [vmem:[%s1357 + $0x8] sm:$0xff]
    %v2970 = vld [vmem:[%s1357 + $0x10] sm:$0xff]
    %v2971 = vld [vmem:[%s1357 + $0x18] sm:$0xff]
    %v2972 = vld [vmem:[%s1357 + $0x20] sm:$0xff]
    %v2973 = vld [vmem:[%s1357 + $0x28] sm:$0xff]
    %v2974 = vld [vmem:[%s1357 + $0x30] sm:$0xff]
    %v2975 = vld [vmem:[%s1357 + $0x38] sm:$0xff]
    %v2976 = vadd.f32 %v2968, %v2888
    %v2977 = vadd.f32 %v2969, %v2893
    %v2978 = vadd.f32 %v2970, %v2898
    %v2979 = vadd.f32 %v2971, %v2903
    %v2980 = vadd.f32 %v2972, %v2908
    %v2981 = vadd.f32 %v2973, %v2913
    %v2982 = vadd.f32 %v2974, %v2918
    %v2983 = vadd.f32 %v2975, %v2923
    %v2984 = vtanh.pop %v2976
    %v2985 = vtanh.pop %v2977
    %v2986 = vtanh.pop %v2978
    %v2987 = vtanh.pop %v2979
    %v2988 = vtanh.pop %v2980
    %v2989 = vtanh.pop %v2981
    %v2990 = vtanh.pop %v2982
    %v2991 = vtanh.pop %v2983
    %v2992 = vmul.f32 %v2984, %v118
    %v2993 = vmul.f32 %v2985, %v119
    %v2994 = vmul.f32 %v2986, %v120
    %v2995 = vmul.f32 %v2987, %v121
    %v2996 = vmul.f32 %v2988, %v122
    %v2997 = vmul.f32 %v2989, %v123
    %v2998 = vmul.f32 %v2990, %v124
    %v2999 = vmul.f32 %v2991, %v125
    %v3000 = vadd.f32 %v2992, %v126
    %v3001 = vadd.f32 %v2993, %v127
    %v3002 = vadd.f32 %v2994, %v128
    %v3003 = vadd.f32 %v2995, %v129
    %v3004 = vadd.f32 %v2996, %v130
    %v3005 = vadd.f32 %v2997, %v131
    %v3006 = vadd.f32 %v2998, %v132
    %v3007 = vadd.f32 %v2999, %v133
    %v3008 = vmul.f32 %v3002, %v2775
    %v3009 = vmul.f32 %v3003, %v2776
    %v3010 = vmul.f32 %v3000, %v3006
    %v3011 = vmul.f32 %v3001, %v3007
    %v3012 = vadd.f32 %v3008, %v3010
    %v3013 = vadd.f32 %v3009, %v3011
    %v3014 = vtanh.pop %v3012
    %v3015 = vtanh.pop %v3013
    %v3016 = vmul.f32 %v3004, %v3014
    %v3017 = vmul.f32 %v3005, %v3015
    %3018 = vmatprep.subr.mxu0 0.0
    %3019 = vmatpush1.msra.mxu0 %v3016
    %3020 = vmatprep.subr.mxu0 0.0
    %3021 = vmatpush1.msra.mxu0 %v3017
    %3022 = vmatprep.subr.mxu0 0.0
    %3023 = vmatpush1.msra.mxu0 %v2966
    %3024 = vmatprep.subr.mxu0 0.0
    %3025 = vmatpush1.msra.mxu0 %v2967
    %3026 = vmatprep.subr.mxu0 0.0
    %3027 = vmatpush1.msra.mxu0 0.0
    %3028 = vmatprep.subr.mxu0 0.0
    %3029 = vmatpush1.msra.mxu0 0.0
    %3030 = vmatprep.subr.mxu0 0.0
    %3031 = vmatpush1.msra.mxu0 0.0
    %3032 = vmatprep.subr.mxu0 0.0
    %3033 = vmatpush1.msra.mxu0 0.0
    %3034 = vmatprep.subr.mxu0 0.0
    %3035 = vmatpush1.msra.mxu0 0.0
    %3036 = vmatprep.subr.mxu0 0.0
    %3037 = vmatpush1.msra.mxu0 0.0
    %3038 = vmatprep.subr.mxu0 0.0
    %3039 = vmatpush1.msra.mxu0 0.0
    %3040 = vmatprep.subr.mxu0 0.0
    %3041 = vmatpush1.msra.mxu0 0.0
    %3042 = vmatprep.subr.mxu0 0.0
    %3043 = vmatpush1.msra.mxu0 0.0
    %3044 = vmatprep.subr.mxu0 0.0
    %3045 = vmatpush1.msra.mxu0 0.0
    %3046 = vmatprep.subr.mxu0 0.0
    %3047 = vmatpush1.msra.mxu0 0.0
    %3048 = vmatprep.subr.mxu0 0.0
    %3049 = vmatpush1.msra.mxu0 0.0
    %3050 = vmatprep.subr.mxu0 0.0
    %3051 = vmatpush1.msra.mxu0 0.0
    %3052 = vmatprep.subr.mxu0 0.0
    %3053 = vmatpush1.msra.mxu0 0.0
    %3054 = vmatprep.subr.mxu0 0.0
    %3055 = vmatpush1.msra.mxu0 0.0
    %3056 = vmatprep.subr.mxu0 0.0
    %3057 = vmatpush1.msra.mxu0 0.0
    %3058 = vmatprep.subr.mxu0 0.0
    %3059 = vmatpush1.msra.mxu0 0.0
    %3060 = vmatprep.subr.mxu0 0.0
    %3061 = vmatpush1.msra.mxu0 0.0
    %3062 = vmatprep.subr.mxu0 0.0
    %3063 = vmatpush1.msra.mxu0 0.0
    %3064 = vmatprep.subr.mxu0 0.0
    %3065 = vmatpush1.msra.mxu0 0.0
    %3066 = vmatprep.subr.mxu0 0.0
    %3067 = vmatpush1.msra.mxu0 0.0
    %3068 = vmatprep.subr.mxu0 0.0
    %3069 = vmatpush1.msra.mxu0 0.0
    %3070 = vmatprep.subr.mxu0 0.0
    %3071 = vmatpush1.msra.mxu0 0.0
    %3072 = vmatprep.subr.mxu0 0.0
    %3073 = vmatpush1.msra.mxu0 0.0
    %3074 = vmatprep.subr.mxu0 0.0
    %3075 = vmatpush1.msra.mxu0 0.0
    %3076 = vmatprep.subr.mxu0 0.0
    %3077 = vmatpush1.msra.mxu0 0.0
    %3078 = vmatprep.subr.mxu0 0.0
    %3079 = vmatpush1.msra.mxu0 0.0
    %3080 = vmatprep.subr.mxu0 0.0
    %3081 = vmatpush1.msra.mxu0 0.0
    %3082 = vmatprep.mubr.f32.mxu0 0.0
    %3083 = vmatmul.mubr.f32.gmra.mrb[0].mxu0 %v1746
    %v3084 = vpop.f32.mrb[0].mxu0
    %v3085 = vadd.f32 0.0, %v3084
    %v3086 = vpop.f32.mrb[0].mxu0
    %3087 = vmatprep.mubr.f32.mxu0 0.0
    %3088 = vmatmul.mubr.f32.gmra.mrb[0].mxu0 %v1749
    %v3089 = vpop.f32.mrb[0].mxu0
    %v3090 = vadd.f32 0.0, %v3089
    %v3091 = vpop.f32.mrb[0].mxu0
    %3092 = vmatprep.mubr.f32.mxu0 0.0
    %3093 = vmatmul.mubr.f32.gmra.mrb[0].mxu0 %v1752
    %v3094 = vpop.f32.mrb[0].mxu0
    %v3095 = vadd.f32 0.0, %v3094
    %v3096 = vpop.f32.mrb[0].mxu0
    %3097 = vmatprep.mubr.f32.mxu0 0.0
    %3098 = vmatmul.mubr.f32.gmra.mrb[0].mxu0 %v1755
    %v3099 = vpop.f32.mrb[0].mxu0
    %v3100 = vadd.f32 0.0, %v3099
    %v3101 = vpop.f32.mrb[0].mxu0
    %3102 = vmatprep.mubr.f32.mxu0 0.0
    %3103 = vmatmul.mubr.f32.gmra.mrb[0].mxu0 %v1758
    %v3104 = vpop.f32.mrb[0].mxu0
    %v3105 = vadd.f32 0.0, %v3104
    %v3106 = vpop.f32.mrb[0].mxu0
    %3107 = vmatprep.mubr.f32.mxu0 0.0
    %3108 = vmatmul.mubr.f32.gmra.mrb[0].mxu0 %v1761
    %v3109 = vpop.f32.mrb[0].mxu0
    %v3110 = vadd.f32 0.0, %v3109
    %v3111 = vpop.f32.mrb[0].mxu0
    %3112 = vmatprep.mubr.f32.mxu0 0.0
    %3113 = vmatmul.mubr.f32.gmra.mrb[0].mxu0 %v1764
    %v3114 = vpop.f32.mrb[0].mxu0
    %v3115 = vadd.f32 0.0, %v3114
    %v3116 = vpop.f32.mrb[0].mxu0
    %3117 = vmatprep.mubr.f32.mxu0 0.0
    %3118 = vmatmul.mubr.f32.gmra.mrb[0].mxu0 %v1767
    %v3119 = vpop.f32.mrb[0].mxu0
    %v3120 = vadd.f32 0.0, %v3119
    %v3121 = vpop.f32.mrb[0].mxu0
    %3122 = vmatprep.mubr.f32.mxu0 0.0
    %3123 = vmatmul.mubr.f32.gmra.mrb[0].mxu0 %v1770
    %v3124 = vpop.f32.mrb[0].mxu0
    %v3125 = vadd.f32 0.0, %v3124
    %v3126 = vpop.f32.mrb[0].mxu0
    %3127 = vmatprep.mubr.f32.mxu0 0.0
    %3128 = vmatmul.mubr.f32.gmra.mrb[0].mxu0 %v1773
    %v3129 = vpop.f32.mrb[0].mxu0
    %v3130 = vadd.f32 0.0, %v3129
    %v3131 = vpop.f32.mrb[0].mxu0
    %3132 = vmatprep.mubr.f32.mxu0 0.0
    %3133 = vmatmul.mubr.f32.gmra.mrb[0].mxu0 %v1776
    %v3134 = vpop.f32.mrb[0].mxu0
    %v3135 = vadd.f32 0.0, %v3134
    %v3136 = vpop.f32.mrb[0].mxu0
    %3137 = vmatprep.mubr.f32.mxu0 0.0
    %3138 = vmatmul.mubr.f32.gmra.mrb[0].mxu0 %v1779
    %v3139 = vpop.f32.mrb[0].mxu0
    %v3140 = vadd.f32 0.0, %v3139
    %v3141 = vpop.f32.mrb[0].mxu0
    %3142 = vmatprep.mubr.f32.mxu0 0.0
    %3143 = vmatmul.mubr.f32.gmra.mrb[0].mxu0 %v1782
    %v3144 = vpop.f32.mrb[0].mxu0
    %v3145 = vadd.f32 0.0, %v3144
    %v3146 = vpop.f32.mrb[0].mxu0
    %3147 = vmatprep.mubr.f32.mxu0 0.0
    %3148 = vmatmul.mubr.f32.gmra.mrb[0].mxu0 %v1785
    %v3149 = vpop.f32.mrb[0].mxu0
    %v3150 = vadd.f32 0.0, %v3149
    %v3151 = vpop.f32.mrb[0].mxu0
    %3152 = vmatprep.mubr.f32.mxu0 0.0
    %3153 = vmatmul.mubr.f32.gmra.mrb[0].mxu0 %v1788
    %v3154 = vpop.f32.mrb[0].mxu0
    %v3155 = vadd.f32 0.0, %v3154
    %v3156 = vpop.f32.mrb[0].mxu0
    %3157 = vmatprep.mubr.f32.mxu0 0.0
    %3158 = vmatmul.mubr.f32.gmra.mrb[0].mxu0 %v1791
    %v3159 = vpop.f32.mrb[0].mxu0
    %v3160 = vadd.f32 0.0, %v3159
    %v3161 = vpop.f32.mrb[0].mxu0
    %3162 = vdwg.mxu0
    %v3163 = vadd.f32 %v3085, %v1941
    %v3164 = vadd.f32 %v3090, %v1946
    %v3165 = vadd.f32 %v3095, %v1951
    %v3166 = vadd.f32 %v3100, %v1956
    %v3167 = vadd.f32 %v3105, %v1961
    %v3168 = vadd.f32 %v3110, %v1966
    %v3169 = vadd.f32 %v3115, %v1971
    %v3170 = vadd.f32 %v3120, %v1976
    %v3171 = vtanh.pop %v3163
    %v3172 = vtanh.pop %v3164
    %v3173 = vtanh.pop %v3165
    %v3174 = vtanh.pop %v3166
    %v3175 = vtanh.pop %v3167
    %v3176 = vtanh.pop %v3168
    %v3177 = vtanh.pop %v3169
    %v3178 = vtanh.pop %v3170
    %v3179 = vmul.f32 %v3171, %v118
    %v3180 = vmul.f32 %v3172, %v119
    %v3181 = vmul.f32 %v3173, %v120
    %v3182 = vmul.f32 %v3174, %v121
    %v3183 = vmul.f32 %v3175, %v122
    %v3184 = vmul.f32 %v3176, %v123
    %v3185 = vmul.f32 %v3177, %v124
    %v3186 = vmul.f32 %v3178, %v125
    %v3187 = vadd.f32 %v3179, %v126
    %v3188 = vadd.f32 %v3180, %v127
    %v3189 = vadd.f32 %v3181, %v128
    %v3190 = vadd.f32 %v3182, %v129
    %v3191 = vadd.f32 %v3183, %v130
    %v3192 = vadd.f32 %v3184, %v131
    %v3193 = vadd.f32 %v3185, %v132
    %v3194 = vadd.f32 %v3186, %v133
    %v3195 = vmul.f32 %v3189, %v2962
    %v3196 = vmul.f32 %v3190, %v2963
    %v3197 = vmul.f32 %v3187, %v3193
    %v3198 = vmul.f32 %v3188, %v3194
    %v3199 = vadd.f32 %v3195, %v3197
    %v3200 = vadd.f32 %v3196, %v3198
    %v3201 = vtanh.pop %v3199
    %v3202 = vtanh.pop %v3200
    %v3203 = vmul.f32 %v3191, %v3201
    %v3204 = vmul.f32 %v3192, %v3202
    %v3205 = vld [vmem:[%s1550] sm:$0xff]
    %v3206 = vld [vmem:[%s1550 + $0x8] sm:$0xff]
    %v3207 = vld [vmem:[%s1550 + $0x10] sm:$0xff]
    %v3208 = vld [vmem:[%s1550 + $0x18] sm:$0xff]
    %v3209 = vld [vmem:[%s1550 + $0x20] sm:$0xff]
    %v3210 = vld [vmem:[%s1550 + $0x28] sm:$0xff]
    %v3211 = vld [vmem:[%s1550 + $0x30] sm:$0xff]
    %v3212 = vld [vmem:[%s1550 + $0x38] sm:$0xff]
    %v3213 = vadd.f32 %v3205, %v3125
    %v3214 = vadd.f32 %v3206, %v3130
    %v3215 = vadd.f32 %v3207, %v3135
    %v3216 = vadd.f32 %v3208, %v3140
    %v3217 = vadd.f32 %v3209, %v3145
    %v3218 = vadd.f32 %v3210, %v3150
    %v3219 = vadd.f32 %v3211, %v3155
    %v3220 = vadd.f32 %v3212, %v3160
    %v3221 = vtanh.pop %v3213
    %v3222 = vtanh.pop %v3214
    %v3223 = vtanh.pop %v3215
    %v3224 = vtanh.pop %v3216
    %v3225 = vtanh.pop %v3217
    %v3226 = vtanh.pop %v3218
    %v3227 = vtanh.pop %v3219
    %v3228 = vtanh.pop %v3220
    %v3229 = vmul.f32 %v3221, %v118
    %v3230 = vmul.f32 %v3222, %v119
    %v3231 = vmul.f32 %v3223, %v120
    %v3232 = vmul.f32 %v3224, %v121
    %v3233 = vmul.f32 %v3225, %v122
    %v3234 = vmul.f32 %v3226, %v123
    %v3235 = vmul.f32 %v3227, %v124
    %v3236 = vmul.f32 %v3228, %v125
    %v3237 = vadd.f32 %v3229, %v126
    %v3238 = vadd.f32 %v3230, %v127
    %v3239 = vadd.f32 %v3231, %v128
    %v3240 = vadd.f32 %v3232, %v129
    %v3241 = vadd.f32 %v3233, %v130
    %v3242 = vadd.f32 %v3234, %v131
    %v3243 = vadd.f32 %v3235, %v132
    %v3244 = vadd.f32 %v3236, %v133
    %v3245 = vmul.f32 %v3239, %v3012
    %v3246 = vmul.f32 %v3240, %v3013
    %v3247 = vmul.f32 %v3237, %v3243
    %v3248 = vmul.f32 %v3238, %v3244
    %v3249 = vadd.f32 %v3245, %v3247
    %v3250 = vadd.f32 %v3246, %v3248
    %v3251 = vtanh.pop %v3249
    %v3252 = vtanh.pop %v3250
    %v3253 = vmul.f32 %v3241, %v3251
    %v3254 = vmul.f32 %v3242, %v3252
    %3255 = vmatprep.subr.mxu0 0.0
    %3256 = vmatpush1.msra.mxu0 %v3253
    %3257 = vmatprep.subr.mxu0 0.0
    %3258 = vmatpush1.msra.mxu0 %v3254
    %3259 = vmatprep.subr.mxu0 0.0
    %3260 = vmatpush1.msra.mxu0 %v3203
    %3261 = vmatprep.subr.mxu0 0.0
    %3262 = vmatpush1.msra.mxu0 %v3204
    %3263 = vmatprep.subr.mxu0 0.0
    %3264 = vmatpush1.msra.mxu0 0.0
    %3265 = vmatprep.subr.mxu0 0.0
    %3266 = vmatpush1.msra.mxu0 0.0
    %3267 = vmatprep.subr.mxu0 0.0
    %3268 = vmatpush1.msra.mxu0 0.0
    %3269 = vmatprep.subr.mxu0 0.0
    %3270 = vmatpush1.msra.mxu0 0.0
    %3271 = vmatprep.subr.mxu0 0.0
    %3272 = vmatpush1.msra.mxu0 0.0
    %3273 = vmatprep.subr.mxu0 0.0
    %3274 = vmatpush1.msra.mxu0 0.0
    %3275 = vmatprep.subr.mxu0 0.0
    %3276 = vmatpush1.msra.mxu0 0.0
    %3277 = vmatprep.subr.mxu0 0.0
    %3278 = vmatpush1.msra.mxu0 0.0
    %3279 = vmatprep.subr.mxu0 0.0
    %3280 = vmatpush1.msra.mxu0 0.0
    %3281 = vmatprep.subr.mxu0 0.0
    %3282 = vmatpush1.msra.mxu0 0.0
    %3283 = vmatprep.subr.mxu0 0.0
    %3284 = vmatpush1.msra.mxu0 0.0
    %3285 = vmatprep.subr.mxu0 0.0
    %3286 = vmatpush1.msra.mxu0 0.0
    %3287 = vmatprep.subr.mxu0 0.0
    %3288 = vmatpush1.msra.mxu0 0.0
    %3289 = vmatprep.subr.mxu0 0.0
    %3290 = vmatpush1.msra.mxu0 0.0
    %3291 = vmatprep.subr.mxu0 0.0
    %3292 = vmatpush1.msra.mxu0 0.0
    %3293 = vmatprep.subr.mxu0 0.0
    %3294 = vmatpush1.msra.mxu0 0.0
    %3295 = vmatprep.subr.mxu0 0.0
    %3296 = vmatpush1.msra.mxu0 0.0
    %3297 = vmatprep.subr.mxu0 0.0
    %3298 = vmatpush1.msra.mxu0 0.0
    %3299 = vmatprep.subr.mxu0 0.0
    %3300 = vmatpush1.msra.mxu0 0.0
    %3301 = vmatprep.subr.mxu0 0.0
    %3302 = vmatpush1.msra.mxu0 0.0
    %3303 = vmatprep.subr.mxu0 0.0
    %3304 = vmatpush1.msra.mxu0 0.0
    %3305 = vmatprep.subr.mxu0 0.0
    %3306 = vmatpush1.msra.mxu0 0.0
    %3307 = vmatprep.subr.mxu0 0.0
    %3308 = vmatpush1.msra.mxu0 0.0
    %3309 = vmatprep.subr.mxu0 0.0
    %3310 = vmatpush1.msra.mxu0 0.0
    %3311 = vmatprep.subr.mxu0 0.0
    %3312 = vmatpush1.msra.mxu0 0.0
    %3313 = vmatprep.subr.mxu0 0.0
    %3314 = vmatpush1.msra.mxu0 0.0
    %3315 = vmatprep.subr.mxu0 0.0
    %3316 = vmatpush1.msra.mxu0 0.0
    %3317 = vmatprep.subr.mxu0 0.0
    %3318 = vmatpush1.msra.mxu0 0.0
    %3319 = vmatprep.mubr.f32.mxu0 0.0
    %3320 = vmatmul.mubr.f32.gmra.mrb[0].mxu0 %v1746
    %v3321 = vpop.f32.mrb[0].mxu0
    %v3322 = vadd.f32 0.0, %v3321
    %v3323 = vpop.f32.mrb[0].mxu0
    %3324 = vmatprep.mubr.f32.mxu0 0.0
    %3325 = vmatmul.mubr.f32.gmra.mrb[0].mxu0 %v1749
    %v3326 = vpop.f32.mrb[0].mxu0
    %v3327 = vadd.f32 0.0, %v3326
    %v3328 = vpop.f32.mrb[0].mxu0
    %3329 = vmatprep.mubr.f32.mxu0 0.0
    %3330 = vmatmul.mubr.f32.gmra.mrb[0].mxu0 %v1752
    %v3331 = vpop.f32.mrb[0].mxu0
    %v3332 = vadd.f32 0.0, %v3331
    %v3333 = vpop.f32.mrb[0].mxu0
    %3334 = vmatprep.mubr.f32.mxu0 0.0
    %3335 = vmatmul.mubr.f32.gmra.mrb[0].mxu0 %v1755
    %v3336 = vpop.f32.mrb[0].mxu0
    %v3337 = vadd.f32 0.0, %v3336
    %v3338 = vpop.f32.mrb[0].mxu0
    %3339 = vmatprep.mubr.f32.mxu0 0.0
    %3340 = vmatmul.mubr.f32.gmra.mrb[0].mxu0 %v1758
    %v3341 = vpop.f32.mrb[0].mxu0
    %v3342 = vadd.f32 0.0, %v3341
    %v3343 = vpop.f32.mrb[0].mxu0
    %3344 = vmatprep.mubr.f32.mxu0 0.0
    %3345 = vmatmul.mubr.f32.gmra.mrb[0].mxu0 %v1761
    %v3346 = vpop.f32.mrb[0].mxu0
    %v3347 = vadd.f32 0.0, %v3346
    %v3348 = vpop.f32.mrb[0].mxu0
    %3349 = vmatprep.mubr.f32.mxu0 0.0
    %3350 = vmatmul.mubr.f32.gmra.mrb[0].mxu0 %v1764
    %v3351 = vpop.f32.mrb[0].mxu0
    %v3352 = vadd.f32 0.0, %v3351
    %v3353 = vpop.f32.mrb[0].mxu0
    %3354 = vmatprep.mubr.f32.mxu0 0.0
    %3355 = vmatmul.mubr.f32.gmra.mrb[0].mxu0 %v1767
    %v3356 = vpop.f32.mrb[0].mxu0
    %v3357 = vadd.f32 0.0, %v3356
    %v3358 = vpop.f32.mrb[0].mxu0
    %3359 = vmatprep.mubr.f32.mxu0 0.0
    %3360 = vmatmul.mubr.f32.gmra.mrb[0].mxu0 %v1770
    %v3361 = vpop.f32.mrb[0].mxu0
    %v3362 = vpop.f32.mrb[0].mxu0
    %3363 = vmatprep.mubr.f32.mxu0 0.0
    %3364 = vmatmul.mubr.f32.gmra.mrb[0].mxu0 %v1773
    %v3365 = vpop.f32.mrb[0].mxu0
    %v3366 = vpop.f32.mrb[0].mxu0
    %3367 = vmatprep.mubr.f32.mxu0 0.0
    %3368 = vmatmul.mubr.f32.gmra.mrb[0].mxu0 %v1776
    %v3369 = vpop.f32.mrb[0].mxu0
    %v3370 = vpop.f32.mrb[0].mxu0
    %3371 = vmatprep.mubr.f32.mxu0 0.0
    %3372 = vmatmul.mubr.f32.gmra.mrb[0].mxu0 %v1779
    %v3373 = vpop.f32.mrb[0].mxu0
    %v3374 = vpop.f32.mrb[0].mxu0
    %3375 = vmatprep.mubr.f32.mxu0 0.0
    %3376 = vmatmul.mubr.f32.gmra.mrb[0].mxu0 %v1782
    %v3377 = vpop.f32.mrb[0].mxu0
    %v3378 = vpop.f32.mrb[0].mxu0
    %3379 = vmatprep.mubr.f32.mxu0 0.0
    %3380 = vmatmul.mubr.f32.gmra.mrb[0].mxu0 %v1785
    %v3381 = vpop.f32.mrb[0].mxu0
    %v3382 = vpop.f32.mrb[0].mxu0
    %3383 = vmatprep.mubr.f32.mxu0 0.0
    %3384 = vmatmul.mubr.f32.gmra.mrb[0].mxu0 %v1788
    %v3385 = vpop.f32.mrb[0].mxu0
    %v3386 = vpop.f32.mrb[0].mxu0
    %3387 = vmatprep.mubr.f32.mxu0 0.0
    %3388 = vmatmul.mubr.f32.gmra.mrb[0].mxu0 %v1791
    %v3389 = vpop.f32.mrb[0].mxu0
    %v3390 = vpop.f32.mrb[0].mxu0
    %3391 = vdwg.mxu0
    %v3392 = vadd.f32 %v3322, %v1941
    %v3393 = vadd.f32 %v3327, %v1946
    %v3394 = vadd.f32 %v3332, %v1951
    %v3395 = vadd.f32 %v3337, %v1956
    %v3396 = vadd.f32 %v3342, %v1961
    %v3397 = vadd.f32 %v3347, %v1966
    %v3398 = vadd.f32 %v3352, %v1971
    %v3399 = vadd.f32 %v3357, %v1976
    %v3400 = vtanh.pop %v3392
    %v3401 = vtanh.pop %v3393
    %v3402 = vtanh.pop %v3394
    %v3403 = vtanh.pop %v3395
    %v3404 = vtanh.pop %v3396
    %v3405 = vtanh.pop %v3397
    %v3406 = vtanh.pop %v3398
    %v3407 = vtanh.pop %v3399
    %v3408 = vmul.f32 %v3400, %v118
    %v3409 = vmul.f32 %v3401, %v119
    %v3410 = vmul.f32 %v3402, %v120
    %v3411 = vmul.f32 %v3403, %v121
    %v3412 = vmul.f32 %v3404, %v122
    %v3413 = vmul.f32 %v3405, %v123
    %v3414 = vmul.f32 %v3406, %v124
    %v3415 = vmul.f32 %v3407, %v125
    %v3416 = vadd.f32 %v3408, %v126
    %v3417 = vadd.f32 %v3409, %v127
    %v3418 = vadd.f32 %v3410, %v128
    %v3419 = vadd.f32 %v3411, %v129
    %v3420 = vadd.f32 %v3412, %v130
    %v3421 = vadd.f32 %v3413, %v131
    %v3422 = vadd.f32 %v3414, %v132
    %v3423 = vadd.f32 %v3415, %v133
    %v3424 = vmul.f32 %v3418, %v3199
    %v3425 = vmul.f32 %v3419, %v3200
    %v3426 = vmul.f32 %v3416, %v3422
    %v3427 = vmul.f32 %v3417, %v3423
    %v3428 = vadd.f32 %v3424, %v3426
    %v3429 = vadd.f32 %v3425, %v3427
    %v3430 = vtanh.pop %v3428
    %v3431 = vtanh.pop %v3429
    %v3432 = vmul.f32 %v3420, %v3430
    %v3433 = vmul.f32 %v3421, %v3431
    %3435 = vset.pattern.permute.xlu0 0
    %3436 = vperm.xlu0 %3435, %v98
    %v3437 = vpop.permute.xlu0 %3436
    %v3440 = vsel %vm1564, %v97, 0
    %3442 = vmatprep.subr.mxu0 0.0
    %3443 = vmatpush1.msra.mxu0 %v3432
    %3444 = vmatprep.subr.mxu0 0.0
    %3445 = vmatpush1.msra.mxu0 %v3433
    %3446 = vmatprep.subr.mxu0 0.0
    %3447 = vmatpush1.msra.mxu0 0.0
    %3448 = vmatprep.subr.mxu0 0.0
    %3449 = vmatpush1.msra.mxu0 0.0
    %3450 = vmatprep.subr.mxu0 0.0
    %3451 = vmatpush1.msra.mxu0 0.0
    %3452 = vmatprep.subr.mxu0 0.0
    %3453 = vmatpush1.msra.mxu0 0.0
    %3454 = vmatprep.subr.mxu0 0.0
    %3455 = vmatpush1.msra.mxu0 0.0
    %3456 = vmatprep.subr.mxu0 0.0
    %3457 = vmatpush1.msra.mxu0 0.0
    %3458 = vmatprep.subr.mxu0 0.0
    %3459 = vmatpush1.msra.mxu0 0.0
    %3460 = vmatprep.subr.mxu0 0.0
    %3461 = vmatpush1.msra.mxu0 0.0
    %3462 = vmatprep.subr.mxu0 0.0
    %3463 = vmatpush1.msra.mxu0 0.0
    %3464 = vmatprep.subr.mxu0 0.0
    %3465 = vmatpush1.msra.mxu0 0.0
    %3466 = vmatprep.subr.mxu0 0.0
    %3467 = vmatpush1.msra.mxu0 0.0
    %3468 = vmatprep.subr.mxu0 0.0
    %3469 = vmatpush1.msra.mxu0 0.0
    %3470 = vmatprep.subr.mxu0 0.0
    %3471 = vmatpush1.msra.mxu0 0.0
    %3472 = vmatprep.subr.mxu0 0.0
    %3473 = vmatpush1.msra.mxu0 0.0
    %3474 = vmatprep.subr.mxu0 0.0
    %3475 = vmatpush1.msra.mxu0 0.0
    %3476 = vmatprep.subr.mxu0 0.0
    %3477 = vmatpush1.msra.mxu0 0.0
    %3478 = vmatprep.subr.mxu0 0.0
    %3479 = vmatpush1.msra.mxu0 0.0
    %3480 = vmatprep.subr.mxu0 0.0
    %3481 = vmatpush1.msra.mxu0 0.0
    %3482 = vmatprep.subr.mxu0 0.0
    %3483 = vmatpush1.msra.mxu0 0.0
    %3484 = vmatprep.subr.mxu0 0.0
    %3485 = vmatpush1.msra.mxu0 0.0
    %3486 = vmatprep.subr.mxu0 0.0
    %3487 = vmatpush1.msra.mxu0 0.0
    %3488 = vmatprep.subr.mxu0 0.0
    %3489 = vmatpush1.msra.mxu0 0.0
    %3490 = vmatprep.subr.mxu0 0.0
    %3491 = vmatpush1.msra.mxu0 0.0
    %3492 = vmatprep.subr.mxu0 0.0
    %3493 = vmatpush1.msra.mxu0 0.0
    %3494 = vmatprep.subr.mxu0 0.0
    %3495 = vmatpush1.msra.mxu0 0.0
    %3496 = vmatprep.subr.mxu0 0.0
    %3497 = vmatpush1.msra.mxu0 0.0
    %3498 = vmatprep.subr.mxu0 0.0
    %3499 = vmatpush1.msra.mxu0 0.0
    %3500 = vmatprep.subr.mxu0 0.0
    %3501 = vmatpush1.msra.mxu0 0.0
    %3502 = vmatprep.subr.mxu0 0.0
    %3503 = vmatpush1.msra.mxu0 0.0
    %3504 = vmatprep.subr.mxu0 0.0
    %3505 = vmatpush1.msra.mxu0 0.0
    %3506 = vmatprep.mubr.f32.mxu0 0.0
    %3507 = vmatmul.mubr.f32.gmra.mrb[0].mxu0 %v3440
    %v3508 = vpop.f32.mrb[0].mxu0
    %v3509 = vadd.f32 %v3437, %v3508
    %v3510 = vpop.f32.mrb[0].mxu0
    %3511 = vdwg.mxu0
    %v3512 = vmax.f32 %v3509, 0.0
    %3514 = vset.pattern.permute.xlu0 0
    %3515 = vperm.xlu0 %3514, %v100
    %v3516 = vpop.permute.xlu0 %3515
    %v3518 = vlaneseq
    %v3519 = vshrl.u32 %v3518, 7
    %v3520 = vsub.s32 0, %v3519
    %v3521 = vrot.slane %v3516, %v3520
    %vm3522 = vcmask 48128
    %v3524 = vsel %vm3522, %v99, 0
    %vm3526 = vcmask 1045504
    %v3528 = vsel %vm3526, %v3512, 0
    %3530 = vmatprep.subr.mxu0 0.0
    %3531 = vmatpush1.msra.mxu0 %v3528
    %3532 = vmatprep.subr.mxu0 0.0
    %3533 = vmatpush1.msra.mxu0 0.0
    %3534 = vmatprep.subr.mxu0 0.0
    %3535 = vmatpush1.msra.mxu0 0.0
    %3536 = vmatprep.subr.mxu0 0.0
    %3537 = vmatpush1.msra.mxu0 0.0
    %3538 = vmatprep.subr.mxu0 0.0
    %3539 = vmatpush1.msra.mxu0 0.0
    %3540 = vmatprep.subr.mxu0 0.0
    %3541 = vmatpush1.msra.mxu0 0.0
    %3542 = vmatprep.subr.mxu0 0.0
    %3543 = vmatpush1.msra.mxu0 0.0
    %3544 = vmatprep.subr.mxu0 0.0
    %3545 = vmatpush1.msra.mxu0 0.0
    %3546 = vmatprep.subr.mxu0 0.0
    %3547 = vmatpush1.msra.mxu0 0.0
    %3548 = vmatprep.subr.mxu0 0.0
    %3549 = vmatpush1.msra.mxu0 0.0
    %3550 = vmatprep.subr.mxu0 0.0
    %3551 = vmatpush1.msra.mxu0 0.0
    %3552 = vmatprep.subr.mxu0 0.0
    %3553 = vmatpush1.msra.mxu0 0.0
    %3554 = vmatprep.subr.mxu0 0.0
    %3555 = vmatpush1.msra.mxu0 0.0
    %3556 = vmatprep.subr.mxu0 0.0
    %3557 = vmatpush1.msra.mxu0 0.0
    %3558 = vmatprep.subr.mxu0 0.0
    %3559 = vmatpush1.msra.mxu0 0.0
    %3560 = vmatprep.subr.mxu0 0.0
    %3561 = vmatpush1.msra.mxu0 0.0
    %3562 = vmatprep.subr.mxu0 0.0
    %3563 = vmatpush1.msra.mxu0 0.0
    %3564 = vmatprep.subr.mxu0 0.0
    %3565 = vmatpush1.msra.mxu0 0.0
    %3566 = vmatprep.subr.mxu0 0.0
    %3567 = vmatpush1.msra.mxu0 0.0
    %3568 = vmatprep.subr.mxu0 0.0
    %3569 = vmatpush1.msra.mxu0 0.0
    %3570 = vmatprep.subr.mxu0 0.0
    %3571 = vmatpush1.msra.mxu0 0.0
    %3572 = vmatprep.subr.mxu0 0.0
    %3573 = vmatpush1.msra.mxu0 0.0
    %3574 = vmatprep.subr.mxu0 0.0
    %3575 = vmatpush1.msra.mxu0 0.0
    %3576 = vmatprep.subr.mxu0 0.0
    %3577 = vmatpush1.msra.mxu0 0.0
    %3578 = vmatprep.subr.mxu0 0.0
    %3579 = vmatpush1.msra.mxu0 0.0
    %3580 = vmatprep.subr.mxu0 0.0
    %3581 = vmatpush1.msra.mxu0 0.0
    %3582 = vmatprep.subr.mxu0 0.0
    %3583 = vmatpush1.msra.mxu0 0.0
    %3584 = vmatprep.subr.mxu0 0.0
    %3585 = vmatpush1.msra.mxu0 0.0
    %3586 = vmatprep.subr.mxu0 0.0
    %3587 = vmatpush1.msra.mxu0 0.0
    %3588 = vmatprep.subr.mxu0 0.0
    %3589 = vmatpush1.msra.mxu0 0.0
    %3590 = vmatprep.subr.mxu0 0.0
    %3591 = vmatpush1.msra.mxu0 0.0
    %3592 = vmatprep.subr.mxu0 0.0
    %3593 = vmatpush1.msra.mxu0 0.0
    %3594 = vmatprep.mubr.f32.mxu0 0.0
    %3595 = vmatmul.mubr.f32.gmra.mrb[0].mxu0 %v3524
    %v3596 = vpop.f32.mrb[0].mxu0
    %v3597 = vadd.f32 %v3521, %v3596
    %v3598 = vpop.f32.mrb[0].mxu0
    %3599 = vdwg.mxu0
    %vm3600 = vcmask 8192
    %3601 = vst.msk [vmem:[#allocation4] sm:$0x1] %vm3600, %v3597
    // Predicated region
    $region54: #{tpu_custom_call.1} parent=1 // pred_check
      _
    $region55: #{tpu_custom_call.1} parent=1 // pred_check_branch
      %3603 = sbr.rel (0) target = $region57
    $region56: #{tpu_custom_call.1} parent=1 // pred_region
      %s3605 = ssub.s32 16, 16
      %3606 = vsyncadd [#allocation5], %s3605
      %s3608 = sshll.u32 [#allocation4], 4
      %s3609 = int_to_ptr.vmem [resolvable:$true] %s3608
      %3611 = dma.vmem_to_hbm [thread:$0]  %s3609, 16, %s13, [#allocation5]
    $region57: #{tpu_custom_call.1} parent=1 // pred_fallthru
      _
    // Predicated region
    $region58: #{tpu_custom_call.1} parent=1 // pred_check
      _
    $region59: #{tpu_custom_call.1} parent=1 // pred_check_branch
      %3613 = sbr.rel (0) target = $region61
    $region60: #{tpu_custom_call.1} parent=1 // pred_region
      %3614 = dma.done [#allocation5], 16
    $region61: #{tpu_custom_call.1} parent=1 // pred_fallthru
      _
    %3615 = vsyncpa [#allocation5], 1

</llo_original>
